<compile_context>
chip_gen: v7x
topology: tpu7x:2x2x1
jax: 0.10.0
libtpu: 0.0.40
codegen_flags: <defaults>
</compile_context>

<pallas_src>
import functools

import jax
import jax.numpy as jnp
from jax import lax
from jax.experimental import pallas as pl
from jax.experimental.pallas import tpu as pltpu

EPS = 1e-5                 # PyTorch BatchNorm2d default eps
LANE = 128                 # TPU lane width
MAX_ROWS = 2048            # cap on rows (M) per matmul tile
MIN_ROWS_MEGACORE = 1024   # don't shrink below this many rows just for grid balance


def _round_up(x, m):
    return (x + m - 1) // m * m


def _vmem_limits():
    """(scoped VMEM limit, working budget) in bytes, per TPU generation."""
    try:
        cap = int(pltpu.get_tpu_info().vmem_capacity_bytes)
    except Exception:
        cap = 64 * 1024 * 1024            # conservative: v7x physical VMEM
    limit = min(int(cap * 0.8), 100 * 1024 * 1024)
    return limit, int(limit * 0.75)


def _rows_budget(W, Cin, Kp, Cop, vmem_bytes):
    """Rows (M) per tile so double-buffered blocks + scratch fit the VMEM budget."""
    per_row = (
        4 * Cin * (W + 2) // max(W, 1) + 4 * Cin   # 2x bf16 input blocks (halo approx)
        + 2 * Kp                                   # bf16 im2col slab scratch
        + 2 * 4 * Cop                              # 2x f32 output blocks (pass 2)
        + 8 * Cop                                  # f32 matmul acc + elementwise temps
    )
    fixed = 2 * 2 * Kp * Cop + (2 << 20)           # 2x bf16 weight blocks + slack
    rows = (vmem_bytes - fixed) // max(per_row, 1)
    return int(max(LANE, min(rows, MAX_ROWS)))


def _pick_tile_h(H, W, N, rows_budget):
    cap = min(max(1, rows_budget // max(W, 1)), H)
    # Prefer a divisor of H (no pad/mask work); if the best divisor wastes most
    # of the budget (e.g. prime H), take the cap and use the pad+mask path.
    th = next((d for d in range(cap, 0, -1) if H % d == 0), 1)
    if th * 4 < cap:
        th = cap
    # v7x megacore: prefer >= 8 grid steps so both TensorCores stay busy, but
    # keep tiles large enough to stay near the HBM roofline.
    while N * (-(-H // th)) < 8 and th % 2 == 0 and (th // 2) * W >= MIN_ROWS_MEGACORE:
        th //= 2
    return th


def _im2col(x_ref, slab_ref, *, cin, kp):
    """Build the (M, Kp) im2col slab from the padded tile x_ref (1, th+2, W+2, cin)."""
    th = x_ref.shape[1] - 2
    wd = x_ref.shape[2] - 2
    m = th * wd
    for kh in range(3):
        for kw in range(3):
            tap = kh * 3 + kw
            patch = x_ref[:, kh:kh + th, kw:kw + wd, :].reshape(m, cin)
            slab_ref[:, tap * cin:(tap + 1) * cin] = patch
    if kp > 9 * cin:
        # The matching weight rows are zero, but uninitialized scratch garbage
        # (NaN/Inf bit patterns) times zero would still poison the accumulator.
        slab_ref[:, 9 * cin:] = jnp.zeros((m, kp - 9 * cin), slab_ref.dtype)


def _stats_kernel(x_ref, w_ref, stats_ref, slab_ref, *, cin, kp, h, tile_h, n_h):
    # Pass 1: conv (bf16 MXU, f32 acc) -> per-tile centered partial BN stats.
    cop = stats_ref.shape[2]
    th = x_ref.shape[1] - 2
    wd = x_ref.shape[2] - 2
    m = th * wd

    _im2col(x_ref, slab_ref, cin=cin, kp=kp)
    acc = jnp.dot(slab_ref[...], w_ref[...], preferred_element_type=jnp.float32)

    if n_h * tile_h == h:
        # All rows of every tile are valid.
        s = jnp.sum(acc, axis=0, keepdims=True)                   # (1, Cop)
        d = acc - s * (1.0 / m)
    else:
        # Last tile of each image carries H-padding rows: mask them out.
        t = pl.program_id(0) % n_h
        nvalid = jnp.minimum(h - t * tile_h, tile_h) * wd         # valid rows * W
        msk = (lax.broadcasted_iota(jnp.int32, (m, 1), 0) < nvalid).astype(jnp.float32)
        s = jnp.sum(acc * msk, axis=0, keepdims=True)
        d = (acc - s / nvalid.astype(jnp.float32)) * msk
    m2 = jnp.sum(d * d, axis=0, keepdims=True)                    # centered sum of squares
    stats_ref[...] = jnp.concatenate([s, m2], axis=0).reshape(1, 2, cop)


def _apply_kernel(x_ref, w_ref, shift_ref, o_ref, slab_ref, *, cin, kp):
    # Pass 2: recompute conv with BN-scale-folded weights, add shift, ReLU.
    m, cop = o_ref.shape[1], o_ref.shape[2]
    _im2col(x_ref, slab_ref, cin=cin, kp=kp)
    acc = jnp.dot(slab_ref[...], w_ref[...], preferred_element_type=jnp.float32)
    o_ref[...] = jnp.maximum(acc + shift_ref[...], 0.0).reshape(1, m, cop)


def conv_bn_relu(x_nchw, w_oihw, gamma, beta):
    """Forward pass of ConvBNReLU (ks=3, stride=1, padding=1, bias=False).

    x_nchw: (N, Cin, H, W) f32; w_oihw: (Cout, Cin, 3, 3) f32 (PyTorch layout)
    gamma, beta: (Cout,) BatchNorm affine params. Returns (N, Cout, H, W) f32.
    """
    N, Cin, H, W = x_nchw.shape
    Cout = w_oihw.shape[0]
    Cop = _round_up(Cout, LANE)
    K = 9 * Cin
    Kp = _round_up(K, LANE)

    vmem_limit, vmem_budget = _vmem_limits()
    tile_h = _pick_tile_h(H, W, N, _rows_budget(W, Cin, Kp, Cop, vmem_budget))
    n_h = -(-H // tile_h)
    H_pad = n_h * tile_h
    n_tiles = N * n_h
    m = tile_h * W

    # ---- wrapper-side layout glue (plain XLA, done once) ----
    x = jnp.transpose(x_nchw, (0, 2, 3, 1)).astype(jnp.bfloat16)            # NHWC bf16
    x = jnp.pad(x, ((0, 0), (1, 1 + H_pad - H), (1, 1), (0, 0)))            # conv pad + H pad
    # Row tiles with a 2-row halo so BlockSpec blocks never overlap (input is bf16
    # and channel-unpadded, so this copy is small).
    x_tiles = jnp.stack(
        [x[:, t * tile_h:t * tile_h + tile_h + 2] for t in range(n_h)], axis=1)
    x_tiles = x_tiles.reshape(n_tiles, tile_h + 2, W + 2, Cin)

    # Weights OIHW -> im2col-ordered (Kp, Cop); K padded in total (not per tap).
    wt = jnp.transpose(w_oihw, (2, 3, 1, 0)).astype(jnp.float32).reshape(K, Cout)
    wt = jnp.pad(wt, ((0, Kp - K), (0, Cop - Cout)))

    cparams = pltpu.CompilerParams(
        dimension_semantics=("parallel",),
        vmem_limit_bytes=vmem_limit,
    )
    x_spec = pl.BlockSpec((1, tile_h + 2, W + 2, Cin), lambda i: (i, 0, 0, 0))
    w_spec = pl.BlockSpec((Kp, Cop), lambda i: (0, 0))

    # ---- pass 1: conv -> per-tile centered BN partial stats only ----
    stats = pl.pallas_call(
        functools.partial(_stats_kernel, cin=Cin, kp=Kp, h=H, tile_h=tile_h, n_h=n_h),
        out_shape=jax.ShapeDtypeStruct((n_tiles, 2, Cop), jnp.float32),
        grid=(n_tiles,),
        in_specs=[x_spec, w_spec],
        out_specs=pl.BlockSpec((1, 2, Cop), lambda i: (i, 0, 0)),
        scratch_shapes=[pltpu.VMEM((m, Kp), jnp.bfloat16)],
        compiler_params=cparams,
    )(x_tiles, wt.astype(jnp.bfloat16))

    # ---- combine per-tile stats (Chan parallel-variance, f32) and fold BN ----
    counts = jnp.asarray(
        [min(H - (i % n_h) * tile_h, tile_h) * W for i in range(n_tiles)],
        dtype=jnp.float32).reshape(n_tiles, 1)
    total = float(N * H * W)
    s_t, m2_t = stats[:, 0, :], stats[:, 1, :]
    mean = jnp.sum(s_t, axis=0) / total
    m2 = jnp.sum(m2_t, axis=0) + jnp.sum(counts * (s_t / counts - mean) ** 2, axis=0)
    var = m2 / total                                             # biased variance
    g = jnp.pad(gamma.astype(jnp.float32), (0, Cop - Cout))
    b = jnp.pad(beta.astype(jnp.float32), (0, Cop - Cout))
    scale = g * lax.rsqrt(var + EPS)
    shift = (b - mean * scale).reshape(1, Cop)
    w_folded = (wt * scale[None, :]).astype(jnp.bfloat16)        # fold BN scale into weights

    # ---- pass 2: recompute conv with folded weights, add shift, ReLU ----
    y = pl.pallas_call(
        functools.partial(_apply_kernel, cin=Cin, kp=Kp),
        out_shape=jax.ShapeDtypeStruct((n_tiles, m, Cop), jnp.float32),
        grid=(n_tiles,),
        in_specs=[x_spec, w_spec, pl.BlockSpec((1, Cop), lambda i: (0, 0))],
        out_specs=pl.BlockSpec((1, m, Cop), lambda i: (i, 0, 0)),
        scratch_shapes=[pltpu.VMEM((m, Kp), jnp.bfloat16)],
        compiler_params=cparams,
    )(x_tiles, w_folded, shift)

    y = y.reshape(N, H_pad, W, Cop)[:, :H, :, :Cout]
    return jnp.transpose(y, (0, 3, 1, 2))                        # back to NCHW


def reference(x_nchw, w_oihw, gamma, beta):
    """Pure-JAX f32 reference matching PyTorch ConvBNReLU.forward (training-mode BN)."""
    x = jnp.transpose(x_nchw, (0, 2, 3, 1))
    w = jnp.transpose(w_oihw, (2, 3, 1, 0))
    conv = lax.conv_general_dilated(
        x, w, window_strides=(1, 1), padding=((1, 1), (1, 1)),
        dimension_numbers=("NHWC", "HWIO", "NHWC"))
    mean = jnp.mean(conv, axis=(0, 1, 2))
    var = jnp.mean((conv - mean) ** 2, axis=(0, 1, 2))
    y = (conv - mean) * lax.rsqrt(var + EPS) * gamma + beta
    y = jnp.maximum(y, 0.0)
    return jnp.transpose(y, (0, 3, 1, 2))


if __name__ == "__main__":
    key = jax.random.PRNGKey(0)

    def run_case(N, Cin, Cout, H, W, k):
        kx, kw, kg, kb = jax.random.split(k, 4)
        x = jax.random.normal(kx, (N, Cin, H, W), dtype=jnp.float32)
        w = 0.1 * jax.random.normal(kw, (Cout, Cin, 3, 3), dtype=jnp.float32)
        gamma = 1.0 + 0.1 * jax.random.normal(kg, (Cout,), dtype=jnp.float32)
        beta = 0.1 * jax.random.normal(kb, (Cout,), dtype=jnp.float32)
        out = jax.block_until_ready(conv_bn_relu(x, w, gamma, beta))
        ref = jax.block_until_ready(reference(x, w, gamma, beta))
        assert out.shape == (N, Cout, H, W), out.shape
        # Tolerance 2e-2: the conv matmul uses bf16 MXU inputs (f32 accumulation).
        assert jnp.allclose(out, ref, atol=2e-2, rtol=2e-2), (
            float(jnp.max(jnp.abs(out - ref))))

    k1, k2 = jax.random.split(key)
    # Main case (matches the reported input shape).
    run_case(2, 4, 8, 16, 16, k1)
    # Awkward-H / tiny-Cin case: exercises the H-padding + stats-masking path and
    # the first-layer-style Cin=3 with non-lane-aligned im2col columns.
    run_case(1, 3, 8, 71, 32, k2)
    print("KERNEL_OK")
</pallas_src>

<mosaic_0001>
module attributes {stable_mosaic.version = 11 : i64} {
  func.func @_stats_kernel(%arg0: i32, %arg1: memref<1x18x18x4xbf16, #tpu.memory_space<vmem>>, %arg2: memref<128x128xbf16, #tpu.memory_space<vmem>>, %arg3: memref<1x2x128xf32, #tpu.memory_space<vmem>>, %arg4: memref<256x128xbf16, #tpu.memory_space<vmem>>) attributes {dimension_semantics = [#tpu.dimension_semantics<parallel>], iteration_bounds = array<i64: 2>, scalar_prefetch = 0 : i64, scratch_operands = 1 : i64, tpu.core_type = #tpu.core_type<tc>, window_params = [{transform_indices = @transform_0, window_bounds = array<i64: 1, 18, 18, 4>}, {pipeline_mode = #tpu.pipeline_mode<synchronous>, transform_indices = @transform_1, window_bounds = array<i64: 128, 128>}, {transform_indices = @transform_2, window_bounds = array<i64: 1, 2, 128>}]} {
    %c0 = arith.constant 0 : index
    %c0_0 = arith.constant 0 : index
    %c0_1 = arith.constant 0 : index
    %c0_2 = arith.constant 0 : index
    %0 = vector.load %arg1[%c0, %c0_0, %c0_1, %c0_2] : memref<1x18x18x4xbf16, #tpu.memory_space<vmem>>, vector<1x16x16x4xbf16>
    %1 = vector.shape_cast %0 : vector<1x16x16x4xbf16> to vector<256x4xbf16>
    %c0_3 = arith.constant 0 : index
    %c0_4 = arith.constant 0 : index
    %2 = vector.load %arg4[%c0_3, %c0_4] : memref<256x128xbf16, #tpu.memory_space<vmem>>, vector<256x4xbf16>
    tpu.vector_store %arg4[%c0_3, %c0_4], %1 {strides = array<i32>} : memref<256x128xbf16, #tpu.memory_space<vmem>>, vector<256x4xbf16>,
    %c0_5 = arith.constant 0 : index
    %c0_6 = arith.constant 0 : index
    %c1 = arith.constant 1 : index
    %c0_7 = arith.constant 0 : index
    %3 = vector.load %arg1[%c0_5, %c0_6, %c1, %c0_7] : memref<1x18x18x4xbf16, #tpu.memory_space<vmem>>, vector<1x16x16x4xbf16>
    %4 = vector.shape_cast %3 : vector<1x16x16x4xbf16> to vector<256x4xbf16>
    %c0_8 = arith.constant 0 : index
    %c4 = arith.constant 4 : index
    %5 = vector.load %arg4[%c0_8, %c4] : memref<256x128xbf16, #tpu.memory_space<vmem>>, vector<256x4xbf16>
    tpu.vector_store %arg4[%c0_8, %c4], %4 {strides = array<i32>} : memref<256x128xbf16, #tpu.memory_space<vmem>>, vector<256x4xbf16>,
    %c0_9 = arith.constant 0 : index
    %c0_10 = arith.constant 0 : index
    %c2 = arith.constant 2 : index
    %c0_11 = arith.constant 0 : index
    %6 = vector.load %arg1[%c0_9, %c0_10, %c2, %c0_11] : memref<1x18x18x4xbf16, #tpu.memory_space<vmem>>, vector<1x16x16x4xbf16>
    %7 = vector.shape_cast %6 : vector<1x16x16x4xbf16> to vector<256x4xbf16>
    %c0_12 = arith.constant 0 : index
    %c8 = arith.constant 8 : index
    %8 = vector.load %arg4[%c0_12, %c8] : memref<256x128xbf16, #tpu.memory_space<vmem>>, vector<256x4xbf16>
    tpu.vector_store %arg4[%c0_12, %c8], %7 {strides = array<i32>} : memref<256x128xbf16, #tpu.memory_space<vmem>>, vector<256x4xbf16>,
    %c0_13 = arith.constant 0 : index
    %c1_14 = arith.constant 1 : index
    %c0_15 = arith.constant 0 : index
    %c0_16 = arith.constant 0 : index
    %9 = vector.load %arg1[%c0_13, %c1_14, %c0_15, %c0_16] : memref<1x18x18x4xbf16, #tpu.memory_space<vmem>>, vector<1x16x16x4xbf16>
    %10 = vector.shape_cast %9 : vector<1x16x16x4xbf16> to vector<256x4xbf16>
    %c0_17 = arith.constant 0 : index
    %c12 = arith.constant 12 : index
    %11 = vector.load %arg4[%c0_17, %c12] : memref<256x128xbf16, #tpu.memory_space<vmem>>, vector<256x4xbf16>
    tpu.vector_store %arg4[%c0_17, %c12], %10 {strides = array<i32>} : memref<256x128xbf16, #tpu.memory_space<vmem>>, vector<256x4xbf16>,
    %c0_18 = arith.constant 0 : index
    %c1_19 = arith.constant 1 : index
    %c1_20 = arith.constant 1 : index
    %c0_21 = arith.constant 0 : index
    %12 = vector.load %arg1[%c0_18, %c1_19, %c1_20, %c0_21] : memref<1x18x18x4xbf16, #tpu.memory_space<vmem>>, vector<1x16x16x4xbf16>
    %13 = vector.shape_cast %12 : vector<1x16x16x4xbf16> to vector<256x4xbf16>
    %c0_22 = arith.constant 0 : index
    %c16 = arith.constant 16 : index
    %14 = vector.load %arg4[%c0_22, %c16] : memref<256x128xbf16, #tpu.memory_space<vmem>>, vector<256x4xbf16>
    tpu.vector_store %arg4[%c0_22, %c16], %13 {strides = array<i32>} : memref<256x128xbf16, #tpu.memory_space<vmem>>, vector<256x4xbf16>,
    %c0_23 = arith.constant 0 : index
    %c1_24 = arith.constant 1 : index
    %c2_25 = arith.constant 2 : index
    %c0_26 = arith.constant 0 : index
    %15 = vector.load %arg1[%c0_23, %c1_24, %c2_25, %c0_26] : memref<1x18x18x4xbf16, #tpu.memory_space<vmem>>, vector<1x16x16x4xbf16>
    %16 = vector.shape_cast %15 : vector<1x16x16x4xbf16> to vector<256x4xbf16>
    %c0_27 = arith.constant 0 : index
    %c20 = arith.constant 20 : index
    %17 = vector.load %arg4[%c0_27, %c20] : memref<256x128xbf16, #tpu.memory_space<vmem>>, vector<256x4xbf16>
    tpu.vector_store %arg4[%c0_27, %c20], %16 {strides = array<i32>} : memref<256x128xbf16, #tpu.memory_space<vmem>>, vector<256x4xbf16>,
    %c0_28 = arith.constant 0 : index
    %c2_29 = arith.constant 2 : index
    %c0_30 = arith.constant 0 : index
    %c0_31 = arith.constant 0 : index
    %18 = vector.load %arg1[%c0_28, %c2_29, %c0_30, %c0_31] : memref<1x18x18x4xbf16, #tpu.memory_space<vmem>>, vector<1x16x16x4xbf16>
    %19 = vector.shape_cast %18 : vector<1x16x16x4xbf16> to vector<256x4xbf16>
    %c0_32 = arith.constant 0 : index
    %c24 = arith.constant 24 : index
    %20 = vector.load %arg4[%c0_32, %c24] : memref<256x128xbf16, #tpu.memory_space<vmem>>, vector<256x4xbf16>
    tpu.vector_store %arg4[%c0_32, %c24], %19 {strides = array<i32>} : memref<256x128xbf16, #tpu.memory_space<vmem>>, vector<256x4xbf16>,
    %c0_33 = arith.constant 0 : index
    %c2_34 = arith.constant 2 : index
    %c1_35 = arith.constant 1 : index
    %c0_36 = arith.constant 0 : index
    %21 = vector.load %arg1[%c0_33, %c2_34, %c1_35, %c0_36] : memref<1x18x18x4xbf16, #tpu.memory_space<vmem>>, vector<1x16x16x4xbf16>
    %22 = vector.shape_cast %21 : vector<1x16x16x4xbf16> to vector<256x4xbf16>
    %c0_37 = arith.constant 0 : index
    %c28 = arith.constant 28 : index
    %23 = vector.load %arg4[%c0_37, %c28] : memref<256x128xbf16, #tpu.memory_space<vmem>>, vector<256x4xbf16>
    tpu.vector_store %arg4[%c0_37, %c28], %22 {strides = array<i32>} : memref<256x128xbf16, #tpu.memory_space<vmem>>, vector<256x4xbf16>,
    %c0_38 = arith.constant 0 : index
    %c2_39 = arith.constant 2 : index
    %c2_40 = arith.constant 2 : index
    %c0_41 = arith.constant 0 : index
    %24 = vector.load %arg1[%c0_38, %c2_39, %c2_40, %c0_41] : memref<1x18x18x4xbf16, #tpu.memory_space<vmem>>, vector<1x16x16x4xbf16>
    %25 = vector.shape_cast %24 : vector<1x16x16x4xbf16> to vector<256x4xbf16>
    %c0_42 = arith.constant 0 : index
    %c32 = arith.constant 32 : index
    %26 = vector.load %arg4[%c0_42, %c32] : memref<256x128xbf16, #tpu.memory_space<vmem>>, vector<256x4xbf16>
    tpu.vector_store %arg4[%c0_42, %c32], %25 {strides = array<i32>} : memref<256x128xbf16, #tpu.memory_space<vmem>>, vector<256x4xbf16>,
    %cst = arith.constant 0.000000e+00 : bf16
    %27 = vector.broadcast %cst : bf16 to vector<256x92xbf16>
    %c0_43 = arith.constant 0 : index
    %c36 = arith.constant 36 : index
    %28 = vector.load %arg4[%c0_43, %c36] : memref<256x128xbf16, #tpu.memory_space<vmem>>, vector<256x92xbf16>
    tpu.vector_store %arg4[%c0_43, %c36], %27 {strides = array<i32>} : memref<256x128xbf16, #tpu.memory_space<vmem>>, vector<256x92xbf16>,
    %c0_44 = arith.constant 0 : index
    %c0_45 = arith.constant 0 : index
    %29 = vector.load %arg4[%c0_44, %c0_45] : memref<256x128xbf16, #tpu.memory_space<vmem>>, vector<256x128xbf16>
    %c0_46 = arith.constant 0 : index
    %c0_47 = arith.constant 0 : index
    %30 = vector.load %arg2[%c0_46, %c0_47] : memref<128x128xbf16, #tpu.memory_space<vmem>>, vector<128x128xbf16>
    %cst_48 = arith.constant dense<0.000000e+00> : vector<256x128xf32>
    %31 = tpu.matmul %29, %30, %cst_48 {dimension_numbers = #tpu.dot_dimension_numbers<[1], [0], [0], [1], [0, 0, 1, 1], [], []>} : vector<256x128xbf16>, vector<128x128xbf16>, vector<256x128xf32> -> vector<256x128xf32>
    %cst_49 = arith.constant dense<0.000000e+00> : vector<128xf32>
    %32 = vector.multi_reduction <add>, %31, %cst_49 [0] : vector<256x128xf32> to vector<128xf32>
    %33 = vector.shape_cast %32 : vector<128xf32> to vector<1x128xf32>
    %cst_50 = arith.constant 3.906250e-03 : f32
    %34 = vector.broadcast %cst_50 : f32 to vector<1x128xf32>
    %35 = arith.mulf %33, %34 : vector<1x128xf32>
    %36 = vector.broadcast %35 : vector<1x128xf32> to vector<256x128xf32>
    %37 = arith.subf %31, %36 : vector<256x128xf32>
    %38 = arith.mulf %37, %37 : vector<256x128xf32>
    %cst_51 = arith.constant dense<0.000000e+00> : vector<128xf32>
    %39 = vector.multi_reduction <add>, %38, %cst_51 [0] : vector<256x128xf32> to vector<128xf32>
    %40 = vector.shape_cast %39 : vector<128xf32> to vector<1x128xf32>
    %41 = tpu.concatenate %33, %40 in 0 : vector<1x128xf32>, vector<1x128xf32> -> vector<2x128xf32>
    %42 = vector.shape_cast %41 : vector<2x128xf32> to vector<1x2x128xf32>
    %c0_52 = arith.constant 0 : index
    %c0_53 = arith.constant 0 : index
    %c0_54 = arith.constant 0 : index
    %43 = vector.load %arg3[%c0_52, %c0_53, %c0_54] : memref<1x2x128xf32, #tpu.memory_space<vmem>>, vector<1x2x128xf32>
    tpu.vector_store %arg3[%c0_52, %c0_53, %c0_54], %42 {strides = array<i32>} : memref<1x2x128xf32, #tpu.memory_space<vmem>>, vector<1x2x128xf32>,
    return
  }
  func.func @transform_0(%arg0: i32) -> (i32, i32, i32, i32) {
    %c0_i32 = arith.constant 0 : i32
    %c0_i32_0 = arith.constant 0 : i32
    %c0_i32_1 = arith.constant 0 : i32
    %c0_i32_2 = arith.constant 0 : i32
    return %arg0, %c0_i32, %c0_i32_0, %c0_i32_1 : i32, i32, i32, i32
  }
  func.func @transform_1(%arg0: i32) -> (i32, i32) {
    %c0_i32 = arith.constant 0 : i32
    %c0_i32_0 = arith.constant 0 : i32
    %c0_i32_1 = arith.constant 0 : i32
    return %c0_i32, %c0_i32_0 : i32, i32
  }
  func.func @transform_2(%arg0: i32) -> (i32, i32, i32) {
    %c0_i32 = arith.constant 0 : i32
    %c0_i32_0 = arith.constant 0 : i32
    %c0_i32_1 = arith.constant 0 : i32
    return %arg0, %c0_i32, %c0_i32_0 : i32, i32, i32
  }
}

</mosaic_0001>

<llo_original>
// kernel: tpu_custom_call.1
$region0: #{tpu_custom_call.1}
  #allocation0 [shape = 'u32[]', space=smem, size = 0x4, offset = 0x4, fixed_abs, tag = 'smem constant byte address 0x4 - core index']
  #allocation1 [shape = 'u32[144,128]{1,0:T(1,128)}', space=vmem, size = 0x12000, scoped, tag = 'internal scratch']
  #allocation2 [shape = 'bf16[256,128]{1,0:T(16,128)(2,1)}', space=vmem, size = 0x10000, scoped, tag = 'scratch operand']
  %s0 = inlined_call_operand.vmem [shape: bf16[2,18,18,4], index: 0, kind: input, shape index: {}]
  %s1 = inlined_call_operand.vmem [shape: bf16[128,128], index: 1, kind: input, shape index: {}]
  %s2 = inlined_call_operand.hbm [shape: f32[2,2,128], index: 2, kind: output, shape index: {}]
  %s3 = sld [smem:[#allocation0]]
  $region41: #{tpu_custom_call.1} parent=0
    _
  %s5 = ssub.s32 1, %s3
  %s6 = scalar_select 0, %s5, %s3
  $region1: #{tpu_custom_call.1} parent=0
    #allocation3 [shape = 'u8[2048]{0}', space=vmem, size = 0x800, scoped, tag = 'output window, operand 0']
    #allocation4 [shape = 's32[2]{0}', space=sflag, size = 0x8, scoped, tag = 'scoped memory for tpu_custom_call.1']
    %7 = vsyncpa [#allocation4], 0
    %s8 = scalar_lea.sflag [#allocation4], 1
    %9 = vsyncpa %s8, 0
    loop: start=0, step=1, limit=4
    $region2: #{tpu_custom_call.1} parent=1 // loop_pre_header
      _
    $region3: #{tpu_custom_call.1} parent=1 // loop_header
      %s11 = sphi 0, %s15
      %p12 = scmp.ge.s32.totalorder %s11, 4
      %s21 = sphi 0, %s23
      %s24 = sphi 0, %s21
      %s25 = sphi 0, %s24
      %s41 = sphi 0, %s25
      %s45 = sphi 0, %s45
      %s47 = sphi 0, %s45
      %s48 = sphi 0, %s47
      %s62 = sphi 0, %s48
      %s68 = sphi 0, %s70
      %s71 = sphi 0, %s68
      %s72 = sphi 0, %s71
      %s88 = sphi 0, %s72
    $region4: #{tpu_custom_call.1} parent=1 // loop_header_branch
      %14 = sbr.rel (%p12) target = $region8
    $region5: #{tpu_custom_call.1} parent=1 // loop_body
      %s16 = ssub.s32 %s11, 1
      %s17 = ssub.s32 %s11, 2
      %s18 = sadd.s32 %s11, 1
      %s19 = ssub.s32 %s11, %s18
      %p20 = scmp.eq.s32.totalorder %s19, 0
      %s22 = sadd.s32 %s21, 1
      %s23 = scalar_select %p20, %s21, %s22
      %p26 = pneg %p20
      %p27 = scmp.eq.s32.totalorder %s11, 1
      %p28 = por %p26, %p27
      %p29 = scmp.ne.s32.totalorder %s21, %s24
      %p30 = scmp.eq.s32.totalorder %s11, 0
      %p31 = por %p29, %p30
      %p32 = scmp.ne.s32.totalorder %s21, %s24
      %p33 = scmp.eq.s32.totalorder %s16, 1
      %p34 = por %p32, %p33
      %p35 = scmp.ne.s32.totalorder %s24, %s25
      %p36 = scmp.eq.s32.totalorder %s16, 0
      %p37 = por %p35, %p36
      %p38 = scmp.ne.s32.totalorder %s24, %s25
      %p39 = scmp.eq.s32.totalorder %s17, 1
      %p40 = por %p38, %p39
      %p42 = scmp.ne.s32.totalorder %s25, %s41
      %p43 = scmp.eq.s32.totalorder %s17, 0
      %p44 = por %p42, %p43
      %s46 = sadd.s32 %s45, 1
      %p49 = scmp.eq.s32.totalorder %s11, 1
      %p50 = scmp.ne.s32.totalorder %s45, %s47
      %p51 = scmp.eq.s32.totalorder %s11, 0
      %p52 = por %p50, %p51
      %p53 = scmp.ne.s32.totalorder %s45, %s47
      %p54 = scmp.eq.s32.totalorder %s16, 1
      %p55 = por %p53, %p54
      %p56 = scmp.ne.s32.totalorder %s47, %s48
      %p57 = scmp.eq.s32.totalorder %s16, 0
      %p58 = por %p56, %p57
      %p59 = scmp.ne.s32.totalorder %s47, %s48
      %p60 = scmp.eq.s32.totalorder %s17, 1
      %p61 = por %p59, %p60
      %p63 = scmp.ne.s32.totalorder %s48, %s62
      %p64 = scmp.eq.s32.totalorder %s17, 0
      %p65 = por %p63, %p64
      %s66 = ssub.s32 %s11, %s18
      %p67 = scmp.eq.s32.totalorder %s66, 0
      %s69 = sadd.s32 %s68, 1
      %s70 = scalar_select %p67, %s68, %s69
      %p73 = pneg %p67
      %p74 = scmp.eq.s32.totalorder %s11, 1
      %p75 = por %p73, %p74
      %p76 = scmp.ne.s32.totalorder %s68, %s71
      %p77 = scmp.eq.s32.totalorder %s11, 0
      %p78 = por %p76, %p77
      %p79 = scmp.ne.s32.totalorder %s68, %s71
      %p80 = scmp.eq.s32.totalorder %s16, 1
      %p81 = por %p79, %p80
      %p82 = scmp.ne.s32.totalorder %s71, %s72
      %p83 = scmp.eq.s32.totalorder %s16, 0
      %p84 = por %p82, %p83
      %p85 = scmp.ne.s32.totalorder %s71, %s72
      %p86 = scmp.eq.s32.totalorder %s17, 1
      %p87 = por %p85, %p86
      %p89 = scmp.ne.s32.totalorder %s72, %s88
      %p90 = scmp.eq.s32.totalorder %s17, 0
      %p91 = por %p89, %p90
      %p92 = scmp.le.s32.totalorder 1, %s11
      %p93 = scmp.lt.s32.totalorder %s11, 3
      %p94 = pnand %p92, %p93
      %p95 = pneg %p94
      // Predicated region
      $region9: #{tpu_custom_call.1} parent=5 // pred_check
        _
      $region10: #{tpu_custom_call.1} parent=5 // pred_check_branch
        %97 = sbr.rel (%p94) target = $region12
      $region11: #{tpu_custom_call.1} parent=5 // pred_region
        %s98 = ssub.s32 %s11, 1
        // Predicated region
        $region13: #{tpu_custom_call.1} parent=11 // pred_check
          %p99 = pneg %p58
        $region14: #{tpu_custom_call.1} parent=11 // pred_check_branch
          %101 = sbr.rel (%p99) target = $region16
        $region15: #{tpu_custom_call.1} parent=11 // pred_region
          _
        $region16: #{tpu_custom_call.1} parent=11 // pred_fallthru
          _
      $region12: #{tpu_custom_call.1} parent=5 // pred_fallthru
        _
      %p102 = scmp.lt.s32.totalorder %s11, 2
      // Predicated region
      $region17: #{tpu_custom_call.1} parent=5 // pred_check
        %p103 = pneg %p102
      $region18: #{tpu_custom_call.1} parent=5 // pred_check_branch
        %105 = sbr.rel (%p103) target = $region20
      $region19: #{tpu_custom_call.1} parent=5 // pred_region
        // Predicated region
        $region21: #{tpu_custom_call.1} parent=19 // pred_check
          %p106 = pneg %p31
        $region22: #{tpu_custom_call.1} parent=19 // pred_check_branch
          %108 = sbr.rel (%p106) target = $region24
        $region23: #{tpu_custom_call.1} parent=19 // pred_region
          %p109 = scmp.lt.s32.totalorder %s11, 1
          %s110 = scalar_select %p109, %s11, 1
          %s111 = smul.addr %s110, 54
          %s112 = smul.addr %s111, 4
          %s113 = scalar_lea.vmem %s0, %s112
        $region24: #{tpu_custom_call.1} parent=19 // pred_fallthru
          _
      $region20: #{tpu_custom_call.1} parent=5 // pred_fallthru
        _
      %p114 = scmp.le.s32.totalorder 1, %s11
      %p115 = scmp.lt.s32.totalorder %s11, 3
      %p116 = pnand %p114, %p115
      %p117 = pneg %p116
      // Predicated region
      $region25: #{tpu_custom_call.1} parent=5 // pred_check
        _
      $region26: #{tpu_custom_call.1} parent=5 // pred_check_branch
        %119 = sbr.rel (%p116) target = $region28
      $region27: #{tpu_custom_call.1} parent=5 // pred_region
        %s120 = ssub.s32 %s11, 1
        %p121 = scmp.lt.s32.totalorder %s16, 1
        %s122 = scalar_select %p121, %s16, 1
        %s123 = smul.addr %s122, 54
        %s124 = smul.addr %s123, 4
        %s125 = scalar_lea.vmem %s0, %s124
        %p126 = pneg %p37
        %p127 = pneg %p34
        %p128 = pneg %p58
        %p129 = pneg %p55
        %p130 = pneg %p84
        %p131 = pneg %p81
        %s132 = sand.u32 %s71, 1
        %s133 = scalar_lea.sflag [#allocation4], %s132
        %s134 = sand.u32 %s71, 1
        %s135 = smul.addr %s134, 2
        %s136 = scalar_lea.vmem [#allocation3], %s135
        %p137 = scmp.lt.s32.totalorder %s16, 1
        %s138 = scalar_select %p137, %s16, 1
        %s139 = smul.addr %s138, 54
        %s140 = smul.addr %s139, 4
        %s141 = scalar_lea.vmem %s0, %s140
        %v143 = vld [vmem:[%s141] sm:$0xf]
        %v144 = vld [vmem:[%s141 + $0x4] sm:$0xf]
        %v145 = vld [vmem:[%s141 + $0xc] sm:$0xf]
        %v146 = vld [vmem:[%s141 + $0x10] sm:$0xf]
        %v147 = vld [vmem:[%s141 + $0x18] sm:$0xf]
        %v148 = vld [vmem:[%s141 + $0x1c] sm:$0xf]
        %v149 = vld [vmem:[%s141 + $0x24] sm:$0xf]
        %v150 = vld [vmem:[%s141 + $0x28] sm:$0xf]
        %v151 = vld [vmem:[%s141 + $0x30] sm:$0xf]
        %v152 = vld [vmem:[%s141 + $0x34] sm:$0xf]
        %v153 = vld [vmem:[%s141 + $0x3c] sm:$0xf]
        %v154 = vld [vmem:[%s141 + $0x40] sm:$0xf]
        %v155 = vld [vmem:[%s141 + $0x48] sm:$0xf]
        %v156 = vld [vmem:[%s141 + $0x4c] sm:$0xf]
        %v157 = vld [vmem:[%s141 + $0x54] sm:$0xf]
        %v158 = vld [vmem:[%s141 + $0x58] sm:$0xf]
        %v159 = vld [vmem:[%s141 + $0x60] sm:$0xf]
        %v160 = vld [vmem:[%s141 + $0x64] sm:$0xf]
        %v161 = vld [vmem:[%s141 + $0x6c] sm:$0xf]
        %v162 = vld [vmem:[%s141 + $0x70] sm:$0xf]
        %v163 = vld [vmem:[%s141 + $0x78] sm:$0xf]
        %v164 = vld [vmem:[%s141 + $0x7c] sm:$0xf]
        %v165 = vld [vmem:[%s141 + $0x84] sm:$0xf]
        %v166 = vld [vmem:[%s141 + $0x88] sm:$0xf]
        %v167 = vld [vmem:[%s141 + $0x90] sm:$0xf]
        %v168 = vld [vmem:[%s141 + $0x94] sm:$0xf]
        %v169 = vld [vmem:[%s141 + $0x9c] sm:$0xf]
        %v170 = vld [vmem:[%s141 + $0xa0] sm:$0xf]
        %v171 = vld [vmem:[%s141 + $0xa8] sm:$0xf]
        %v172 = vld [vmem:[%s141 + $0xac] sm:$0xf]
        %v173 = vld [vmem:[%s141 + $0xb4] sm:$0xf]
        %v174 = vld [vmem:[%s141 + $0xb8] sm:$0xf]
        %v207 = vunpack.c.l.b16 %v143
        %v208 = vunpack.c.l.b16 %v144
        %v209 = vunpack.c.l.b16 %v145
        %v210 = vunpack.c.l.b16 %v146
        %v211 = vunpack.c.l.b16 %v147
        %v212 = vunpack.c.l.b16 %v148
        %v213 = vunpack.c.l.b16 %v149
        %v214 = vunpack.c.l.b16 %v150
        %v215 = vunpack.c.l.b16 %v151
        %v216 = vunpack.c.l.b16 %v152
        %v217 = vunpack.c.l.b16 %v153
        %v218 = vunpack.c.l.b16 %v154
        %v219 = vunpack.c.l.b16 %v155
        %v220 = vunpack.c.l.b16 %v156
        %v221 = vunpack.c.l.b16 %v157
        %v222 = vunpack.c.l.b16 %v158
        %v223 = vunpack.c.l.b16 %v159
        %v224 = vunpack.c.l.b16 %v160
        %v225 = vunpack.c.l.b16 %v161
        %v226 = vunpack.c.l.b16 %v162
        %v227 = vunpack.c.l.b16 %v163
        %v228 = vunpack.c.l.b16 %v164
        %v229 = vunpack.c.l.b16 %v165
        %v230 = vunpack.c.l.b16 %v166
        %v231 = vunpack.c.l.b16 %v167
        %v232 = vunpack.c.l.b16 %v168
        %v233 = vunpack.c.l.b16 %v169
        %v234 = vunpack.c.l.b16 %v170
        %v235 = vunpack.c.l.b16 %v171
        %v236 = vunpack.c.l.b16 %v172
        %v237 = vunpack.c.l.b16 %v173
        %v238 = vunpack.c.l.b16 %v174
        %v239 = vpack.c.b16 %v208, %v207
        %v240 = vpack.c.b16 %v210, %v209
        %v241 = vpack.c.b16 %v212, %v211
        %v242 = vpack.c.b16 %v214, %v213
        %v243 = vpack.c.b16 %v216, %v215
        %v244 = vpack.c.b16 %v218, %v217
        %v245 = vpack.c.b16 %v220, %v219
        %v246 = vpack.c.b16 %v222, %v221
        %v247 = vpack.c.b16 %v224, %v223
        %v248 = vpack.c.b16 %v226, %v225
        %v249 = vpack.c.b16 %v228, %v227
        %v250 = vpack.c.b16 %v230, %v229
        %v251 = vpack.c.b16 %v232, %v231
        %v252 = vpack.c.b16 %v234, %v233
        %v253 = vpack.c.b16 %v236, %v235
        %v254 = vpack.c.b16 %v238, %v237
        %vm271 = vcmask 31744
        %272 = vst.msk [vmem:[#allocation2] sm:$0xff] %vm271, %v239
        %273 = vst.msk [vmem:[#allocation2 + $0x8] sm:$0xff] %vm271, %v240
        %274 = vst.msk [vmem:[#allocation2 + $0x10] sm:$0xff] %vm271, %v241
        %275 = vst.msk [vmem:[#allocation2 + $0x18] sm:$0xff] %vm271, %v242
        %276 = vst.msk [vmem:[#allocation2 + $0x20] sm:$0xff] %vm271, %v243
        %277 = vst.msk [vmem:[#allocation2 + $0x28] sm:$0xff] %vm271, %v244
        %278 = vst.msk [vmem:[#allocation2 + $0x30] sm:$0xff] %vm271, %v245
        %279 = vst.msk [vmem:[#allocation2 + $0x38] sm:$0xff] %vm271, %v246
        %280 = vst.msk [vmem:[#allocation2 + $0x40] sm:$0xff] %vm271, %v247
        %281 = vst.msk [vmem:[#allocation2 + $0x48] sm:$0xff] %vm271, %v248
        %282 = vst.msk [vmem:[#allocation2 + $0x50] sm:$0xff] %vm271, %v249
        %283 = vst.msk [vmem:[#allocation2 + $0x58] sm:$0xff] %vm271, %v250
        %284 = vst.msk [vmem:[#allocation2 + $0x60] sm:$0xff] %vm271, %v251
        %285 = vst.msk [vmem:[#allocation2 + $0x68] sm:$0xff] %vm271, %v252
        %286 = vst.msk [vmem:[#allocation2 + $0x70] sm:$0xff] %vm271, %v253
        %287 = vst.msk [vmem:[#allocation2 + $0x78] sm:$0xff] %vm271, %v254
        %v288 = vld [vmem:[%s141] sm:$0xf]
        %v289 = vld [vmem:[%s141 + $0x4] sm:$0xf]
        %v290 = vld [vmem:[%s141 + $0x8] sm:$0x1]
        %v291 = vld [vmem:[%s141 + $0xc] sm:$0xf]
        %v292 = vld [vmem:[%s141 + $0x10] sm:$0xf]
        %v293 = vld [vmem:[%s141 + $0x14] sm:$0x1]
        %v294 = vld [vmem:[%s141 + $0x18] sm:$0xf]
        %v295 = vld [vmem:[%s141 + $0x1c] sm:$0xf]
        %v296 = vld [vmem:[%s141 + $0x20] sm:$0x1]
        %v297 = vld [vmem:[%s141 + $0x24] sm:$0xf]
        %v298 = vld [vmem:[%s141 + $0x28] sm:$0xf]
        %v299 = vld [vmem:[%s141 + $0x2c] sm:$0x1]
        %v300 = vld [vmem:[%s141 + $0x30] sm:$0xf]
        %v301 = vld [vmem:[%s141 + $0x34] sm:$0xf]
        %v302 = vld [vmem:[%s141 + $0x38] sm:$0x1]
        %v303 = vld [vmem:[%s141 + $0x3c] sm:$0xf]
        %v304 = vld [vmem:[%s141 + $0x40] sm:$0xf]
        %v305 = vld [vmem:[%s141 + $0x44] sm:$0x1]
        %v306 = vld [vmem:[%s141 + $0x48] sm:$0xf]
        %v307 = vld [vmem:[%s141 + $0x4c] sm:$0xf]
        %v308 = vld [vmem:[%s141 + $0x50] sm:$0x1]
        %v309 = vld [vmem:[%s141 + $0x54] sm:$0xf]
        %v310 = vld [vmem:[%s141 + $0x58] sm:$0xf]
        %v311 = vld [vmem:[%s141 + $0x5c] sm:$0x1]
        %v312 = vld [vmem:[%s141 + $0x60] sm:$0xf]
        %v313 = vld [vmem:[%s141 + $0x64] sm:$0xf]
        %v314 = vld [vmem:[%s141 + $0x68] sm:$0x1]
        %v315 = vld [vmem:[%s141 + $0x6c] sm:$0xf]
        %v316 = vld [vmem:[%s141 + $0x70] sm:$0xf]
        %v317 = vld [vmem:[%s141 + $0x74] sm:$0x1]
        %v318 = vld [vmem:[%s141 + $0x78] sm:$0xf]
        %v319 = vld [vmem:[%s141 + $0x7c] sm:$0xf]
        %v320 = vld [vmem:[%s141 + $0x80] sm:$0x1]
        %v321 = vld [vmem:[%s141 + $0x84] sm:$0xf]
        %v322 = vld [vmem:[%s141 + $0x88] sm:$0xf]
        %v323 = vld [vmem:[%s141 + $0x8c] sm:$0x1]
        %v324 = vld [vmem:[%s141 + $0x90] sm:$0xf]
        %v325 = vld [vmem:[%s141 + $0x94] sm:$0xf]
        %v326 = vld [vmem:[%s141 + $0x98] sm:$0x1]
        %v327 = vld [vmem:[%s141 + $0x9c] sm:$0xf]
        %v328 = vld [vmem:[%s141 + $0xa0] sm:$0xf]
        %v329 = vld [vmem:[%s141 + $0xa4] sm:$0x1]
        %v330 = vld [vmem:[%s141 + $0xa8] sm:$0xf]
        %v331 = vld [vmem:[%s141 + $0xac] sm:$0xf]
        %v332 = vld [vmem:[%s141 + $0xb0] sm:$0x1]
        %v333 = vld [vmem:[%s141 + $0xb4] sm:$0xf]
        %v334 = vld [vmem:[%s141 + $0xb8] sm:$0xf]
        %v335 = vld [vmem:[%s141 + $0xbc] sm:$0x1]
        %vm336 = vsmask.f32 3328
        %vm337 = vsmask.f32 7440
        %vm338 = vmor %vm336, %vm337
        %v340 = vshrl.u32 %v288, 16
        %v342 = vrot.slane %v340, 4
        %v343 = vshll.u32 %v288, 16
        %v345 = vrot.slane %v343, 5
        %v346 = vor.u32 %v342, %v345
        %v347 = vrot.slane %v346, 4
        %v349 = vshll.u32 %v289, 16
        %v351 = vrot.slane %v349, 5
        %v352 = vsel %vm338, %v347, %v351
        %v353 = vshrl.u32 %v289, 16
        %v355 = vrot.slane %v353, 4
        %v356 = vor.u32 %v355, %v351
        %v357 = vrot.slane %v356, 4
        %v359 = vshll.u32 %v290, 16
        %v361 = vrot.slane %v359, 5
        %v362 = vsel %vm338, %v357, %v361
        %v364 = vshrl.u32 %v291, 16
        %v366 = vrot.slane %v364, 4
        %v367 = vshll.u32 %v291, 16
        %v369 = vrot.slane %v367, 5
        %v370 = vor.u32 %v366, %v369
        %v371 = vrot.slane %v370, 4
        %v373 = vshll.u32 %v292, 16
        %v375 = vrot.slane %v373, 5
        %v376 = vsel %vm338, %v371, %v375
        %v377 = vshrl.u32 %v292, 16
        %v379 = vrot.slane %v377, 4
        %v380 = vor.u32 %v379, %v375
        %v381 = vrot.slane %v380, 4
        %v383 = vshll.u32 %v293, 16
        %v385 = vrot.slane %v383, 5
        %v386 = vsel %vm338, %v381, %v385
        %v388 = vshrl.u32 %v294, 16
        %v390 = vrot.slane %v388, 4
        %v391 = vshll.u32 %v294, 16
        %v393 = vrot.slane %v391, 5
        %v394 = vor.u32 %v390, %v393
        %v395 = vrot.slane %v394, 4
        %v397 = vshll.u32 %v295, 16
        %v399 = vrot.slane %v397, 5
        %v400 = vsel %vm338, %v395, %v399
        %v401 = vshrl.u32 %v295, 16
        %v403 = vrot.slane %v401, 4
        %v404 = vor.u32 %v403, %v399
        %v405 = vrot.slane %v404, 4
        %v407 = vshll.u32 %v296, 16
        %v409 = vrot.slane %v407, 5
        %v410 = vsel %vm338, %v405, %v409
        %v412 = vshrl.u32 %v297, 16
        %v414 = vrot.slane %v412, 4
        %v415 = vshll.u32 %v297, 16
        %v417 = vrot.slane %v415, 5
        %v418 = vor.u32 %v414, %v417
        %v419 = vrot.slane %v418, 4
        %v421 = vshll.u32 %v298, 16
        %v423 = vrot.slane %v421, 5
        %v424 = vsel %vm338, %v419, %v423
        %v425 = vshrl.u32 %v298, 16
        %v427 = vrot.slane %v425, 4
        %v428 = vor.u32 %v427, %v423
        %v429 = vrot.slane %v428, 4
        %v431 = vshll.u32 %v299, 16
        %v433 = vrot.slane %v431, 5
        %v434 = vsel %vm338, %v429, %v433
        %v436 = vshrl.u32 %v300, 16
        %v438 = vrot.slane %v436, 4
        %v439 = vshll.u32 %v300, 16
        %v441 = vrot.slane %v439, 5
        %v442 = vor.u32 %v438, %v441
        %v443 = vrot.slane %v442, 4
        %v445 = vshll.u32 %v301, 16
        %v447 = vrot.slane %v445, 5
        %v448 = vsel %vm338, %v443, %v447
        %v449 = vshrl.u32 %v301, 16
        %v451 = vrot.slane %v449, 4
        %v452 = vor.u32 %v451, %v447
        %v453 = vrot.slane %v452, 4
        %v455 = vshll.u32 %v302, 16
        %v457 = vrot.slane %v455, 5
        %v458 = vsel %vm338, %v453, %v457
        %v460 = vshrl.u32 %v303, 16
        %v462 = vrot.slane %v460, 4
        %v463 = vshll.u32 %v303, 16
        %v465 = vrot.slane %v463, 5
        %v466 = vor.u32 %v462, %v465
        %v467 = vrot.slane %v466, 4
        %v469 = vshll.u32 %v304, 16
        %v471 = vrot.slane %v469, 5
        %v472 = vsel %vm338, %v467, %v471
        %v473 = vshrl.u32 %v304, 16
        %v475 = vrot.slane %v473, 4
        %v476 = vor.u32 %v475, %v471
        %v477 = vrot.slane %v476, 4
        %v479 = vshll.u32 %v305, 16
        %v481 = vrot.slane %v479, 5
        %v482 = vsel %vm338, %v477, %v481
        %v484 = vshrl.u32 %v306, 16
        %v486 = vrot.slane %v484, 4
        %v487 = vshll.u32 %v306, 16
        %v489 = vrot.slane %v487, 5
        %v490 = vor.u32 %v486, %v489
        %v491 = vrot.slane %v490, 4
        %v493 = vshll.u32 %v307, 16
        %v495 = vrot.slane %v493, 5
        %v496 = vsel %vm338, %v491, %v495
        %v497 = vshrl.u32 %v307, 16
        %v499 = vrot.slane %v497, 4
        %v500 = vor.u32 %v499, %v495
        %v501 = vrot.slane %v500, 4
        %v503 = vshll.u32 %v308, 16
        %v505 = vrot.slane %v503, 5
        %v506 = vsel %vm338, %v501, %v505
        %v508 = vshrl.u32 %v309, 16
        %v510 = vrot.slane %v508, 4
        %v511 = vshll.u32 %v309, 16
        %v513 = vrot.slane %v511, 5
        %v514 = vor.u32 %v510, %v513
        %v515 = vrot.slane %v514, 4
        %v517 = vshll.u32 %v310, 16
        %v519 = vrot.slane %v517, 5
        %v520 = vsel %vm338, %v515, %v519
        %v521 = vshrl.u32 %v310, 16
        %v523 = vrot.slane %v521, 4
        %v524 = vor.u32 %v523, %v519
        %v525 = vrot.slane %v524, 4
        %v527 = vshll.u32 %v311, 16
        %v529 = vrot.slane %v527, 5
        %v530 = vsel %vm338, %v525, %v529
        %v532 = vshrl.u32 %v312, 16
        %v534 = vrot.slane %v532, 4
        %v535 = vshll.u32 %v312, 16
        %v537 = vrot.slane %v535, 5
        %v538 = vor.u32 %v534, %v537
        %v539 = vrot.slane %v538, 4
        %v541 = vshll.u32 %v313, 16
        %v543 = vrot.slane %v541, 5
        %v544 = vsel %vm338, %v539, %v543
        %v545 = vshrl.u32 %v313, 16
        %v547 = vrot.slane %v545, 4
        %v548 = vor.u32 %v547, %v543
        %v549 = vrot.slane %v548, 4
        %v551 = vshll.u32 %v314, 16
        %v553 = vrot.slane %v551, 5
        %v554 = vsel %vm338, %v549, %v553
        %v556 = vshrl.u32 %v315, 16
        %v558 = vrot.slane %v556, 4
        %v559 = vshll.u32 %v315, 16
        %v561 = vrot.slane %v559, 5
        %v562 = vor.u32 %v558, %v561
        %v563 = vrot.slane %v562, 4
        %v565 = vshll.u32 %v316, 16
        %v567 = vrot.slane %v565, 5
        %v568 = vsel %vm338, %v563, %v567
        %v569 = vshrl.u32 %v316, 16
        %v571 = vrot.slane %v569, 4
        %v572 = vor.u32 %v571, %v567
        %v573 = vrot.slane %v572, 4
        %v575 = vshll.u32 %v317, 16
        %v577 = vrot.slane %v575, 5
        %v578 = vsel %vm338, %v573, %v577
        %v580 = vshrl.u32 %v318, 16
        %v582 = vrot.slane %v580, 4
        %v583 = vshll.u32 %v318, 16
        %v585 = vrot.slane %v583, 5
        %v586 = vor.u32 %v582, %v585
        %v587 = vrot.slane %v586, 4
        %v589 = vshll.u32 %v319, 16
        %v591 = vrot.slane %v589, 5
        %v592 = vsel %vm338, %v587, %v591
        %v593 = vshrl.u32 %v319, 16
        %v595 = vrot.slane %v593, 4
        %v596 = vor.u32 %v595, %v591
        %v597 = vrot.slane %v596, 4
        %v599 = vshll.u32 %v320, 16
        %v601 = vrot.slane %v599, 5
        %v602 = vsel %vm338, %v597, %v601
        %v604 = vshrl.u32 %v321, 16
        %v606 = vrot.slane %v604, 4
        %v607 = vshll.u32 %v321, 16
        %v609 = vrot.slane %v607, 5
        %v610 = vor.u32 %v606, %v609
        %v611 = vrot.slane %v610, 4
        %v613 = vshll.u32 %v322, 16
        %v615 = vrot.slane %v613, 5
        %v616 = vsel %vm338, %v611, %v615
        %v617 = vshrl.u32 %v322, 16
        %v619 = vrot.slane %v617, 4
        %v620 = vor.u32 %v619, %v615
        %v621 = vrot.slane %v620, 4
        %v623 = vshll.u32 %v323, 16
        %v625 = vrot.slane %v623, 5
        %v626 = vsel %vm338, %v621, %v625
        %v628 = vshrl.u32 %v324, 16
        %v630 = vrot.slane %v628, 4
        %v631 = vshll.u32 %v324, 16
        %v633 = vrot.slane %v631, 5
        %v634 = vor.u32 %v630, %v633
        %v635 = vrot.slane %v634, 4
        %v637 = vshll.u32 %v325, 16
        %v639 = vrot.slane %v637, 5
        %v640 = vsel %vm338, %v635, %v639
        %v641 = vshrl.u32 %v325, 16
        %v643 = vrot.slane %v641, 4
        %v644 = vor.u32 %v643, %v639
        %v645 = vrot.slane %v644, 4
        %v647 = vshll.u32 %v326, 16
        %v649 = vrot.slane %v647, 5
        %v650 = vsel %vm338, %v645, %v649
        %v652 = vshrl.u32 %v327, 16
        %v654 = vrot.slane %v652, 4
        %v655 = vshll.u32 %v327, 16
        %v657 = vrot.slane %v655, 5
        %v658 = vor.u32 %v654, %v657
        %v659 = vrot.slane %v658, 4
        %v661 = vshll.u32 %v328, 16
        %v663 = vrot.slane %v661, 5
        %v664 = vsel %vm338, %v659, %v663
        %v665 = vshrl.u32 %v328, 16
        %v667 = vrot.slane %v665, 4
        %v668 = vor.u32 %v667, %v663
        %v669 = vrot.slane %v668, 4
        %v671 = vshll.u32 %v329, 16
        %v673 = vrot.slane %v671, 5
        %v674 = vsel %vm338, %v669, %v673
        %v676 = vshrl.u32 %v330, 16
        %v678 = vrot.slane %v676, 4
        %v679 = vshll.u32 %v330, 16
        %v681 = vrot.slane %v679, 5
        %v682 = vor.u32 %v678, %v681
        %v683 = vrot.slane %v682, 4
        %v685 = vshll.u32 %v331, 16
        %v687 = vrot.slane %v685, 5
        %v688 = vsel %vm338, %v683, %v687
        %v689 = vshrl.u32 %v331, 16
        %v691 = vrot.slane %v689, 4
        %v692 = vor.u32 %v691, %v687
        %v693 = vrot.slane %v692, 4
        %v695 = vshll.u32 %v332, 16
        %v697 = vrot.slane %v695, 5
        %v698 = vsel %vm338, %v693, %v697
        %v700 = vshrl.u32 %v333, 16
        %v702 = vrot.slane %v700, 4
        %v703 = vshll.u32 %v333, 16
        %v705 = vrot.slane %v703, 5
        %v706 = vor.u32 %v702, %v705
        %v707 = vrot.slane %v706, 4
        %v709 = vshll.u32 %v334, 16
        %v711 = vrot.slane %v709, 5
        %v712 = vsel %vm338, %v707, %v711
        %v713 = vshrl.u32 %v334, 16
        %v715 = vrot.slane %v713, 4
        %v716 = vor.u32 %v715, %v711
        %v717 = vrot.slane %v716, 4
        %v719 = vshll.u32 %v335, 16
        %v721 = vrot.slane %v719, 5
        %v722 = vsel %vm338, %v717, %v721
        %v723 = vunpack.c.l.b16 %v352
        %v724 = vunpack.c.l.b16 %v362
        %v725 = vunpack.c.l.b16 %v376
        %v726 = vunpack.c.l.b16 %v386
        %v727 = vunpack.c.l.b16 %v400
        %v728 = vunpack.c.l.b16 %v410
        %v729 = vunpack.c.l.b16 %v424
        %v730 = vunpack.c.l.b16 %v434
        %v731 = vunpack.c.l.b16 %v448
        %v732 = vunpack.c.l.b16 %v458
        %v733 = vunpack.c.l.b16 %v472
        %v734 = vunpack.c.l.b16 %v482
        %v735 = vunpack.c.l.b16 %v496
        %v736 = vunpack.c.l.b16 %v506
        %v737 = vunpack.c.l.b16 %v520
        %v738 = vunpack.c.l.b16 %v530
        %v739 = vunpack.c.l.b16 %v544
        %v740 = vunpack.c.l.b16 %v554
        %v741 = vunpack.c.l.b16 %v568
        %v742 = vunpack.c.l.b16 %v578
        %v743 = vunpack.c.l.b16 %v592
        %v744 = vunpack.c.l.b16 %v602
        %v745 = vunpack.c.l.b16 %v616
        %v746 = vunpack.c.l.b16 %v626
        %v747 = vunpack.c.l.b16 %v640
        %v748 = vunpack.c.l.b16 %v650
        %v749 = vunpack.c.l.b16 %v664
        %v750 = vunpack.c.l.b16 %v674
        %v751 = vunpack.c.l.b16 %v688
        %v752 = vunpack.c.l.b16 %v698
        %v753 = vunpack.c.l.b16 %v712
        %v754 = vunpack.c.l.b16 %v722
        %v755 = vpack.c.b16 %v724, %v723
        %v756 = vpack.c.b16 %v726, %v725
        %v757 = vpack.c.b16 %v728, %v727
        %v758 = vpack.c.b16 %v730, %v729
        %v759 = vpack.c.b16 %v732, %v731
        %v760 = vpack.c.b16 %v734, %v733
        %v761 = vpack.c.b16 %v736, %v735
        %v762 = vpack.c.b16 %v738, %v737
        %v763 = vpack.c.b16 %v740, %v739
        %v764 = vpack.c.b16 %v742, %v741
        %v765 = vpack.c.b16 %v744, %v743
        %v766 = vpack.c.b16 %v746, %v745
        %v767 = vpack.c.b16 %v748, %v747
        %v768 = vpack.c.b16 %v750, %v749
        %v769 = vpack.c.b16 %v752, %v751
        %v770 = vpack.c.b16 %v754, %v753
        %771 = vrot.lane.b32.xlu0 %v755, 4
        %v772 = vpop.permute.xlu0 %771
        %773 = vrot.lane.b32.xlu0 %v756, 4
        %v774 = vpop.permute.xlu0 %773
        %775 = vrot.lane.b32.xlu0 %v757, 4
        %v776 = vpop.permute.xlu0 %775
        %777 = vrot.lane.b32.xlu0 %v758, 4
        %v778 = vpop.permute.xlu0 %777
        %779 = vrot.lane.b32.xlu0 %v759, 4
        %v780 = vpop.permute.xlu0 %779
        %781 = vrot.lane.b32.xlu0 %v760, 4
        %v782 = vpop.permute.xlu0 %781
        %783 = vrot.lane.b32.xlu0 %v761, 4
        %v784 = vpop.permute.xlu0 %783
        %785 = vrot.lane.b32.xlu0 %v762, 4
        %v786 = vpop.permute.xlu0 %785
        %787 = vrot.lane.b32.xlu0 %v763, 4
        %v788 = vpop.permute.xlu0 %787
        %789 = vrot.lane.b32.xlu0 %v764, 4
        %v790 = vpop.permute.xlu0 %789
        %791 = vrot.lane.b32.xlu0 %v765, 4
        %v792 = vpop.permute.xlu0 %791
        %793 = vrot.lane.b32.xlu0 %v766, 4
        %v794 = vpop.permute.xlu0 %793
        %795 = vrot.lane.b32.xlu0 %v767, 4
        %v796 = vpop.permute.xlu0 %795
        %797 = vrot.lane.b32.xlu0 %v768, 4
        %v798 = vpop.permute.xlu0 %797
        %799 = vrot.lane.b32.xlu0 %v769, 4
        %v800 = vpop.permute.xlu0 %799
        %801 = vrot.lane.b32.xlu0 %v770, 4
        %v802 = vpop.permute.xlu0 %801
        %vm819 = vcmask 64544
        %820 = vst.msk [vmem:[#allocation2] sm:$0xff] %vm819, %v772
        %821 = vst.msk [vmem:[#allocation2 + $0x8] sm:$0xff] %vm819, %v774
        %822 = vst.msk [vmem:[#allocation2 + $0x10] sm:$0xff] %vm819, %v776
        %823 = vst.msk [vmem:[#allocation2 + $0x18] sm:$0xff] %vm819, %v778
        %824 = vst.msk [vmem:[#allocation2 + $0x20] sm:$0xff] %vm819, %v780
        %825 = vst.msk [vmem:[#allocation2 + $0x28] sm:$0xff] %vm819, %v782
        %826 = vst.msk [vmem:[#allocation2 + $0x30] sm:$0xff] %vm819, %v784
        %827 = vst.msk [vmem:[#allocation2 + $0x38] sm:$0xff] %vm819, %v786
        %828 = vst.msk [vmem:[#allocation2 + $0x40] sm:$0xff] %vm819, %v788
        %829 = vst.msk [vmem:[#allocation2 + $0x48] sm:$0xff] %vm819, %v790
        %830 = vst.msk [vmem:[#allocation2 + $0x50] sm:$0xff] %vm819, %v792
        %831 = vst.msk [vmem:[#allocation2 + $0x58] sm:$0xff] %vm819, %v794
        %832 = vst.msk [vmem:[#allocation2 + $0x60] sm:$0xff] %vm819, %v796
        %833 = vst.msk [vmem:[#allocation2 + $0x68] sm:$0xff] %vm819, %v798
        %834 = vst.msk [vmem:[#allocation2 + $0x70] sm:$0xff] %vm819, %v800
        %835 = vst.msk [vmem:[#allocation2 + $0x78] sm:$0xff] %vm819, %v802
        %v836 = vld [vmem:[%s141] sm:$0xe]
        %v837 = vld [vmem:[%s141 + $0x4] sm:$0xf]
        %v838 = vld [vmem:[%s141 + $0x8] sm:$0x1]
        %v839 = vld [vmem:[%s141 + $0xc] sm:$0xe]
        %v840 = vld [vmem:[%s141 + $0x10] sm:$0xf]
        %v841 = vld [vmem:[%s141 + $0x14] sm:$0x1]
        %v842 = vld [vmem:[%s141 + $0x18] sm:$0xe]
        %v843 = vld [vmem:[%s141 + $0x1c] sm:$0xf]
        %v844 = vld [vmem:[%s141 + $0x20] sm:$0x1]
        %v845 = vld [vmem:[%s141 + $0x24] sm:$0xe]
        %v846 = vld [vmem:[%s141 + $0x28] sm:$0xf]
        %v847 = vld [vmem:[%s141 + $0x2c] sm:$0x1]
        %v848 = vld [vmem:[%s141 + $0x30] sm:$0xe]
        %v849 = vld [vmem:[%s141 + $0x34] sm:$0xf]
        %v850 = vld [vmem:[%s141 + $0x38] sm:$0x1]
        %v851 = vld [vmem:[%s141 + $0x3c] sm:$0xe]
        %v852 = vld [vmem:[%s141 + $0x40] sm:$0xf]
        %v853 = vld [vmem:[%s141 + $0x44] sm:$0x1]
        %v854 = vld [vmem:[%s141 + $0x48] sm:$0xe]
        %v855 = vld [vmem:[%s141 + $0x4c] sm:$0xf]
        %v856 = vld [vmem:[%s141 + $0x50] sm:$0x1]
        %v857 = vld [vmem:[%s141 + $0x54] sm:$0xe]
        %v858 = vld [vmem:[%s141 + $0x58] sm:$0xf]
        %v859 = vld [vmem:[%s141 + $0x5c] sm:$0x1]
        %v860 = vld [vmem:[%s141 + $0x60] sm:$0xe]
        %v861 = vld [vmem:[%s141 + $0x64] sm:$0xf]
        %v862 = vld [vmem:[%s141 + $0x68] sm:$0x1]
        %v863 = vld [vmem:[%s141 + $0x6c] sm:$0xe]
        %v864 = vld [vmem:[%s141 + $0x70] sm:$0xf]
        %v865 = vld [vmem:[%s141 + $0x74] sm:$0x1]
        %v866 = vld [vmem:[%s141 + $0x78] sm:$0xe]
        %v867 = vld [vmem:[%s141 + $0x7c] sm:$0xf]
        %v868 = vld [vmem:[%s141 + $0x80] sm:$0x1]
        %v869 = vld [vmem:[%s141 + $0x84] sm:$0xe]
        %v870 = vld [vmem:[%s141 + $0x88] sm:$0xf]
        %v871 = vld [vmem:[%s141 + $0x8c] sm:$0x1]
        %v872 = vld [vmem:[%s141 + $0x90] sm:$0xe]
        %v873 = vld [vmem:[%s141 + $0x94] sm:$0xf]
        %v874 = vld [vmem:[%s141 + $0x98] sm:$0x1]
        %v875 = vld [vmem:[%s141 + $0x9c] sm:$0xe]
        %v876 = vld [vmem:[%s141 + $0xa0] sm:$0xf]
        %v877 = vld [vmem:[%s141 + $0xa4] sm:$0x1]
        %v878 = vld [vmem:[%s141 + $0xa8] sm:$0xe]
        %v879 = vld [vmem:[%s141 + $0xac] sm:$0xf]
        %v880 = vld [vmem:[%s141 + $0xb0] sm:$0x1]
        %v881 = vld [vmem:[%s141 + $0xb4] sm:$0xe]
        %v882 = vld [vmem:[%s141 + $0xb8] sm:$0xf]
        %v883 = vld [vmem:[%s141 + $0xbc] sm:$0x1]
        %vm932 = vcmask 1042432
        %vm933 = vcmask 1046532
        %vm934 = vmor %vm932, %vm933
        %v935 = vrot.slane %v836, 5
        %v936 = vrot.slane %v935, 4
        %v937 = vrot.slane %v837, 5
        %v938 = vsel %vm934, %v936, %v937
        %v939 = vrot.slane %v937, 4
        %v940 = vrot.slane %v838, 5
        %v941 = vsel %vm934, %v939, %v940
        %v942 = vrot.slane %v839, 5
        %v943 = vrot.slane %v942, 4
        %v944 = vrot.slane %v840, 5
        %v945 = vsel %vm934, %v943, %v944
        %v946 = vrot.slane %v944, 4
        %v947 = vrot.slane %v841, 5
        %v948 = vsel %vm934, %v946, %v947
        %v949 = vrot.slane %v842, 5
        %v950 = vrot.slane %v949, 4
        %v951 = vrot.slane %v843, 5
        %v952 = vsel %vm934, %v950, %v951
        %v953 = vrot.slane %v951, 4
        %v954 = vrot.slane %v844, 5
        %v955 = vsel %vm934, %v953, %v954
        %v956 = vrot.slane %v845, 5
        %v957 = vrot.slane %v956, 4
        %v958 = vrot.slane %v846, 5
        %v959 = vsel %vm934, %v957, %v958
        %v960 = vrot.slane %v958, 4
        %v961 = vrot.slane %v847, 5
        %v962 = vsel %vm934, %v960, %v961
        %v963 = vrot.slane %v848, 5
        %v964 = vrot.slane %v963, 4
        %v965 = vrot.slane %v849, 5
        %v966 = vsel %vm934, %v964, %v965
        %v967 = vrot.slane %v965, 4
        %v968 = vrot.slane %v850, 5
        %v969 = vsel %vm934, %v967, %v968
        %v970 = vrot.slane %v851, 5
        %v971 = vrot.slane %v970, 4
        %v972 = vrot.slane %v852, 5
        %v973 = vsel %vm934, %v971, %v972
        %v974 = vrot.slane %v972, 4
        %v975 = vrot.slane %v853, 5
        %v976 = vsel %vm934, %v974, %v975
        %v977 = vrot.slane %v854, 5
        %v978 = vrot.slane %v977, 4
        %v979 = vrot.slane %v855, 5
        %v980 = vsel %vm934, %v978, %v979
        %v981 = vrot.slane %v979, 4
        %v982 = vrot.slane %v856, 5
        %v983 = vsel %vm934, %v981, %v982
        %v984 = vrot.slane %v857, 5
        %v985 = vrot.slane %v984, 4
        %v986 = vrot.slane %v858, 5
        %v987 = vsel %vm934, %v985, %v986
        %v988 = vrot.slane %v986, 4
        %v989 = vrot.slane %v859, 5
        %v990 = vsel %vm934, %v988, %v989
        %v991 = vrot.slane %v860, 5
        %v992 = vrot.slane %v991, 4
        %v993 = vrot.slane %v861, 5
        %v994 = vsel %vm934, %v992, %v993
        %v995 = vrot.slane %v993, 4
        %v996 = vrot.slane %v862, 5
        %v997 = vsel %vm934, %v995, %v996
        %v998 = vrot.slane %v863, 5
        %v999 = vrot.slane %v998, 4
        %v1000 = vrot.slane %v864, 5
        %v1001 = vsel %vm934, %v999, %v1000
        %v1002 = vrot.slane %v1000, 4
        %v1003 = vrot.slane %v865, 5
        %v1004 = vsel %vm934, %v1002, %v1003
        %v1005 = vrot.slane %v866, 5
        %v1006 = vrot.slane %v1005, 4
        %v1007 = vrot.slane %v867, 5
        %v1008 = vsel %vm934, %v1006, %v1007
        %v1009 = vrot.slane %v1007, 4
        %v1010 = vrot.slane %v868, 5
        %v1011 = vsel %vm934, %v1009, %v1010
        %v1012 = vrot.slane %v869, 5
        %v1013 = vrot.slane %v1012, 4
        %v1014 = vrot.slane %v870, 5
        %v1015 = vsel %vm934, %v1013, %v1014
        %v1016 = vrot.slane %v1014, 4
        %v1017 = vrot.slane %v871, 5
        %v1018 = vsel %vm934, %v1016, %v1017
        %v1019 = vrot.slane %v872, 5
        %v1020 = vrot.slane %v1019, 4
        %v1021 = vrot.slane %v873, 5
        %v1022 = vsel %vm934, %v1020, %v1021
        %v1023 = vrot.slane %v1021, 4
        %v1024 = vrot.slane %v874, 5
        %v1025 = vsel %vm934, %v1023, %v1024
        %v1026 = vrot.slane %v875, 5
        %v1027 = vrot.slane %v1026, 4
        %v1028 = vrot.slane %v876, 5
        %v1029 = vsel %vm934, %v1027, %v1028
        %v1030 = vrot.slane %v1028, 4
        %v1031 = vrot.slane %v877, 5
        %v1032 = vsel %vm934, %v1030, %v1031
        %v1033 = vrot.slane %v878, 5
        %v1034 = vrot.slane %v1033, 4
        %v1035 = vrot.slane %v879, 5
        %v1036 = vsel %vm934, %v1034, %v1035
        %v1037 = vrot.slane %v1035, 4
        %v1038 = vrot.slane %v880, 5
        %v1039 = vsel %vm934, %v1037, %v1038
        %v1040 = vrot.slane %v881, 5
        %v1041 = vrot.slane %v1040, 4
        %v1042 = vrot.slane %v882, 5
        %v1043 = vsel %vm934, %v1041, %v1042
        %v1044 = vrot.slane %v1042, 4
        %v1045 = vrot.slane %v883, 5
        %v1046 = vsel %vm934, %v1044, %v1045
        %v1047 = vunpack.c.l.b16 %v938
        %v1048 = vunpack.c.l.b16 %v941
        %v1049 = vunpack.c.l.b16 %v945
        %v1050 = vunpack.c.l.b16 %v948
        %v1051 = vunpack.c.l.b16 %v952
        %v1052 = vunpack.c.l.b16 %v955
        %v1053 = vunpack.c.l.b16 %v959
        %v1054 = vunpack.c.l.b16 %v962
        %v1055 = vunpack.c.l.b16 %v966
        %v1056 = vunpack.c.l.b16 %v969
        %v1057 = vunpack.c.l.b16 %v973
        %v1058 = vunpack.c.l.b16 %v976
        %v1059 = vunpack.c.l.b16 %v980
        %v1060 = vunpack.c.l.b16 %v983
        %v1061 = vunpack.c.l.b16 %v987
        %v1062 = vunpack.c.l.b16 %v990
        %v1063 = vunpack.c.l.b16 %v994
        %v1064 = vunpack.c.l.b16 %v997
        %v1065 = vunpack.c.l.b16 %v1001
        %v1066 = vunpack.c.l.b16 %v1004
        %v1067 = vunpack.c.l.b16 %v1008
        %v1068 = vunpack.c.l.b16 %v1011
        %v1069 = vunpack.c.l.b16 %v1015
        %v1070 = vunpack.c.l.b16 %v1018
        %v1071 = vunpack.c.l.b16 %v1022
        %v1072 = vunpack.c.l.b16 %v1025
        %v1073 = vunpack.c.l.b16 %v1029
        %v1074 = vunpack.c.l.b16 %v1032
        %v1075 = vunpack.c.l.b16 %v1036
        %v1076 = vunpack.c.l.b16 %v1039
        %v1077 = vunpack.c.l.b16 %v1043
        %v1078 = vunpack.c.l.b16 %v1046
        %v1079 = vpack.c.b16 %v1048, %v1047
        %v1080 = vpack.c.b16 %v1050, %v1049
        %v1081 = vpack.c.b16 %v1052, %v1051
        %v1082 = vpack.c.b16 %v1054, %v1053
        %v1083 = vpack.c.b16 %v1056, %v1055
        %v1084 = vpack.c.b16 %v1058, %v1057
        %v1085 = vpack.c.b16 %v1060, %v1059
        %v1086 = vpack.c.b16 %v1062, %v1061
        %v1087 = vpack.c.b16 %v1064, %v1063
        %v1088 = vpack.c.b16 %v1066, %v1065
        %v1089 = vpack.c.b16 %v1068, %v1067
        %v1090 = vpack.c.b16 %v1070, %v1069
        %v1091 = vpack.c.b16 %v1072, %v1071
        %v1092 = vpack.c.b16 %v1074, %v1073
        %v1093 = vpack.c.b16 %v1076, %v1075
        %v1094 = vpack.c.b16 %v1078, %v1077
        %1095 = vrot.lane.b32.xlu0 %v1079, 8
        %v1096 = vpop.permute.xlu0 %1095
        %1097 = vrot.lane.b32.xlu0 %v1080, 8
        %v1098 = vpop.permute.xlu0 %1097
        %1099 = vrot.lane.b32.xlu0 %v1081, 8
        %v1100 = vpop.permute.xlu0 %1099
        %1101 = vrot.lane.b32.xlu0 %v1082, 8
        %v1102 = vpop.permute.xlu0 %1101
        %1103 = vrot.lane.b32.xlu0 %v1083, 8
        %v1104 = vpop.permute.xlu0 %1103
        %1105 = vrot.lane.b32.xlu0 %v1084, 8
        %v1106 = vpop.permute.xlu0 %1105
        %1107 = vrot.lane.b32.xlu0 %v1085, 8
        %v1108 = vpop.permute.xlu0 %1107
        %1109 = vrot.lane.b32.xlu0 %v1086, 8
        %v1110 = vpop.permute.xlu0 %1109
        %1111 = vrot.lane.b32.xlu0 %v1087, 8
        %v1112 = vpop.permute.xlu0 %1111
        %1113 = vrot.lane.b32.xlu0 %v1088, 8
        %v1114 = vpop.permute.xlu0 %1113
        %1115 = vrot.lane.b32.xlu0 %v1089, 8
        %v1116 = vpop.permute.xlu0 %1115
        %1117 = vrot.lane.b32.xlu0 %v1090, 8
        %v1118 = vpop.permute.xlu0 %1117
        %1119 = vrot.lane.b32.xlu0 %v1091, 8
        %v1120 = vpop.permute.xlu0 %1119
        %1121 = vrot.lane.b32.xlu0 %v1092, 8
        %v1122 = vpop.permute.xlu0 %1121
        %1123 = vrot.lane.b32.xlu0 %v1093, 8
        %v1124 = vpop.permute.xlu0 %1123
        %1125 = vrot.lane.b32.xlu0 %v1094, 8
        %v1126 = vpop.permute.xlu0 %1125
        %vm1143 = vcmask 97344
        %1144 = vst.msk [vmem:[#allocation2] sm:$0xff] %vm1143, %v1096
        %1145 = vst.msk [vmem:[#allocation2 + $0x8] sm:$0xff] %vm1143, %v1098
        %1146 = vst.msk [vmem:[#allocation2 + $0x10] sm:$0xff] %vm1143, %v1100
        %1147 = vst.msk [vmem:[#allocation2 + $0x18] sm:$0xff] %vm1143, %v1102
        %1148 = vst.msk [vmem:[#allocation2 + $0x20] sm:$0xff] %vm1143, %v1104
        %1149 = vst.msk [vmem:[#allocation2 + $0x28] sm:$0xff] %vm1143, %v1106
        %1150 = vst.msk [vmem:[#allocation2 + $0x30] sm:$0xff] %vm1143, %v1108
        %1151 = vst.msk [vmem:[#allocation2 + $0x38] sm:$0xff] %vm1143, %v1110
        %1152 = vst.msk [vmem:[#allocation2 + $0x40] sm:$0xff] %vm1143, %v1112
        %1153 = vst.msk [vmem:[#allocation2 + $0x48] sm:$0xff] %vm1143, %v1114
        %1154 = vst.msk [vmem:[#allocation2 + $0x50] sm:$0xff] %vm1143, %v1116
        %1155 = vst.msk [vmem:[#allocation2 + $0x58] sm:$0xff] %vm1143, %v1118
        %1156 = vst.msk [vmem:[#allocation2 + $0x60] sm:$0xff] %vm1143, %v1120
        %1157 = vst.msk [vmem:[#allocation2 + $0x68] sm:$0xff] %vm1143, %v1122
        %1158 = vst.msk [vmem:[#allocation2 + $0x70] sm:$0xff] %vm1143, %v1124
        %1159 = vst.msk [vmem:[#allocation2 + $0x78] sm:$0xff] %vm1143, %v1126
        %s1160 = scalar_lea.vmem %s141, 12
        %v1161 = vld [vmem:[%s1160] sm:$0xf]
        %v1162 = vld [vmem:[%s1160 + $0x4] sm:$0xf]
        %v1163 = vld [vmem:[%s1160 + $0xc] sm:$0xf]
        %v1164 = vld [vmem:[%s1160 + $0x10] sm:$0xf]
        %v1165 = vld [vmem:[%s1160 + $0x18] sm:$0xf]
        %v1166 = vld [vmem:[%s1160 + $0x1c] sm:$0xf]
        %v1167 = vld [vmem:[%s1160 + $0x24] sm:$0xf]
        %v1168 = vld [vmem:[%s1160 + $0x28] sm:$0xf]
        %v1169 = vld [vmem:[%s1160 + $0x30] sm:$0xf]
        %v1170 = vld [vmem:[%s1160 + $0x34] sm:$0xf]
        %v1171 = vld [vmem:[%s1160 + $0x3c] sm:$0xf]
        %v1172 = vld [vmem:[%s1160 + $0x40] sm:$0xf]
        %v1173 = vld [vmem:[%s1160 + $0x48] sm:$0xf]
        %v1174 = vld [vmem:[%s1160 + $0x4c] sm:$0xf]
        %v1175 = vld [vmem:[%s1160 + $0x54] sm:$0xf]
        %v1176 = vld [vmem:[%s1160 + $0x58] sm:$0xf]
        %v1177 = vld [vmem:[%s1160 + $0x60] sm:$0xf]
        %v1178 = vld [vmem:[%s1160 + $0x64] sm:$0xf]
        %v1179 = vld [vmem:[%s1160 + $0x6c] sm:$0xf]
        %v1180 = vld [vmem:[%s1160 + $0x70] sm:$0xf]
        %v1181 = vld [vmem:[%s1160 + $0x78] sm:$0xf]
        %v1182 = vld [vmem:[%s1160 + $0x7c] sm:$0xf]
        %v1183 = vld [vmem:[%s1160 + $0x84] sm:$0xf]
        %v1184 = vld [vmem:[%s1160 + $0x88] sm:$0xf]
        %v1185 = vld [vmem:[%s1160 + $0x90] sm:$0xf]
        %v1186 = vld [vmem:[%s1160 + $0x94] sm:$0xf]
        %v1187 = vld [vmem:[%s1160 + $0x9c] sm:$0xf]
        %v1188 = vld [vmem:[%s1160 + $0xa0] sm:$0xf]
        %v1189 = vld [vmem:[%s1160 + $0xa8] sm:$0xf]
        %v1190 = vld [vmem:[%s1160 + $0xac] sm:$0xf]
        %v1191 = vld [vmem:[%s1160 + $0xb4] sm:$0xf]
        %v1192 = vld [vmem:[%s1160 + $0xb8] sm:$0xf]
        %v1225 = vunpack.c.l.b16 %v1161
        %v1226 = vunpack.c.l.b16 %v1162
        %v1227 = vunpack.c.l.b16 %v1163
        %v1228 = vunpack.c.l.b16 %v1164
        %v1229 = vunpack.c.l.b16 %v1165
        %v1230 = vunpack.c.l.b16 %v1166
        %v1231 = vunpack.c.l.b16 %v1167
        %v1232 = vunpack.c.l.b16 %v1168
        %v1233 = vunpack.c.l.b16 %v1169
        %v1234 = vunpack.c.l.b16 %v1170
        %v1235 = vunpack.c.l.b16 %v1171
        %v1236 = vunpack.c.l.b16 %v1172
        %v1237 = vunpack.c.l.b16 %v1173
        %v1238 = vunpack.c.l.b16 %v1174
        %v1239 = vunpack.c.l.b16 %v1175
        %v1240 = vunpack.c.l.b16 %v1176
        %v1241 = vunpack.c.l.b16 %v1177
        %v1242 = vunpack.c.l.b16 %v1178
        %v1243 = vunpack.c.l.b16 %v1179
        %v1244 = vunpack.c.l.b16 %v1180
        %v1245 = vunpack.c.l.b16 %v1181
        %v1246 = vunpack.c.l.b16 %v1182
        %v1247 = vunpack.c.l.b16 %v1183
        %v1248 = vunpack.c.l.b16 %v1184
        %v1249 = vunpack.c.l.b16 %v1185
        %v1250 = vunpack.c.l.b16 %v1186
        %v1251 = vunpack.c.l.b16 %v1187
        %v1252 = vunpack.c.l.b16 %v1188
        %v1253 = vunpack.c.l.b16 %v1189
        %v1254 = vunpack.c.l.b16 %v1190
        %v1255 = vunpack.c.l.b16 %v1191
        %v1256 = vunpack.c.l.b16 %v1192
        %v1257 = vpack.c.b16 %v1226, %v1225
        %v1258 = vpack.c.b16 %v1228, %v1227
        %v1259 = vpack.c.b16 %v1230, %v1229
        %v1260 = vpack.c.b16 %v1232, %v1231
        %v1261 = vpack.c.b16 %v1234, %v1233
        %v1262 = vpack.c.b16 %v1236, %v1235
        %v1263 = vpack.c.b16 %v1238, %v1237
        %v1264 = vpack.c.b16 %v1240, %v1239
        %v1265 = vpack.c.b16 %v1242, %v1241
        %v1266 = vpack.c.b16 %v1244, %v1243
        %v1267 = vpack.c.b16 %v1246, %v1245
        %v1268 = vpack.c.b16 %v1248, %v1247
        %v1269 = vpack.c.b16 %v1250, %v1249
        %v1270 = vpack.c.b16 %v1252, %v1251
        %v1271 = vpack.c.b16 %v1254, %v1253
        %v1272 = vpack.c.b16 %v1256, %v1255
        %1273 = vrot.lane.b32.xlu0 %v1257, 12
        %v1274 = vpop.permute.xlu0 %1273
        %1275 = vrot.lane.b32.xlu0 %v1258, 12
        %v1276 = vpop.permute.xlu0 %1275
        %1277 = vrot.lane.b32.xlu0 %v1259, 12
        %v1278 = vpop.permute.xlu0 %1277
        %1279 = vrot.lane.b32.xlu0 %v1260, 12
        %v1280 = vpop.permute.xlu0 %1279
        %1281 = vrot.lane.b32.xlu0 %v1261, 12
        %v1282 = vpop.permute.xlu0 %1281
        %1283 = vrot.lane.b32.xlu0 %v1262, 12
        %v1284 = vpop.permute.xlu0 %1283
        %1285 = vrot.lane.b32.xlu0 %v1263, 12
        %v1286 = vpop.permute.xlu0 %1285
        %1287 = vrot.lane.b32.xlu0 %v1264, 12
        %v1288 = vpop.permute.xlu0 %1287
        %1289 = vrot.lane.b32.xlu0 %v1265, 12
        %v1290 = vpop.permute.xlu0 %1289
        %1291 = vrot.lane.b32.xlu0 %v1266, 12
        %v1292 = vpop.permute.xlu0 %1291
        %1293 = vrot.lane.b32.xlu0 %v1267, 12
        %v1294 = vpop.permute.xlu0 %1293
        %1295 = vrot.lane.b32.xlu0 %v1268, 12
        %v1296 = vpop.permute.xlu0 %1295
        %1297 = vrot.lane.b32.xlu0 %v1269, 12
        %v1298 = vpop.permute.xlu0 %1297
        %1299 = vrot.lane.b32.xlu0 %v1270, 12
        %v1300 = vpop.permute.xlu0 %1299
        %1301 = vrot.lane.b32.xlu0 %v1271, 12
        %v1302 = vpop.permute.xlu0 %1301
        %1303 = vrot.lane.b32.xlu0 %v1272, 12
        %v1304 = vpop.permute.xlu0 %1303
        %vm1321 = vcmask 130144
        %1322 = vst.msk [vmem:[#allocation2] sm:$0xff] %vm1321, %v1274
        %1323 = vst.msk [vmem:[#allocation2 + $0x8] sm:$0xff] %vm1321, %v1276
        %1324 = vst.msk [vmem:[#allocation2 + $0x10] sm:$0xff] %vm1321, %v1278
        %1325 = vst.msk [vmem:[#allocation2 + $0x18] sm:$0xff] %vm1321, %v1280
        %1326 = vst.msk [vmem:[#allocation2 + $0x20] sm:$0xff] %vm1321, %v1282
        %1327 = vst.msk [vmem:[#allocation2 + $0x28] sm:$0xff] %vm1321, %v1284
        %1328 = vst.msk [vmem:[#allocation2 + $0x30] sm:$0xff] %vm1321, %v1286
        %1329 = vst.msk [vmem:[#allocation2 + $0x38] sm:$0xff] %vm1321, %v1288
        %1330 = vst.msk [vmem:[#allocation2 + $0x40] sm:$0xff] %vm1321, %v1290
        %1331 = vst.msk [vmem:[#allocation2 + $0x48] sm:$0xff] %vm1321, %v1292
        %1332 = vst.msk [vmem:[#allocation2 + $0x50] sm:$0xff] %vm1321, %v1294
        %1333 = vst.msk [vmem:[#allocation2 + $0x58] sm:$0xff] %vm1321, %v1296
        %1334 = vst.msk [vmem:[#allocation2 + $0x60] sm:$0xff] %vm1321, %v1298
        %1335 = vst.msk [vmem:[#allocation2 + $0x68] sm:$0xff] %vm1321, %v1300
        %1336 = vst.msk [vmem:[#allocation2 + $0x70] sm:$0xff] %vm1321, %v1302
        %1337 = vst.msk [vmem:[#allocation2 + $0x78] sm:$0xff] %vm1321, %v1304
        %v1338 = vld [vmem:[%s1160] sm:$0xf]
        %v1339 = vld [vmem:[%s1160 + $0x4] sm:$0xf]
        %v1340 = vld [vmem:[%s1160 + $0x8] sm:$0x1]
        %v1341 = vld [vmem:[%s1160 + $0xc] sm:$0xf]
        %v1342 = vld [vmem:[%s1160 + $0x10] sm:$0xf]
        %v1343 = vld [vmem:[%s1160 + $0x14] sm:$0x1]
        %v1344 = vld [vmem:[%s1160 + $0x18] sm:$0xf]
        %v1345 = vld [vmem:[%s1160 + $0x1c] sm:$0xf]
        %v1346 = vld [vmem:[%s1160 + $0x20] sm:$0x1]
        %v1347 = vld [vmem:[%s1160 + $0x24] sm:$0xf]
        %v1348 = vld [vmem:[%s1160 + $0x28] sm:$0xf]
        %v1349 = vld [vmem:[%s1160 + $0x2c] sm:$0x1]
        %v1350 = vld [vmem:[%s1160 + $0x30] sm:$0xf]
        %v1351 = vld [vmem:[%s1160 + $0x34] sm:$0xf]
        %v1352 = vld [vmem:[%s1160 + $0x38] sm:$0x1]
        %v1353 = vld [vmem:[%s1160 + $0x3c] sm:$0xf]
        %v1354 = vld [vmem:[%s1160 + $0x40] sm:$0xf]
        %v1355 = vld [vmem:[%s1160 + $0x44] sm:$0x1]
        %v1356 = vld [vmem:[%s1160 + $0x48] sm:$0xf]
        %v1357 = vld [vmem:[%s1160 + $0x4c] sm:$0xf]
        %v1358 = vld [vmem:[%s1160 + $0x50] sm:$0x1]
        %v1359 = vld [vmem:[%s1160 + $0x54] sm:$0xf]
        %v1360 = vld [vmem:[%s1160 + $0x58] sm:$0xf]
        %v1361 = vld [vmem:[%s1160 + $0x5c] sm:$0x1]
        %v1362 = vld [vmem:[%s1160 + $0x60] sm:$0xf]
        %v1363 = vld [vmem:[%s1160 + $0x64] sm:$0xf]
        %v1364 = vld [vmem:[%s1160 + $0x68] sm:$0x1]
        %v1365 = vld [vmem:[%s1160 + $0x6c] sm:$0xf]
        %v1366 = vld [vmem:[%s1160 + $0x70] sm:$0xf]
        %v1367 = vld [vmem:[%s1160 + $0x74] sm:$0x1]
        %v1368 = vld [vmem:[%s1160 + $0x78] sm:$0xf]
        %v1369 = vld [vmem:[%s1160 + $0x7c] sm:$0xf]
        %v1370 = vld [vmem:[%s1160 + $0x80] sm:$0x1]
        %v1371 = vld [vmem:[%s1160 + $0x84] sm:$0xf]
        %v1372 = vld [vmem:[%s1160 + $0x88] sm:$0xf]
        %v1373 = vld [vmem:[%s1160 + $0x8c] sm:$0x1]
        %v1374 = vld [vmem:[%s1160 + $0x90] sm:$0xf]
        %v1375 = vld [vmem:[%s1160 + $0x94] sm:$0xf]
        %v1376 = vld [vmem:[%s1160 + $0x98] sm:$0x1]
        %v1377 = vld [vmem:[%s1160 + $0x9c] sm:$0xf]
        %v1378 = vld [vmem:[%s1160 + $0xa0] sm:$0xf]
        %v1379 = vld [vmem:[%s1160 + $0xa4] sm:$0x1]
        %v1380 = vld [vmem:[%s1160 + $0xa8] sm:$0xf]
        %v1381 = vld [vmem:[%s1160 + $0xac] sm:$0xf]
        %v1382 = vld [vmem:[%s1160 + $0xb0] sm:$0x1]
        %v1383 = vld [vmem:[%s1160 + $0xb4] sm:$0xf]
        %v1384 = vld [vmem:[%s1160 + $0xb8] sm:$0xf]
        %v1385 = vld [vmem:[%s1160 + $0xbc] sm:$0x1]
        %v1387 = vshrl.u32 %v1338, 16
        %v1389 = vrot.slane %v1387, 4
        %v1390 = vshll.u32 %v1338, 16
        %v1392 = vrot.slane %v1390, 5
        %v1393 = vor.u32 %v1389, %v1392
        %v1394 = vrot.slane %v1393, 4
        %v1396 = vshll.u32 %v1339, 16
        %v1398 = vrot.slane %v1396, 5
        %v1399 = vsel %vm338, %v1394, %v1398
        %v1400 = vshrl.u32 %v1339, 16
        %v1402 = vrot.slane %v1400, 4
        %v1403 = vor.u32 %v1402, %v1398
        %v1404 = vrot.slane %v1403, 4
        %v1406 = vshll.u32 %v1340, 16
        %v1408 = vrot.slane %v1406, 5
        %v1409 = vsel %vm338, %v1404, %v1408
        %v1411 = vshrl.u32 %v1341, 16
        %v1413 = vrot.slane %v1411, 4
        %v1414 = vshll.u32 %v1341, 16
        %v1416 = vrot.slane %v1414, 5
        %v1417 = vor.u32 %v1413, %v1416
        %v1418 = vrot.slane %v1417, 4
        %v1420 = vshll.u32 %v1342, 16
        %v1422 = vrot.slane %v1420, 5
        %v1423 = vsel %vm338, %v1418, %v1422
        %v1424 = vshrl.u32 %v1342, 16
        %v1426 = vrot.slane %v1424, 4
        %v1427 = vor.u32 %v1426, %v1422
        %v1428 = vrot.slane %v1427, 4
        %v1430 = vshll.u32 %v1343, 16
        %v1432 = vrot.slane %v1430, 5
        %v1433 = vsel %vm338, %v1428, %v1432
        %v1435 = vshrl.u32 %v1344, 16
        %v1437 = vrot.slane %v1435, 4
        %v1438 = vshll.u32 %v1344, 16
        %v1440 = vrot.slane %v1438, 5
        %v1441 = vor.u32 %v1437, %v1440
        %v1442 = vrot.slane %v1441, 4
        %v1444 = vshll.u32 %v1345, 16
        %v1446 = vrot.slane %v1444, 5
        %v1447 = vsel %vm338, %v1442, %v1446
        %v1448 = vshrl.u32 %v1345, 16
        %v1450 = vrot.slane %v1448, 4
        %v1451 = vor.u32 %v1450, %v1446
        %v1452 = vrot.slane %v1451, 4
        %v1454 = vshll.u32 %v1346, 16
        %v1456 = vrot.slane %v1454, 5
        %v1457 = vsel %vm338, %v1452, %v1456
        %v1459 = vshrl.u32 %v1347, 16
        %v1461 = vrot.slane %v1459, 4
        %v1462 = vshll.u32 %v1347, 16
        %v1464 = vrot.slane %v1462, 5
        %v1465 = vor.u32 %v1461, %v1464
        %v1466 = vrot.slane %v1465, 4
        %v1468 = vshll.u32 %v1348, 16
        %v1470 = vrot.slane %v1468, 5
        %v1471 = vsel %vm338, %v1466, %v1470
        %v1472 = vshrl.u32 %v1348, 16
        %v1474 = vrot.slane %v1472, 4
        %v1475 = vor.u32 %v1474, %v1470
        %v1476 = vrot.slane %v1475, 4
        %v1478 = vshll.u32 %v1349, 16
        %v1480 = vrot.slane %v1478, 5
        %v1481 = vsel %vm338, %v1476, %v1480
        %v1483 = vshrl.u32 %v1350, 16
        %v1485 = vrot.slane %v1483, 4
        %v1486 = vshll.u32 %v1350, 16
        %v1488 = vrot.slane %v1486, 5
        %v1489 = vor.u32 %v1485, %v1488
        %v1490 = vrot.slane %v1489, 4
        %v1492 = vshll.u32 %v1351, 16
        %v1494 = vrot.slane %v1492, 5
        %v1495 = vsel %vm338, %v1490, %v1494
        %v1496 = vshrl.u32 %v1351, 16
        %v1498 = vrot.slane %v1496, 4
        %v1499 = vor.u32 %v1498, %v1494
        %v1500 = vrot.slane %v1499, 4
        %v1502 = vshll.u32 %v1352, 16
        %v1504 = vrot.slane %v1502, 5
        %v1505 = vsel %vm338, %v1500, %v1504
        %v1507 = vshrl.u32 %v1353, 16
        %v1509 = vrot.slane %v1507, 4
        %v1510 = vshll.u32 %v1353, 16
        %v1512 = vrot.slane %v1510, 5
        %v1513 = vor.u32 %v1509, %v1512
        %v1514 = vrot.slane %v1513, 4
        %v1516 = vshll.u32 %v1354, 16
        %v1518 = vrot.slane %v1516, 5
        %v1519 = vsel %vm338, %v1514, %v1518
        %v1520 = vshrl.u32 %v1354, 16
        %v1522 = vrot.slane %v1520, 4
        %v1523 = vor.u32 %v1522, %v1518
        %v1524 = vrot.slane %v1523, 4
        %v1526 = vshll.u32 %v1355, 16
        %v1528 = vrot.slane %v1526, 5
        %v1529 = vsel %vm338, %v1524, %v1528
        %v1531 = vshrl.u32 %v1356, 16
        %v1533 = vrot.slane %v1531, 4
        %v1534 = vshll.u32 %v1356, 16
        %v1536 = vrot.slane %v1534, 5
        %v1537 = vor.u32 %v1533, %v1536
        %v1538 = vrot.slane %v1537, 4
        %v1540 = vshll.u32 %v1357, 16
        %v1542 = vrot.slane %v1540, 5
        %v1543 = vsel %vm338, %v1538, %v1542
        %v1544 = vshrl.u32 %v1357, 16
        %v1546 = vrot.slane %v1544, 4
        %v1547 = vor.u32 %v1546, %v1542
        %v1548 = vrot.slane %v1547, 4
        %v1550 = vshll.u32 %v1358, 16
        %v1552 = vrot.slane %v1550, 5
        %v1553 = vsel %vm338, %v1548, %v1552
        %v1555 = vshrl.u32 %v1359, 16
        %v1557 = vrot.slane %v1555, 4
        %v1558 = vshll.u32 %v1359, 16
        %v1560 = vrot.slane %v1558, 5
        %v1561 = vor.u32 %v1557, %v1560
        %v1562 = vrot.slane %v1561, 4
        %v1564 = vshll.u32 %v1360, 16
        %v1566 = vrot.slane %v1564, 5
        %v1567 = vsel %vm338, %v1562, %v1566
        %v1568 = vshrl.u32 %v1360, 16
        %v1570 = vrot.slane %v1568, 4
        %v1571 = vor.u32 %v1570, %v1566
        %v1572 = vrot.slane %v1571, 4
        %v1574 = vshll.u32 %v1361, 16
        %v1576 = vrot.slane %v1574, 5
        %v1577 = vsel %vm338, %v1572, %v1576
        %v1579 = vshrl.u32 %v1362, 16
        %v1581 = vrot.slane %v1579, 4
        %v1582 = vshll.u32 %v1362, 16
        %v1584 = vrot.slane %v1582, 5
        %v1585 = vor.u32 %v1581, %v1584
        %v1586 = vrot.slane %v1585, 4
        %v1588 = vshll.u32 %v1363, 16
        %v1590 = vrot.slane %v1588, 5
        %v1591 = vsel %vm338, %v1586, %v1590
        %v1592 = vshrl.u32 %v1363, 16
        %v1594 = vrot.slane %v1592, 4
        %v1595 = vor.u32 %v1594, %v1590
        %v1596 = vrot.slane %v1595, 4
        %v1598 = vshll.u32 %v1364, 16
        %v1600 = vrot.slane %v1598, 5
        %v1601 = vsel %vm338, %v1596, %v1600
        %v1603 = vshrl.u32 %v1365, 16
        %v1605 = vrot.slane %v1603, 4
        %v1606 = vshll.u32 %v1365, 16
        %v1608 = vrot.slane %v1606, 5
        %v1609 = vor.u32 %v1605, %v1608
        %v1610 = vrot.slane %v1609, 4
        %v1612 = vshll.u32 %v1366, 16
        %v1614 = vrot.slane %v1612, 5
        %v1615 = vsel %vm338, %v1610, %v1614
        %v1616 = vshrl.u32 %v1366, 16
        %v1618 = vrot.slane %v1616, 4
        %v1619 = vor.u32 %v1618, %v1614
        %v1620 = vrot.slane %v1619, 4
        %v1622 = vshll.u32 %v1367, 16
        %v1624 = vrot.slane %v1622, 5
        %v1625 = vsel %vm338, %v1620, %v1624
        %v1627 = vshrl.u32 %v1368, 16
        %v1629 = vrot.slane %v1627, 4
        %v1630 = vshll.u32 %v1368, 16
        %v1632 = vrot.slane %v1630, 5
        %v1633 = vor.u32 %v1629, %v1632
        %v1634 = vrot.slane %v1633, 4
        %v1636 = vshll.u32 %v1369, 16
        %v1638 = vrot.slane %v1636, 5
        %v1639 = vsel %vm338, %v1634, %v1638
        %v1640 = vshrl.u32 %v1369, 16
        %v1642 = vrot.slane %v1640, 4
        %v1643 = vor.u32 %v1642, %v1638
        %v1644 = vrot.slane %v1643, 4
        %v1646 = vshll.u32 %v1370, 16
        %v1648 = vrot.slane %v1646, 5
        %v1649 = vsel %vm338, %v1644, %v1648
        %v1651 = vshrl.u32 %v1371, 16
        %v1653 = vrot.slane %v1651, 4
        %v1654 = vshll.u32 %v1371, 16
        %v1656 = vrot.slane %v1654, 5
        %v1657 = vor.u32 %v1653, %v1656
        %v1658 = vrot.slane %v1657, 4
        %v1660 = vshll.u32 %v1372, 16
        %v1662 = vrot.slane %v1660, 5
        %v1663 = vsel %vm338, %v1658, %v1662
        %v1664 = vshrl.u32 %v1372, 16
        %v1666 = vrot.slane %v1664, 4
        %v1667 = vor.u32 %v1666, %v1662
        %v1668 = vrot.slane %v1667, 4
        %v1670 = vshll.u32 %v1373, 16
        %v1672 = vrot.slane %v1670, 5
        %v1673 = vsel %vm338, %v1668, %v1672
        %v1675 = vshrl.u32 %v1374, 16
        %v1677 = vrot.slane %v1675, 4
        %v1678 = vshll.u32 %v1374, 16
        %v1680 = vrot.slane %v1678, 5
        %v1681 = vor.u32 %v1677, %v1680
        %v1682 = vrot.slane %v1681, 4
        %v1684 = vshll.u32 %v1375, 16
        %v1686 = vrot.slane %v1684, 5
        %v1687 = vsel %vm338, %v1682, %v1686
        %v1688 = vshrl.u32 %v1375, 16
        %v1690 = vrot.slane %v1688, 4
        %v1691 = vor.u32 %v1690, %v1686
        %v1692 = vrot.slane %v1691, 4
        %v1694 = vshll.u32 %v1376, 16
        %v1696 = vrot.slane %v1694, 5
        %v1697 = vsel %vm338, %v1692, %v1696
        %v1699 = vshrl.u32 %v1377, 16
        %v1701 = vrot.slane %v1699, 4
        %v1702 = vshll.u32 %v1377, 16
        %v1704 = vrot.slane %v1702, 5
        %v1705 = vor.u32 %v1701, %v1704
        %v1706 = vrot.slane %v1705, 4
        %v1708 = vshll.u32 %v1378, 16
        %v1710 = vrot.slane %v1708, 5
        %v1711 = vsel %vm338, %v1706, %v1710
        %v1712 = vshrl.u32 %v1378, 16
        %v1714 = vrot.slane %v1712, 4
        %v1715 = vor.u32 %v1714, %v1710
        %v1716 = vrot.slane %v1715, 4
        %v1718 = vshll.u32 %v1379, 16
        %v1720 = vrot.slane %v1718, 5
        %v1721 = vsel %vm338, %v1716, %v1720
        %v1723 = vshrl.u32 %v1380, 16
        %v1725 = vrot.slane %v1723, 4
        %v1726 = vshll.u32 %v1380, 16
        %v1728 = vrot.slane %v1726, 5
        %v1729 = vor.u32 %v1725, %v1728
        %v1730 = vrot.slane %v1729, 4
        %v1732 = vshll.u32 %v1381, 16
        %v1734 = vrot.slane %v1732, 5
        %v1735 = vsel %vm338, %v1730, %v1734
        %v1736 = vshrl.u32 %v1381, 16
        %v1738 = vrot.slane %v1736, 4
        %v1739 = vor.u32 %v1738, %v1734
        %v1740 = vrot.slane %v1739, 4
        %v1742 = vshll.u32 %v1382, 16
        %v1744 = vrot.slane %v1742, 5
        %v1745 = vsel %vm338, %v1740, %v1744
        %v1747 = vshrl.u32 %v1383, 16
        %v1749 = vrot.slane %v1747, 4
        %v1750 = vshll.u32 %v1383, 16
        %v1752 = vrot.slane %v1750, 5
        %v1753 = vor.u32 %v1749, %v1752
        %v1754 = vrot.slane %v1753, 4
        %v1756 = vshll.u32 %v1384, 16
        %v1758 = vrot.slane %v1756, 5
        %v1759 = vsel %vm338, %v1754, %v1758
        %v1760 = vshrl.u32 %v1384, 16
        %v1762 = vrot.slane %v1760, 4
        %v1763 = vor.u32 %v1762, %v1758
        %v1764 = vrot.slane %v1763, 4
        %v1766 = vshll.u32 %v1385, 16
        %v1768 = vrot.slane %v1766, 5
        %v1769 = vsel %vm338, %v1764, %v1768
        %v1770 = vunpack.c.l.b16 %v1399
        %v1771 = vunpack.c.l.b16 %v1409
        %v1772 = vunpack.c.l.b16 %v1423
        %v1773 = vunpack.c.l.b16 %v1433
        %v1774 = vunpack.c.l.b16 %v1447
        %v1775 = vunpack.c.l.b16 %v1457
        %v1776 = vunpack.c.l.b16 %v1471
        %v1777 = vunpack.c.l.b16 %v1481
        %v1778 = vunpack.c.l.b16 %v1495
        %v1779 = vunpack.c.l.b16 %v1505
        %v1780 = vunpack.c.l.b16 %v1519
        %v1781 = vunpack.c.l.b16 %v1529
        %v1782 = vunpack.c.l.b16 %v1543
        %v1783 = vunpack.c.l.b16 %v1553
        %v1784 = vunpack.c.l.b16 %v1567
        %v1785 = vunpack.c.l.b16 %v1577
        %v1786 = vunpack.c.l.b16 %v1591
        %v1787 = vunpack.c.l.b16 %v1601
        %v1788 = vunpack.c.l.b16 %v1615
        %v1789 = vunpack.c.l.b16 %v1625
        %v1790 = vunpack.c.l.b16 %v1639
        %v1791 = vunpack.c.l.b16 %v1649
        %v1792 = vunpack.c.l.b16 %v1663
        %v1793 = vunpack.c.l.b16 %v1673
        %v1794 = vunpack.c.l.b16 %v1687
        %v1795 = vunpack.c.l.b16 %v1697
        %v1796 = vunpack.c.l.b16 %v1711
        %v1797 = vunpack.c.l.b16 %v1721
        %v1798 = vunpack.c.l.b16 %v1735
        %v1799 = vunpack.c.l.b16 %v1745
        %v1800 = vunpack.c.l.b16 %v1759
        %v1801 = vunpack.c.l.b16 %v1769
        %v1802 = vpack.c.b16 %v1771, %v1770
        %v1803 = vpack.c.b16 %v1773, %v1772
        %v1804 = vpack.c.b16 %v1775, %v1774
        %v1805 = vpack.c.b16 %v1777, %v1776
        %v1806 = vpack.c.b16 %v1779, %v1778
        %v1807 = vpack.c.b16 %v1781, %v1780
        %v1808 = vpack.c.b16 %v1783, %v1782
        %v1809 = vpack.c.b16 %v1785, %v1784
        %v1810 = vpack.c.b16 %v1787, %v1786
        %v1811 = vpack.c.b16 %v1789, %v1788
        %v1812 = vpack.c.b16 %v1791, %v1790
        %v1813 = vpack.c.b16 %v1793, %v1792
        %v1814 = vpack.c.b16 %v1795, %v1794
        %v1815 = vpack.c.b16 %v1797, %v1796
        %v1816 = vpack.c.b16 %v1799, %v1798
        %v1817 = vpack.c.b16 %v1801, %v1800
        %1818 = vrot.lane.b32.xlu0 %v1802, 16
        %v1819 = vpop.permute.xlu0 %1818
        %1820 = vrot.lane.b32.xlu0 %v1803, 16
        %v1821 = vpop.permute.xlu0 %1820
        %1822 = vrot.lane.b32.xlu0 %v1804, 16
        %v1823 = vpop.permute.xlu0 %1822
        %1824 = vrot.lane.b32.xlu0 %v1805, 16
        %v1825 = vpop.permute.xlu0 %1824
        %1826 = vrot.lane.b32.xlu0 %v1806, 16
        %v1827 = vpop.permute.xlu0 %1826
        %1828 = vrot.lane.b32.xlu0 %v1807, 16
        %v1829 = vpop.permute.xlu0 %1828
        %1830 = vrot.lane.b32.xlu0 %v1808, 16
        %v1831 = vpop.permute.xlu0 %1830
        %1832 = vrot.lane.b32.xlu0 %v1809, 16
        %v1833 = vpop.permute.xlu0 %1832
        %1834 = vrot.lane.b32.xlu0 %v1810, 16
        %v1835 = vpop.permute.xlu0 %1834
        %1836 = vrot.lane.b32.xlu0 %v1811, 16
        %v1837 = vpop.permute.xlu0 %1836
        %1838 = vrot.lane.b32.xlu0 %v1812, 16
        %v1839 = vpop.permute.xlu0 %1838
        %1840 = vrot.lane.b32.xlu0 %v1813, 16
        %v1841 = vpop.permute.xlu0 %1840
        %1842 = vrot.lane.b32.xlu0 %v1814, 16
        %v1843 = vpop.permute.xlu0 %1842
        %1844 = vrot.lane.b32.xlu0 %v1815, 16
        %v1845 = vpop.permute.xlu0 %1844
        %1846 = vrot.lane.b32.xlu0 %v1816, 16
        %v1847 = vpop.permute.xlu0 %1846
        %1848 = vrot.lane.b32.xlu0 %v1817, 16
        %v1849 = vpop.permute.xlu0 %1848
        %vm1866 = vcmask 162944
        %1867 = vst.msk [vmem:[#allocation2] sm:$0xff] %vm1866, %v1819
        %1868 = vst.msk [vmem:[#allocation2 + $0x8] sm:$0xff] %vm1866, %v1821
        %1869 = vst.msk [vmem:[#allocation2 + $0x10] sm:$0xff] %vm1866, %v1823
        %1870 = vst.msk [vmem:[#allocation2 + $0x18] sm:$0xff] %vm1866, %v1825
        %1871 = vst.msk [vmem:[#allocation2 + $0x20] sm:$0xff] %vm1866, %v1827
        %1872 = vst.msk [vmem:[#allocation2 + $0x28] sm:$0xff] %vm1866, %v1829
        %1873 = vst.msk [vmem:[#allocation2 + $0x30] sm:$0xff] %vm1866, %v1831
        %1874 = vst.msk [vmem:[#allocation2 + $0x38] sm:$0xff] %vm1866, %v1833
        %1875 = vst.msk [vmem:[#allocation2 + $0x40] sm:$0xff] %vm1866, %v1835
        %1876 = vst.msk [vmem:[#allocation2 + $0x48] sm:$0xff] %vm1866, %v1837
        %1877 = vst.msk [vmem:[#allocation2 + $0x50] sm:$0xff] %vm1866, %v1839
        %1878 = vst.msk [vmem:[#allocation2 + $0x58] sm:$0xff] %vm1866, %v1841
        %1879 = vst.msk [vmem:[#allocation2 + $0x60] sm:$0xff] %vm1866, %v1843
        %1880 = vst.msk [vmem:[#allocation2 + $0x68] sm:$0xff] %vm1866, %v1845
        %1881 = vst.msk [vmem:[#allocation2 + $0x70] sm:$0xff] %vm1866, %v1847
        %1882 = vst.msk [vmem:[#allocation2 + $0x78] sm:$0xff] %vm1866, %v1849
        %v1883 = vld [vmem:[%s1160] sm:$0xe]
        %v1884 = vld [vmem:[%s1160 + $0x4] sm:$0xf]
        %v1885 = vld [vmem:[%s1160 + $0x8] sm:$0x1]
        %v1886 = vld [vmem:[%s1160 + $0xc] sm:$0xe]
        %v1887 = vld [vmem:[%s1160 + $0x10] sm:$0xf]
        %v1888 = vld [vmem:[%s1160 + $0x14] sm:$0x1]
        %v1889 = vld [vmem:[%s1160 + $0x18] sm:$0xe]
        %v1890 = vld [vmem:[%s1160 + $0x1c] sm:$0xf]
        %v1891 = vld [vmem:[%s1160 + $0x20] sm:$0x1]
        %v1892 = vld [vmem:[%s1160 + $0x24] sm:$0xe]
        %v1893 = vld [vmem:[%s1160 + $0x28] sm:$0xf]
        %v1894 = vld [vmem:[%s1160 + $0x2c] sm:$0x1]
        %v1895 = vld [vmem:[%s1160 + $0x30] sm:$0xe]
        %v1896 = vld [vmem:[%s1160 + $0x34] sm:$0xf]
        %v1897 = vld [vmem:[%s1160 + $0x38] sm:$0x1]
        %v1898 = vld [vmem:[%s1160 + $0x3c] sm:$0xe]
        %v1899 = vld [vmem:[%s1160 + $0x40] sm:$0xf]
        %v1900 = vld [vmem:[%s1160 + $0x44] sm:$0x1]
        %v1901 = vld [vmem:[%s1160 + $0x48] sm:$0xe]
        %v1902 = vld [vmem:[%s1160 + $0x4c] sm:$0xf]
        %v1903 = vld [vmem:[%s1160 + $0x50] sm:$0x1]
        %v1904 = vld [vmem:[%s1160 + $0x54] sm:$0xe]
        %v1905 = vld [vmem:[%s1160 + $0x58] sm:$0xf]
        %v1906 = vld [vmem:[%s1160 + $0x5c] sm:$0x1]
        %v1907 = vld [vmem:[%s1160 + $0x60] sm:$0xe]
        %v1908 = vld [vmem:[%s1160 + $0x64] sm:$0xf]
        %v1909 = vld [vmem:[%s1160 + $0x68] sm:$0x1]
        %v1910 = vld [vmem:[%s1160 + $0x6c] sm:$0xe]
        %v1911 = vld [vmem:[%s1160 + $0x70] sm:$0xf]
        %v1912 = vld [vmem:[%s1160 + $0x74] sm:$0x1]
        %v1913 = vld [vmem:[%s1160 + $0x78] sm:$0xe]
        %v1914 = vld [vmem:[%s1160 + $0x7c] sm:$0xf]
        %v1915 = vld [vmem:[%s1160 + $0x80] sm:$0x1]
        %v1916 = vld [vmem:[%s1160 + $0x84] sm:$0xe]
        %v1917 = vld [vmem:[%s1160 + $0x88] sm:$0xf]
        %v1918 = vld [vmem:[%s1160 + $0x8c] sm:$0x1]
        %v1919 = vld [vmem:[%s1160 + $0x90] sm:$0xe]
        %v1920 = vld [vmem:[%s1160 + $0x94] sm:$0xf]
        %v1921 = vld [vmem:[%s1160 + $0x98] sm:$0x1]
        %v1922 = vld [vmem:[%s1160 + $0x9c] sm:$0xe]
        %v1923 = vld [vmem:[%s1160 + $0xa0] sm:$0xf]
        %v1924 = vld [vmem:[%s1160 + $0xa4] sm:$0x1]
        %v1925 = vld [vmem:[%s1160 + $0xa8] sm:$0xe]
        %v1926 = vld [vmem:[%s1160 + $0xac] sm:$0xf]
        %v1927 = vld [vmem:[%s1160 + $0xb0] sm:$0x1]
        %v1928 = vld [vmem:[%s1160 + $0xb4] sm:$0xe]
        %v1929 = vld [vmem:[%s1160 + $0xb8] sm:$0xf]
        %v1930 = vld [vmem:[%s1160 + $0xbc] sm:$0x1]
        %v1979 = vrot.slane %v1883, 5
        %v1980 = vrot.slane %v1979, 4
        %v1981 = vrot.slane %v1884, 5
        %v1982 = vsel %vm934, %v1980, %v1981
        %v1983 = vrot.slane %v1981, 4
        %v1984 = vrot.slane %v1885, 5
        %v1985 = vsel %vm934, %v1983, %v1984
        %v1986 = vrot.slane %v1886, 5
        %v1987 = vrot.slane %v1986, 4
        %v1988 = vrot.slane %v1887, 5
        %v1989 = vsel %vm934, %v1987, %v1988
        %v1990 = vrot.slane %v1988, 4
        %v1991 = vrot.slane %v1888, 5
        %v1992 = vsel %vm934, %v1990, %v1991
        %v1993 = vrot.slane %v1889, 5
        %v1994 = vrot.slane %v1993, 4
        %v1995 = vrot.slane %v1890, 5
        %v1996 = vsel %vm934, %v1994, %v1995
        %v1997 = vrot.slane %v1995, 4
        %v1998 = vrot.slane %v1891, 5
        %v1999 = vsel %vm934, %v1997, %v1998
        %v2000 = vrot.slane %v1892, 5
        %v2001 = vrot.slane %v2000, 4
        %v2002 = vrot.slane %v1893, 5
        %v2003 = vsel %vm934, %v2001, %v2002
        %v2004 = vrot.slane %v2002, 4
        %v2005 = vrot.slane %v1894, 5
        %v2006 = vsel %vm934, %v2004, %v2005
        %v2007 = vrot.slane %v1895, 5
        %v2008 = vrot.slane %v2007, 4
        %v2009 = vrot.slane %v1896, 5
        %v2010 = vsel %vm934, %v2008, %v2009
        %v2011 = vrot.slane %v2009, 4
        %v2012 = vrot.slane %v1897, 5
        %v2013 = vsel %vm934, %v2011, %v2012
        %v2014 = vrot.slane %v1898, 5
        %v2015 = vrot.slane %v2014, 4
        %v2016 = vrot.slane %v1899, 5
        %v2017 = vsel %vm934, %v2015, %v2016
        %v2018 = vrot.slane %v2016, 4
        %v2019 = vrot.slane %v1900, 5
        %v2020 = vsel %vm934, %v2018, %v2019
        %v2021 = vrot.slane %v1901, 5
        %v2022 = vrot.slane %v2021, 4
        %v2023 = vrot.slane %v1902, 5
        %v2024 = vsel %vm934, %v2022, %v2023
        %v2025 = vrot.slane %v2023, 4
        %v2026 = vrot.slane %v1903, 5
        %v2027 = vsel %vm934, %v2025, %v2026
        %v2028 = vrot.slane %v1904, 5
        %v2029 = vrot.slane %v2028, 4
        %v2030 = vrot.slane %v1905, 5
        %v2031 = vsel %vm934, %v2029, %v2030
        %v2032 = vrot.slane %v2030, 4
        %v2033 = vrot.slane %v1906, 5
        %v2034 = vsel %vm934, %v2032, %v2033
        %v2035 = vrot.slane %v1907, 5
        %v2036 = vrot.slane %v2035, 4
        %v2037 = vrot.slane %v1908, 5
        %v2038 = vsel %vm934, %v2036, %v2037
        %v2039 = vrot.slane %v2037, 4
        %v2040 = vrot.slane %v1909, 5
        %v2041 = vsel %vm934, %v2039, %v2040
        %v2042 = vrot.slane %v1910, 5
        %v2043 = vrot.slane %v2042, 4
        %v2044 = vrot.slane %v1911, 5
        %v2045 = vsel %vm934, %v2043, %v2044
        %v2046 = vrot.slane %v2044, 4
        %v2047 = vrot.slane %v1912, 5
        %v2048 = vsel %vm934, %v2046, %v2047
        %v2049 = vrot.slane %v1913, 5
        %v2050 = vrot.slane %v2049, 4
        %v2051 = vrot.slane %v1914, 5
        %v2052 = vsel %vm934, %v2050, %v2051
        %v2053 = vrot.slane %v2051, 4
        %v2054 = vrot.slane %v1915, 5
        %v2055 = vsel %vm934, %v2053, %v2054
        %v2056 = vrot.slane %v1916, 5
        %v2057 = vrot.slane %v2056, 4
        %v2058 = vrot.slane %v1917, 5
        %v2059 = vsel %vm934, %v2057, %v2058
        %v2060 = vrot.slane %v2058, 4
        %v2061 = vrot.slane %v1918, 5
        %v2062 = vsel %vm934, %v2060, %v2061
        %v2063 = vrot.slane %v1919, 5
        %v2064 = vrot.slane %v2063, 4
        %v2065 = vrot.slane %v1920, 5
        %v2066 = vsel %vm934, %v2064, %v2065
        %v2067 = vrot.slane %v2065, 4
        %v2068 = vrot.slane %v1921, 5
        %v2069 = vsel %vm934, %v2067, %v2068
        %v2070 = vrot.slane %v1922, 5
        %v2071 = vrot.slane %v2070, 4
        %v2072 = vrot.slane %v1923, 5
        %v2073 = vsel %vm934, %v2071, %v2072
        %v2074 = vrot.slane %v2072, 4
        %v2075 = vrot.slane %v1924, 5
        %v2076 = vsel %vm934, %v2074, %v2075
        %v2077 = vrot.slane %v1925, 5
        %v2078 = vrot.slane %v2077, 4
        %v2079 = vrot.slane %v1926, 5
        %v2080 = vsel %vm934, %v2078, %v2079
        %v2081 = vrot.slane %v2079, 4
        %v2082 = vrot.slane %v1927, 5
        %v2083 = vsel %vm934, %v2081, %v2082
        %v2084 = vrot.slane %v1928, 5
        %v2085 = vrot.slane %v2084, 4
        %v2086 = vrot.slane %v1929, 5
        %v2087 = vsel %vm934, %v2085, %v2086
        %v2088 = vrot.slane %v2086, 4
        %v2089 = vrot.slane %v1930, 5
        %v2090 = vsel %vm934, %v2088, %v2089
        %v2091 = vunpack.c.l.b16 %v1982
        %v2092 = vunpack.c.l.b16 %v1985
        %v2093 = vunpack.c.l.b16 %v1989
        %v2094 = vunpack.c.l.b16 %v1992
        %v2095 = vunpack.c.l.b16 %v1996
        %v2096 = vunpack.c.l.b16 %v1999
        %v2097 = vunpack.c.l.b16 %v2003
        %v2098 = vunpack.c.l.b16 %v2006
        %v2099 = vunpack.c.l.b16 %v2010
        %v2100 = vunpack.c.l.b16 %v2013
        %v2101 = vunpack.c.l.b16 %v2017
        %v2102 = vunpack.c.l.b16 %v2020
        %v2103 = vunpack.c.l.b16 %v2024
        %v2104 = vunpack.c.l.b16 %v2027
        %v2105 = vunpack.c.l.b16 %v2031
        %v2106 = vunpack.c.l.b16 %v2034
        %v2107 = vunpack.c.l.b16 %v2038
        %v2108 = vunpack.c.l.b16 %v2041
        %v2109 = vunpack.c.l.b16 %v2045
        %v2110 = vunpack.c.l.b16 %v2048
        %v2111 = vunpack.c.l.b16 %v2052
        %v2112 = vunpack.c.l.b16 %v2055
        %v2113 = vunpack.c.l.b16 %v2059
        %v2114 = vunpack.c.l.b16 %v2062
        %v2115 = vunpack.c.l.b16 %v2066
        %v2116 = vunpack.c.l.b16 %v2069
        %v2117 = vunpack.c.l.b16 %v2073
        %v2118 = vunpack.c.l.b16 %v2076
        %v2119 = vunpack.c.l.b16 %v2080
        %v2120 = vunpack.c.l.b16 %v2083
        %v2121 = vunpack.c.l.b16 %v2087
        %v2122 = vunpack.c.l.b16 %v2090
        %v2123 = vpack.c.b16 %v2092, %v2091
        %v2124 = vpack.c.b16 %v2094, %v2093
        %v2125 = vpack.c.b16 %v2096, %v2095
        %v2126 = vpack.c.b16 %v2098, %v2097
        %v2127 = vpack.c.b16 %v2100, %v2099
        %v2128 = vpack.c.b16 %v2102, %v2101
        %v2129 = vpack.c.b16 %v2104, %v2103
        %v2130 = vpack.c.b16 %v2106, %v2105
        %v2131 = vpack.c.b16 %v2108, %v2107
        %v2132 = vpack.c.b16 %v2110, %v2109
        %v2133 = vpack.c.b16 %v2112, %v2111
        %v2134 = vpack.c.b16 %v2114, %v2113
        %v2135 = vpack.c.b16 %v2116, %v2115
        %v2136 = vpack.c.b16 %v2118, %v2117
        %v2137 = vpack.c.b16 %v2120, %v2119
        %v2138 = vpack.c.b16 %v2122, %v2121
        %2139 = vrot.lane.b32.xlu0 %v2123, 20
        %v2140 = vpop.permute.xlu0 %2139
        %2141 = vrot.lane.b32.xlu0 %v2124, 20
        %v2142 = vpop.permute.xlu0 %2141
        %2143 = vrot.lane.b32.xlu0 %v2125, 20
        %v2144 = vpop.permute.xlu0 %2143
        %2145 = vrot.lane.b32.xlu0 %v2126, 20
        %v2146 = vpop.permute.xlu0 %2145
        %2147 = vrot.lane.b32.xlu0 %v2127, 20
        %v2148 = vpop.permute.xlu0 %2147
        %2149 = vrot.lane.b32.xlu0 %v2128, 20
        %v2150 = vpop.permute.xlu0 %2149
        %2151 = vrot.lane.b32.xlu0 %v2129, 20
        %v2152 = vpop.permute.xlu0 %2151
        %2153 = vrot.lane.b32.xlu0 %v2130, 20
        %v2154 = vpop.permute.xlu0 %2153
        %2155 = vrot.lane.b32.xlu0 %v2131, 20
        %v2156 = vpop.permute.xlu0 %2155
        %2157 = vrot.lane.b32.xlu0 %v2132, 20
        %v2158 = vpop.permute.xlu0 %2157
        %2159 = vrot.lane.b32.xlu0 %v2133, 20
        %v2160 = vpop.permute.xlu0 %2159
        %2161 = vrot.lane.b32.xlu0 %v2134, 20
        %v2162 = vpop.permute.xlu0 %2161
        %2163 = vrot.lane.b32.xlu0 %v2135, 20
        %v2164 = vpop.permute.xlu0 %2163
        %2165 = vrot.lane.b32.xlu0 %v2136, 20
        %v2166 = vpop.permute.xlu0 %2165
        %2167 = vrot.lane.b32.xlu0 %v2137, 20
        %v2168 = vpop.permute.xlu0 %2167
        %2169 = vrot.lane.b32.xlu0 %v2138, 20
        %v2170 = vpop.permute.xlu0 %2169
        %vm2187 = vcmask 195744
        %2188 = vst.msk [vmem:[#allocation2] sm:$0xff] %vm2187, %v2140
        %2189 = vst.msk [vmem:[#allocation2 + $0x8] sm:$0xff] %vm2187, %v2142
        %2190 = vst.msk [vmem:[#allocation2 + $0x10] sm:$0xff] %vm2187, %v2144
        %2191 = vst.msk [vmem:[#allocation2 + $0x18] sm:$0xff] %vm2187, %v2146
        %2192 = vst.msk [vmem:[#allocation2 + $0x20] sm:$0xff] %vm2187, %v2148
        %2193 = vst.msk [vmem:[#allocation2 + $0x28] sm:$0xff] %vm2187, %v2150
        %2194 = vst.msk [vmem:[#allocation2 + $0x30] sm:$0xff] %vm2187, %v2152
        %2195 = vst.msk [vmem:[#allocation2 + $0x38] sm:$0xff] %vm2187, %v2154
        %2196 = vst.msk [vmem:[#allocation2 + $0x40] sm:$0xff] %vm2187, %v2156
        %2197 = vst.msk [vmem:[#allocation2 + $0x48] sm:$0xff] %vm2187, %v2158
        %2198 = vst.msk [vmem:[#allocation2 + $0x50] sm:$0xff] %vm2187, %v2160
        %2199 = vst.msk [vmem:[#allocation2 + $0x58] sm:$0xff] %vm2187, %v2162
        %2200 = vst.msk [vmem:[#allocation2 + $0x60] sm:$0xff] %vm2187, %v2164
        %2201 = vst.msk [vmem:[#allocation2 + $0x68] sm:$0xff] %vm2187, %v2166
        %2202 = vst.msk [vmem:[#allocation2 + $0x70] sm:$0xff] %vm2187, %v2168
        %2203 = vst.msk [vmem:[#allocation2 + $0x78] sm:$0xff] %vm2187, %v2170
        %s2204 = scalar_lea.vmem %s141, 24
        %v2205 = vld [vmem:[%s2204] sm:$0xf]
        %v2206 = vld [vmem:[%s2204 + $0x4] sm:$0xf]
        %v2207 = vld [vmem:[%s2204 + $0xc] sm:$0xf]
        %v2208 = vld [vmem:[%s2204 + $0x10] sm:$0xf]
        %v2209 = vld [vmem:[%s2204 + $0x18] sm:$0xf]
        %v2210 = vld [vmem:[%s2204 + $0x1c] sm:$0xf]
        %v2211 = vld [vmem:[%s2204 + $0x24] sm:$0xf]
        %v2212 = vld [vmem:[%s2204 + $0x28] sm:$0xf]
        %v2213 = vld [vmem:[%s2204 + $0x30] sm:$0xf]
        %v2214 = vld [vmem:[%s2204 + $0x34] sm:$0xf]
        %v2215 = vld [vmem:[%s2204 + $0x3c] sm:$0xf]
        %v2216 = vld [vmem:[%s2204 + $0x40] sm:$0xf]
        %v2217 = vld [vmem:[%s2204 + $0x48] sm:$0xf]
        %v2218 = vld [vmem:[%s2204 + $0x4c] sm:$0xf]
        %v2219 = vld [vmem:[%s2204 + $0x54] sm:$0xf]
        %v2220 = vld [vmem:[%s2204 + $0x58] sm:$0xf]
        %v2221 = vld [vmem:[%s2204 + $0x60] sm:$0xf]
        %v2222 = vld [vmem:[%s2204 + $0x64] sm:$0xf]
        %v2223 = vld [vmem:[%s2204 + $0x6c] sm:$0xf]
        %v2224 = vld [vmem:[%s2204 + $0x70] sm:$0xf]
        %v2225 = vld [vmem:[%s2204 + $0x78] sm:$0xf]
        %v2226 = vld [vmem:[%s2204 + $0x7c] sm:$0xf]
        %v2227 = vld [vmem:[%s2204 + $0x84] sm:$0xf]
        %v2228 = vld [vmem:[%s2204 + $0x88] sm:$0xf]
        %v2229 = vld [vmem:[%s2204 + $0x90] sm:$0xf]
        %v2230 = vld [vmem:[%s2204 + $0x94] sm:$0xf]
        %v2231 = vld [vmem:[%s2204 + $0x9c] sm:$0xf]
        %v2232 = vld [vmem:[%s2204 + $0xa0] sm:$0xf]
        %v2233 = vld [vmem:[%s2204 + $0xa8] sm:$0xf]
        %v2234 = vld [vmem:[%s2204 + $0xac] sm:$0xf]
        %v2235 = vld [vmem:[%s2204 + $0xb4] sm:$0xf]
        %v2236 = vld [vmem:[%s2204 + $0xb8] sm:$0xf]
        %v2269 = vunpack.c.l.b16 %v2205
        %v2270 = vunpack.c.l.b16 %v2206
        %v2271 = vunpack.c.l.b16 %v2207
        %v2272 = vunpack.c.l.b16 %v2208
        %v2273 = vunpack.c.l.b16 %v2209
        %v2274 = vunpack.c.l.b16 %v2210
        %v2275 = vunpack.c.l.b16 %v2211
        %v2276 = vunpack.c.l.b16 %v2212
        %v2277 = vunpack.c.l.b16 %v2213
        %v2278 = vunpack.c.l.b16 %v2214
        %v2279 = vunpack.c.l.b16 %v2215
        %v2280 = vunpack.c.l.b16 %v2216
        %v2281 = vunpack.c.l.b16 %v2217
        %v2282 = vunpack.c.l.b16 %v2218
        %v2283 = vunpack.c.l.b16 %v2219
        %v2284 = vunpack.c.l.b16 %v2220
        %v2285 = vunpack.c.l.b16 %v2221
        %v2286 = vunpack.c.l.b16 %v2222
        %v2287 = vunpack.c.l.b16 %v2223
        %v2288 = vunpack.c.l.b16 %v2224
        %v2289 = vunpack.c.l.b16 %v2225
        %v2290 = vunpack.c.l.b16 %v2226
        %v2291 = vunpack.c.l.b16 %v2227
        %v2292 = vunpack.c.l.b16 %v2228
        %v2293 = vunpack.c.l.b16 %v2229
        %v2294 = vunpack.c.l.b16 %v2230
        %v2295 = vunpack.c.l.b16 %v2231
        %v2296 = vunpack.c.l.b16 %v2232
        %v2297 = vunpack.c.l.b16 %v2233
        %v2298 = vunpack.c.l.b16 %v2234
        %v2299 = vunpack.c.l.b16 %v2235
        %v2300 = vunpack.c.l.b16 %v2236
        %v2301 = vpack.c.b16 %v2270, %v2269
        %v2302 = vpack.c.b16 %v2272, %v2271
        %v2303 = vpack.c.b16 %v2274, %v2273
        %v2304 = vpack.c.b16 %v2276, %v2275
        %v2305 = vpack.c.b16 %v2278, %v2277
        %v2306 = vpack.c.b16 %v2280, %v2279
        %v2307 = vpack.c.b16 %v2282, %v2281
        %v2308 = vpack.c.b16 %v2284, %v2283
        %v2309 = vpack.c.b16 %v2286, %v2285
        %v2310 = vpack.c.b16 %v2288, %v2287
        %v2311 = vpack.c.b16 %v2290, %v2289
        %v2312 = vpack.c.b16 %v2292, %v2291
        %v2313 = vpack.c.b16 %v2294, %v2293
        %v2314 = vpack.c.b16 %v2296, %v2295
        %v2315 = vpack.c.b16 %v2298, %v2297
        %v2316 = vpack.c.b16 %v2300, %v2299
        %2317 = vrot.lane.b32.xlu0 %v2301, 24
        %v2318 = vpop.permute.xlu0 %2317
        %2319 = vrot.lane.b32.xlu0 %v2302, 24
        %v2320 = vpop.permute.xlu0 %2319
        %2321 = vrot.lane.b32.xlu0 %v2303, 24
        %v2322 = vpop.permute.xlu0 %2321
        %2323 = vrot.lane.b32.xlu0 %v2304, 24
        %v2324 = vpop.permute.xlu0 %2323
        %2325 = vrot.lane.b32.xlu0 %v2305, 24
        %v2326 = vpop.permute.xlu0 %2325
        %2327 = vrot.lane.b32.xlu0 %v2306, 24
        %v2328 = vpop.permute.xlu0 %2327
        %2329 = vrot.lane.b32.xlu0 %v2307, 24
        %v2330 = vpop.permute.xlu0 %2329
        %2331 = vrot.lane.b32.xlu0 %v2308, 24
        %v2332 = vpop.permute.xlu0 %2331
        %2333 = vrot.lane.b32.xlu0 %v2309, 24
        %v2334 = vpop.permute.xlu0 %2333
        %2335 = vrot.lane.b32.xlu0 %v2310, 24
        %v2336 = vpop.permute.xlu0 %2335
        %2337 = vrot.lane.b32.xlu0 %v2311, 24
        %v2338 = vpop.permute.xlu0 %2337
        %2339 = vrot.lane.b32.xlu0 %v2312, 24
        %v2340 = vpop.permute.xlu0 %2339
        %2341 = vrot.lane.b32.xlu0 %v2313, 24
        %v2342 = vpop.permute.xlu0 %2341
        %2343 = vrot.lane.b32.xlu0 %v2314, 24
        %v2344 = vpop.permute.xlu0 %2343
        %2345 = vrot.lane.b32.xlu0 %v2315, 24
        %v2346 = vpop.permute.xlu0 %2345
        %2347 = vrot.lane.b32.xlu0 %v2316, 24
        %v2348 = vpop.permute.xlu0 %2347
        %vm2365 = vcmask 228544
        %2366 = vst.msk [vmem:[#allocation2] sm:$0xff] %vm2365, %v2318
        %2367 = vst.msk [vmem:[#allocation2 + $0x8] sm:$0xff] %vm2365, %v2320
        %2368 = vst.msk [vmem:[#allocation2 + $0x10] sm:$0xff] %vm2365, %v2322
        %2369 = vst.msk [vmem:[#allocation2 + $0x18] sm:$0xff] %vm2365, %v2324
        %2370 = vst.msk [vmem:[#allocation2 + $0x20] sm:$0xff] %vm2365, %v2326
        %2371 = vst.msk [vmem:[#allocation2 + $0x28] sm:$0xff] %vm2365, %v2328
        %2372 = vst.msk [vmem:[#allocation2 + $0x30] sm:$0xff] %vm2365, %v2330
        %2373 = vst.msk [vmem:[#allocation2 + $0x38] sm:$0xff] %vm2365, %v2332
        %2374 = vst.msk [vmem:[#allocation2 + $0x40] sm:$0xff] %vm2365, %v2334
        %2375 = vst.msk [vmem:[#allocation2 + $0x48] sm:$0xff] %vm2365, %v2336
        %2376 = vst.msk [vmem:[#allocation2 + $0x50] sm:$0xff] %vm2365, %v2338
        %2377 = vst.msk [vmem:[#allocation2 + $0x58] sm:$0xff] %vm2365, %v2340
        %2378 = vst.msk [vmem:[#allocation2 + $0x60] sm:$0xff] %vm2365, %v2342
        %2379 = vst.msk [vmem:[#allocation2 + $0x68] sm:$0xff] %vm2365, %v2344
        %2380 = vst.msk [vmem:[#allocation2 + $0x70] sm:$0xff] %vm2365, %v2346
        %2381 = vst.msk [vmem:[#allocation2 + $0x78] sm:$0xff] %vm2365, %v2348
        %v2382 = vld [vmem:[%s2204] sm:$0xf]
        %v2383 = vld [vmem:[%s2204 + $0x4] sm:$0xf]
        %v2384 = vld [vmem:[%s2204 + $0x8] sm:$0x1]
        %v2385 = vld [vmem:[%s2204 + $0xc] sm:$0xf]
        %v2386 = vld [vmem:[%s2204 + $0x10] sm:$0xf]
        %v2387 = vld [vmem:[%s2204 + $0x14] sm:$0x1]
        %v2388 = vld [vmem:[%s2204 + $0x18] sm:$0xf]
        %v2389 = vld [vmem:[%s2204 + $0x1c] sm:$0xf]
        %v2390 = vld [vmem:[%s2204 + $0x20] sm:$0x1]
        %v2391 = vld [vmem:[%s2204 + $0x24] sm:$0xf]
        %v2392 = vld [vmem:[%s2204 + $0x28] sm:$0xf]
        %v2393 = vld [vmem:[%s2204 + $0x2c] sm:$0x1]
        %v2394 = vld [vmem:[%s2204 + $0x30] sm:$0xf]
        %v2395 = vld [vmem:[%s2204 + $0x34] sm:$0xf]
        %v2396 = vld [vmem:[%s2204 + $0x38] sm:$0x1]
        %v2397 = vld [vmem:[%s2204 + $0x3c] sm:$0xf]
        %v2398 = vld [vmem:[%s2204 + $0x40] sm:$0xf]
        %v2399 = vld [vmem:[%s2204 + $0x44] sm:$0x1]
        %v2400 = vld [vmem:[%s2204 + $0x48] sm:$0xf]
        %v2401 = vld [vmem:[%s2204 + $0x4c] sm:$0xf]
        %v2402 = vld [vmem:[%s2204 + $0x50] sm:$0x1]
        %v2403 = vld [vmem:[%s2204 + $0x54] sm:$0xf]
        %v2404 = vld [vmem:[%s2204 + $0x58] sm:$0xf]
        %v2405 = vld [vmem:[%s2204 + $0x5c] sm:$0x1]
        %v2406 = vld [vmem:[%s2204 + $0x60] sm:$0xf]
        %v2407 = vld [vmem:[%s2204 + $0x64] sm:$0xf]
        %v2408 = vld [vmem:[%s2204 + $0x68] sm:$0x1]
        %v2409 = vld [vmem:[%s2204 + $0x6c] sm:$0xf]
        %v2410 = vld [vmem:[%s2204 + $0x70] sm:$0xf]
        %v2411 = vld [vmem:[%s2204 + $0x74] sm:$0x1]
        %v2412 = vld [vmem:[%s2204 + $0x78] sm:$0xf]
        %v2413 = vld [vmem:[%s2204 + $0x7c] sm:$0xf]
        %v2414 = vld [vmem:[%s2204 + $0x80] sm:$0x1]
        %v2415 = vld [vmem:[%s2204 + $0x84] sm:$0xf]
        %v2416 = vld [vmem:[%s2204 + $0x88] sm:$0xf]
        %v2417 = vld [vmem:[%s2204 + $0x8c] sm:$0x1]
        %v2418 = vld [vmem:[%s2204 + $0x90] sm:$0xf]
        %v2419 = vld [vmem:[%s2204 + $0x94] sm:$0xf]
        %v2420 = vld [vmem:[%s2204 + $0x98] sm:$0x1]
        %v2421 = vld [vmem:[%s2204 + $0x9c] sm:$0xf]
        %v2422 = vld [vmem:[%s2204 + $0xa0] sm:$0xf]
        %v2423 = vld [vmem:[%s2204 + $0xa4] sm:$0x1]
        %v2424 = vld [vmem:[%s2204 + $0xa8] sm:$0xf]
        %v2425 = vld [vmem:[%s2204 + $0xac] sm:$0xf]
        %v2426 = vld [vmem:[%s2204 + $0xb0] sm:$0x1]
        %v2427 = vld [vmem:[%s2204 + $0xb4] sm:$0xf]
        %v2428 = vld [vmem:[%s2204 + $0xb8] sm:$0xf]
        %v2429 = vld [vmem:[%s2204 + $0xbc] sm:$0x1]
        %v2431 = vshrl.u32 %v2382, 16
        %v2433 = vrot.slane %v2431, 4
        %v2434 = vshll.u32 %v2382, 16
        %v2436 = vrot.slane %v2434, 5
        %v2437 = vor.u32 %v2433, %v2436
        %v2438 = vrot.slane %v2437, 4
        %v2440 = vshll.u32 %v2383, 16
        %v2442 = vrot.slane %v2440, 5
        %v2443 = vsel %vm338, %v2438, %v2442
        %v2444 = vshrl.u32 %v2383, 16
        %v2446 = vrot.slane %v2444, 4
        %v2447 = vor.u32 %v2446, %v2442
        %v2448 = vrot.slane %v2447, 4
        %v2450 = vshll.u32 %v2384, 16
        %v2452 = vrot.slane %v2450, 5
        %v2453 = vsel %vm338, %v2448, %v2452
        %v2455 = vshrl.u32 %v2385, 16
        %v2457 = vrot.slane %v2455, 4
        %v2458 = vshll.u32 %v2385, 16
        %v2460 = vrot.slane %v2458, 5
        %v2461 = vor.u32 %v2457, %v2460
        %v2462 = vrot.slane %v2461, 4
        %v2464 = vshll.u32 %v2386, 16
        %v2466 = vrot.slane %v2464, 5
        %v2467 = vsel %vm338, %v2462, %v2466
        %v2468 = vshrl.u32 %v2386, 16
        %v2470 = vrot.slane %v2468, 4
        %v2471 = vor.u32 %v2470, %v2466
        %v2472 = vrot.slane %v2471, 4
        %v2474 = vshll.u32 %v2387, 16
        %v2476 = vrot.slane %v2474, 5
        %v2477 = vsel %vm338, %v2472, %v2476
        %v2479 = vshrl.u32 %v2388, 16
        %v2481 = vrot.slane %v2479, 4
        %v2482 = vshll.u32 %v2388, 16
        %v2484 = vrot.slane %v2482, 5
        %v2485 = vor.u32 %v2481, %v2484
        %v2486 = vrot.slane %v2485, 4
        %v2488 = vshll.u32 %v2389, 16
        %v2490 = vrot.slane %v2488, 5
        %v2491 = vsel %vm338, %v2486, %v2490
        %v2492 = vshrl.u32 %v2389, 16
        %v2494 = vrot.slane %v2492, 4
        %v2495 = vor.u32 %v2494, %v2490
        %v2496 = vrot.slane %v2495, 4
        %v2498 = vshll.u32 %v2390, 16
        %v2500 = vrot.slane %v2498, 5
        %v2501 = vsel %vm338, %v2496, %v2500
        %v2503 = vshrl.u32 %v2391, 16
        %v2505 = vrot.slane %v2503, 4
        %v2506 = vshll.u32 %v2391, 16
        %v2508 = vrot.slane %v2506, 5
        %v2509 = vor.u32 %v2505, %v2508
        %v2510 = vrot.slane %v2509, 4
        %v2512 = vshll.u32 %v2392, 16
        %v2514 = vrot.slane %v2512, 5
        %v2515 = vsel %vm338, %v2510, %v2514
        %v2516 = vshrl.u32 %v2392, 16
        %v2518 = vrot.slane %v2516, 4
        %v2519 = vor.u32 %v2518, %v2514
        %v2520 = vrot.slane %v2519, 4
        %v2522 = vshll.u32 %v2393, 16
        %v2524 = vrot.slane %v2522, 5
        %v2525 = vsel %vm338, %v2520, %v2524
        %v2527 = vshrl.u32 %v2394, 16
        %v2529 = vrot.slane %v2527, 4
        %v2530 = vshll.u32 %v2394, 16
        %v2532 = vrot.slane %v2530, 5
        %v2533 = vor.u32 %v2529, %v2532
        %v2534 = vrot.slane %v2533, 4
        %v2536 = vshll.u32 %v2395, 16
        %v2538 = vrot.slane %v2536, 5
        %v2539 = vsel %vm338, %v2534, %v2538
        %v2540 = vshrl.u32 %v2395, 16
        %v2542 = vrot.slane %v2540, 4
        %v2543 = vor.u32 %v2542, %v2538
        %v2544 = vrot.slane %v2543, 4
        %v2546 = vshll.u32 %v2396, 16
        %v2548 = vrot.slane %v2546, 5
        %v2549 = vsel %vm338, %v2544, %v2548
        %v2551 = vshrl.u32 %v2397, 16
        %v2553 = vrot.slane %v2551, 4
        %v2554 = vshll.u32 %v2397, 16
        %v2556 = vrot.slane %v2554, 5
        %v2557 = vor.u32 %v2553, %v2556
        %v2558 = vrot.slane %v2557, 4
        %v2560 = vshll.u32 %v2398, 16
        %v2562 = vrot.slane %v2560, 5
        %v2563 = vsel %vm338, %v2558, %v2562
        %v2564 = vshrl.u32 %v2398, 16
        %v2566 = vrot.slane %v2564, 4
        %v2567 = vor.u32 %v2566, %v2562
        %v2568 = vrot.slane %v2567, 4
        %v2570 = vshll.u32 %v2399, 16
        %v2572 = vrot.slane %v2570, 5
        %v2573 = vsel %vm338, %v2568, %v2572
        %v2575 = vshrl.u32 %v2400, 16
        %v2577 = vrot.slane %v2575, 4
        %v2578 = vshll.u32 %v2400, 16
        %v2580 = vrot.slane %v2578, 5
        %v2581 = vor.u32 %v2577, %v2580
        %v2582 = vrot.slane %v2581, 4
        %v2584 = vshll.u32 %v2401, 16
        %v2586 = vrot.slane %v2584, 5
        %v2587 = vsel %vm338, %v2582, %v2586
        %v2588 = vshrl.u32 %v2401, 16
        %v2590 = vrot.slane %v2588, 4
        %v2591 = vor.u32 %v2590, %v2586
        %v2592 = vrot.slane %v2591, 4
        %v2594 = vshll.u32 %v2402, 16
        %v2596 = vrot.slane %v2594, 5
        %v2597 = vsel %vm338, %v2592, %v2596
        %v2599 = vshrl.u32 %v2403, 16
        %v2601 = vrot.slane %v2599, 4
        %v2602 = vshll.u32 %v2403, 16
        %v2604 = vrot.slane %v2602, 5
        %v2605 = vor.u32 %v2601, %v2604
        %v2606 = vrot.slane %v2605, 4
        %v2608 = vshll.u32 %v2404, 16
        %v2610 = vrot.slane %v2608, 5
        %v2611 = vsel %vm338, %v2606, %v2610
        %v2612 = vshrl.u32 %v2404, 16
        %v2614 = vrot.slane %v2612, 4
        %v2615 = vor.u32 %v2614, %v2610
        %v2616 = vrot.slane %v2615, 4
        %v2618 = vshll.u32 %v2405, 16
        %v2620 = vrot.slane %v2618, 5
        %v2621 = vsel %vm338, %v2616, %v2620
        %v2623 = vshrl.u32 %v2406, 16
        %v2625 = vrot.slane %v2623, 4
        %v2626 = vshll.u32 %v2406, 16
        %v2628 = vrot.slane %v2626, 5
        %v2629 = vor.u32 %v2625, %v2628
        %v2630 = vrot.slane %v2629, 4
        %v2632 = vshll.u32 %v2407, 16
        %v2634 = vrot.slane %v2632, 5
        %v2635 = vsel %vm338, %v2630, %v2634
        %v2636 = vshrl.u32 %v2407, 16
        %v2638 = vrot.slane %v2636, 4
        %v2639 = vor.u32 %v2638, %v2634
        %v2640 = vrot.slane %v2639, 4
        %v2642 = vshll.u32 %v2408, 16
        %v2644 = vrot.slane %v2642, 5
        %v2645 = vsel %vm338, %v2640, %v2644
        %v2647 = vshrl.u32 %v2409, 16
        %v2649 = vrot.slane %v2647, 4
        %v2650 = vshll.u32 %v2409, 16
        %v2652 = vrot.slane %v2650, 5
        %v2653 = vor.u32 %v2649, %v2652
        %v2654 = vrot.slane %v2653, 4
        %v2656 = vshll.u32 %v2410, 16
        %v2658 = vrot.slane %v2656, 5
        %v2659 = vsel %vm338, %v2654, %v2658
        %v2660 = vshrl.u32 %v2410, 16
        %v2662 = vrot.slane %v2660, 4
        %v2663 = vor.u32 %v2662, %v2658
        %v2664 = vrot.slane %v2663, 4
        %v2666 = vshll.u32 %v2411, 16
        %v2668 = vrot.slane %v2666, 5
        %v2669 = vsel %vm338, %v2664, %v2668
        %v2671 = vshrl.u32 %v2412, 16
        %v2673 = vrot.slane %v2671, 4
        %v2674 = vshll.u32 %v2412, 16
        %v2676 = vrot.slane %v2674, 5
        %v2677 = vor.u32 %v2673, %v2676
        %v2678 = vrot.slane %v2677, 4
        %v2680 = vshll.u32 %v2413, 16
        %v2682 = vrot.slane %v2680, 5
        %v2683 = vsel %vm338, %v2678, %v2682
        %v2684 = vshrl.u32 %v2413, 16
        %v2686 = vrot.slane %v2684, 4
        %v2687 = vor.u32 %v2686, %v2682
        %v2688 = vrot.slane %v2687, 4
        %v2690 = vshll.u32 %v2414, 16
        %v2692 = vrot.slane %v2690, 5
        %v2693 = vsel %vm338, %v2688, %v2692
        %v2695 = vshrl.u32 %v2415, 16
        %v2697 = vrot.slane %v2695, 4
        %v2698 = vshll.u32 %v2415, 16
        %v2700 = vrot.slane %v2698, 5
        %v2701 = vor.u32 %v2697, %v2700
        %v2702 = vrot.slane %v2701, 4
        %v2704 = vshll.u32 %v2416, 16
        %v2706 = vrot.slane %v2704, 5
        %v2707 = vsel %vm338, %v2702, %v2706
        %v2708 = vshrl.u32 %v2416, 16
        %v2710 = vrot.slane %v2708, 4
        %v2711 = vor.u32 %v2710, %v2706
        %v2712 = vrot.slane %v2711, 4
        %v2714 = vshll.u32 %v2417, 16
        %v2716 = vrot.slane %v2714, 5
        %v2717 = vsel %vm338, %v2712, %v2716
        %v2719 = vshrl.u32 %v2418, 16
        %v2721 = vrot.slane %v2719, 4
        %v2722 = vshll.u32 %v2418, 16
        %v2724 = vrot.slane %v2722, 5
        %v2725 = vor.u32 %v2721, %v2724
        %v2726 = vrot.slane %v2725, 4
        %v2728 = vshll.u32 %v2419, 16
        %v2730 = vrot.slane %v2728, 5
        %v2731 = vsel %vm338, %v2726, %v2730
        %v2732 = vshrl.u32 %v2419, 16
        %v2734 = vrot.slane %v2732, 4
        %v2735 = vor.u32 %v2734, %v2730
        %v2736 = vrot.slane %v2735, 4
        %v2738 = vshll.u32 %v2420, 16
        %v2740 = vrot.slane %v2738, 5
        %v2741 = vsel %vm338, %v2736, %v2740
        %v2743 = vshrl.u32 %v2421, 16
        %v2745 = vrot.slane %v2743, 4
        %v2746 = vshll.u32 %v2421, 16
        %v2748 = vrot.slane %v2746, 5
        %v2749 = vor.u32 %v2745, %v2748
        %v2750 = vrot.slane %v2749, 4
        %v2752 = vshll.u32 %v2422, 16
        %v2754 = vrot.slane %v2752, 5
        %v2755 = vsel %vm338, %v2750, %v2754
        %v2756 = vshrl.u32 %v2422, 16
        %v2758 = vrot.slane %v2756, 4
        %v2759 = vor.u32 %v2758, %v2754
        %v2760 = vrot.slane %v2759, 4
        %v2762 = vshll.u32 %v2423, 16
        %v2764 = vrot.slane %v2762, 5
        %v2765 = vsel %vm338, %v2760, %v2764
        %v2767 = vshrl.u32 %v2424, 16
        %v2769 = vrot.slane %v2767, 4
        %v2770 = vshll.u32 %v2424, 16
        %v2772 = vrot.slane %v2770, 5
        %v2773 = vor.u32 %v2769, %v2772
        %v2774 = vrot.slane %v2773, 4
        %v2776 = vshll.u32 %v2425, 16
        %v2778 = vrot.slane %v2776, 5
        %v2779 = vsel %vm338, %v2774, %v2778
        %v2780 = vshrl.u32 %v2425, 16
        %v2782 = vrot.slane %v2780, 4
        %v2783 = vor.u32 %v2782, %v2778
        %v2784 = vrot.slane %v2783, 4
        %v2786 = vshll.u32 %v2426, 16
        %v2788 = vrot.slane %v2786, 5
        %v2789 = vsel %vm338, %v2784, %v2788
        %v2791 = vshrl.u32 %v2427, 16
        %v2793 = vrot.slane %v2791, 4
        %v2794 = vshll.u32 %v2427, 16
        %v2796 = vrot.slane %v2794, 5
        %v2797 = vor.u32 %v2793, %v2796
        %v2798 = vrot.slane %v2797, 4
        %v2800 = vshll.u32 %v2428, 16
        %v2802 = vrot.slane %v2800, 5
        %v2803 = vsel %vm338, %v2798, %v2802
        %v2804 = vshrl.u32 %v2428, 16
        %v2806 = vrot.slane %v2804, 4
        %v2807 = vor.u32 %v2806, %v2802
        %v2808 = vrot.slane %v2807, 4
        %v2810 = vshll.u32 %v2429, 16
        %v2812 = vrot.slane %v2810, 5
        %v2813 = vsel %vm338, %v2808, %v2812
        %v2814 = vunpack.c.l.b16 %v2443
        %v2815 = vunpack.c.l.b16 %v2453
        %v2816 = vunpack.c.l.b16 %v2467
        %v2817 = vunpack.c.l.b16 %v2477
        %v2818 = vunpack.c.l.b16 %v2491
        %v2819 = vunpack.c.l.b16 %v2501
        %v2820 = vunpack.c.l.b16 %v2515
        %v2821 = vunpack.c.l.b16 %v2525
        %v2822 = vunpack.c.l.b16 %v2539
        %v2823 = vunpack.c.l.b16 %v2549
        %v2824 = vunpack.c.l.b16 %v2563
        %v2825 = vunpack.c.l.b16 %v2573
        %v2826 = vunpack.c.l.b16 %v2587
        %v2827 = vunpack.c.l.b16 %v2597
        %v2828 = vunpack.c.l.b16 %v2611
        %v2829 = vunpack.c.l.b16 %v2621
        %v2830 = vunpack.c.l.b16 %v2635
        %v2831 = vunpack.c.l.b16 %v2645
        %v2832 = vunpack.c.l.b16 %v2659
        %v2833 = vunpack.c.l.b16 %v2669
        %v2834 = vunpack.c.l.b16 %v2683
        %v2835 = vunpack.c.l.b16 %v2693
        %v2836 = vunpack.c.l.b16 %v2707
        %v2837 = vunpack.c.l.b16 %v2717
        %v2838 = vunpack.c.l.b16 %v2731
        %v2839 = vunpack.c.l.b16 %v2741
        %v2840 = vunpack.c.l.b16 %v2755
        %v2841 = vunpack.c.l.b16 %v2765
        %v2842 = vunpack.c.l.b16 %v2779
        %v2843 = vunpack.c.l.b16 %v2789
        %v2844 = vunpack.c.l.b16 %v2803
        %v2845 = vunpack.c.l.b16 %v2813
        %v2846 = vpack.c.b16 %v2815, %v2814
        %v2847 = vpack.c.b16 %v2817, %v2816
        %v2848 = vpack.c.b16 %v2819, %v2818
        %v2849 = vpack.c.b16 %v2821, %v2820
        %v2850 = vpack.c.b16 %v2823, %v2822
        %v2851 = vpack.c.b16 %v2825, %v2824
        %v2852 = vpack.c.b16 %v2827, %v2826
        %v2853 = vpack.c.b16 %v2829, %v2828
        %v2854 = vpack.c.b16 %v2831, %v2830
        %v2855 = vpack.c.b16 %v2833, %v2832
        %v2856 = vpack.c.b16 %v2835, %v2834
        %v2857 = vpack.c.b16 %v2837, %v2836
        %v2858 = vpack.c.b16 %v2839, %v2838
        %v2859 = vpack.c.b16 %v2841, %v2840
        %v2860 = vpack.c.b16 %v2843, %v2842
        %v2861 = vpack.c.b16 %v2845, %v2844
        %2862 = vrot.lane.b32.xlu0 %v2846, 28
        %v2863 = vpop.permute.xlu0 %2862
        %2864 = vrot.lane.b32.xlu0 %v2847, 28
        %v2865 = vpop.permute.xlu0 %2864
        %2866 = vrot.lane.b32.xlu0 %v2848, 28
        %v2867 = vpop.permute.xlu0 %2866
        %2868 = vrot.lane.b32.xlu0 %v2849, 28
        %v2869 = vpop.permute.xlu0 %2868
        %2870 = vrot.lane.b32.xlu0 %v2850, 28
        %v2871 = vpop.permute.xlu0 %2870
        %2872 = vrot.lane.b32.xlu0 %v2851, 28
        %v2873 = vpop.permute.xlu0 %2872
        %2874 = vrot.lane.b32.xlu0 %v2852, 28
        %v2875 = vpop.permute.xlu0 %2874
        %2876 = vrot.lane.b32.xlu0 %v2853, 28
        %v2877 = vpop.permute.xlu0 %2876
        %2878 = vrot.lane.b32.xlu0 %v2854, 28
        %v2879 = vpop.permute.xlu0 %2878
        %2880 = vrot.lane.b32.xlu0 %v2855, 28
        %v2881 = vpop.permute.xlu0 %2880
        %2882 = vrot.lane.b32.xlu0 %v2856, 28
        %v2883 = vpop.permute.xlu0 %2882
        %2884 = vrot.lane.b32.xlu0 %v2857, 28
        %v2885 = vpop.permute.xlu0 %2884
        %2886 = vrot.lane.b32.xlu0 %v2858, 28
        %v2887 = vpop.permute.xlu0 %2886
        %2888 = vrot.lane.b32.xlu0 %v2859, 28
        %v2889 = vpop.permute.xlu0 %2888
        %2890 = vrot.lane.b32.xlu0 %v2860, 28
        %v2891 = vpop.permute.xlu0 %2890
        %2892 = vrot.lane.b32.xlu0 %v2861, 28
        %v2893 = vpop.permute.xlu0 %2892
        %vm2910 = vcmask 261344
        %2911 = vst.msk [vmem:[#allocation2] sm:$0xff] %vm2910, %v2863
        %2912 = vst.msk [vmem:[#allocation2 + $0x8] sm:$0xff] %vm2910, %v2865
        %2913 = vst.msk [vmem:[#allocation2 + $0x10] sm:$0xff] %vm2910, %v2867
        %2914 = vst.msk [vmem:[#allocation2 + $0x18] sm:$0xff] %vm2910, %v2869
        %2915 = vst.msk [vmem:[#allocation2 + $0x20] sm:$0xff] %vm2910, %v2871
        %2916 = vst.msk [vmem:[#allocation2 + $0x28] sm:$0xff] %vm2910, %v2873
        %2917 = vst.msk [vmem:[#allocation2 + $0x30] sm:$0xff] %vm2910, %v2875
        %2918 = vst.msk [vmem:[#allocation2 + $0x38] sm:$0xff] %vm2910, %v2877
        %2919 = vst.msk [vmem:[#allocation2 + $0x40] sm:$0xff] %vm2910, %v2879
        %2920 = vst.msk [vmem:[#allocation2 + $0x48] sm:$0xff] %vm2910, %v2881
        %2921 = vst.msk [vmem:[#allocation2 + $0x50] sm:$0xff] %vm2910, %v2883
        %2922 = vst.msk [vmem:[#allocation2 + $0x58] sm:$0xff] %vm2910, %v2885
        %2923 = vst.msk [vmem:[#allocation2 + $0x60] sm:$0xff] %vm2910, %v2887
        %2924 = vst.msk [vmem:[#allocation2 + $0x68] sm:$0xff] %vm2910, %v2889
        %2925 = vst.msk [vmem:[#allocation2 + $0x70] sm:$0xff] %vm2910, %v2891
        %2926 = vst.msk [vmem:[#allocation2 + $0x78] sm:$0xff] %vm2910, %v2893
        %v2927 = vld [vmem:[%s2204] sm:$0xe]
        %v2928 = vld [vmem:[%s2204 + $0x4] sm:$0xf]
        %v2929 = vld [vmem:[%s2204 + $0x8] sm:$0x1]
        %v2930 = vld [vmem:[%s2204 + $0xc] sm:$0xe]
        %v2931 = vld [vmem:[%s2204 + $0x10] sm:$0xf]
        %v2932 = vld [vmem:[%s2204 + $0x14] sm:$0x1]
        %v2933 = vld [vmem:[%s2204 + $0x18] sm:$0xe]
        %v2934 = vld [vmem:[%s2204 + $0x1c] sm:$0xf]
        %v2935 = vld [vmem:[%s2204 + $0x20] sm:$0x1]
        %v2936 = vld [vmem:[%s2204 + $0x24] sm:$0xe]
        %v2937 = vld [vmem:[%s2204 + $0x28] sm:$0xf]
        %v2938 = vld [vmem:[%s2204 + $0x2c] sm:$0x1]
        %v2939 = vld [vmem:[%s2204 + $0x30] sm:$0xe]
        %v2940 = vld [vmem:[%s2204 + $0x34] sm:$0xf]
        %v2941 = vld [vmem:[%s2204 + $0x38] sm:$0x1]
        %v2942 = vld [vmem:[%s2204 + $0x3c] sm:$0xe]
        %v2943 = vld [vmem:[%s2204 + $0x40] sm:$0xf]
        %v2944 = vld [vmem:[%s2204 + $0x44] sm:$0x1]
        %v2945 = vld [vmem:[%s2204 + $0x48] sm:$0xe]
        %v2946 = vld [vmem:[%s2204 + $0x4c] sm:$0xf]
        %v2947 = vld [vmem:[%s2204 + $0x50] sm:$0x1]
        %v2948 = vld [vmem:[%s2204 + $0x54] sm:$0xe]
        %v2949 = vld [vmem:[%s2204 + $0x58] sm:$0xf]
        %v2950 = vld [vmem:[%s2204 + $0x5c] sm:$0x1]
        %v2951 = vld [vmem:[%s2204 + $0x60] sm:$0xe]
        %v2952 = vld [vmem:[%s2204 + $0x64] sm:$0xf]
        %v2953 = vld [vmem:[%s2204 + $0x68] sm:$0x1]
        %v2954 = vld [vmem:[%s2204 + $0x6c] sm:$0xe]
        %v2955 = vld [vmem:[%s2204 + $0x70] sm:$0xf]
        %v2956 = vld [vmem:[%s2204 + $0x74] sm:$0x1]
        %v2957 = vld [vmem:[%s2204 + $0x78] sm:$0xe]
        %v2958 = vld [vmem:[%s2204 + $0x7c] sm:$0xf]
        %v2959 = vld [vmem:[%s2204 + $0x80] sm:$0x1]
        %v2960 = vld [vmem:[%s2204 + $0x84] sm:$0xe]
        %v2961 = vld [vmem:[%s2204 + $0x88] sm:$0xf]
        %v2962 = vld [vmem:[%s2204 + $0x8c] sm:$0x1]
        %v2963 = vld [vmem:[%s2204 + $0x90] sm:$0xe]
        %v2964 = vld [vmem:[%s2204 + $0x94] sm:$0xf]
        %v2965 = vld [vmem:[%s2204 + $0x98] sm:$0x1]
        %v2966 = vld [vmem:[%s2204 + $0x9c] sm:$0xe]
        %v2967 = vld [vmem:[%s2204 + $0xa0] sm:$0xf]
        %v2968 = vld [vmem:[%s2204 + $0xa4] sm:$0x1]
        %v2969 = vld [vmem:[%s2204 + $0xa8] sm:$0xe]
        %v2970 = vld [vmem:[%s2204 + $0xac] sm:$0xf]
        %v2971 = vld [vmem:[%s2204 + $0xb0] sm:$0x1]
        %v2972 = vld [vmem:[%s2204 + $0xb4] sm:$0xe]
        %v2973 = vld [vmem:[%s2204 + $0xb8] sm:$0xf]
        %v2974 = vld [vmem:[%s2204 + $0xbc] sm:$0x1]
        %v3023 = vrot.slane %v2927, 5
        %v3024 = vrot.slane %v3023, 4
        %v3025 = vrot.slane %v2928, 5
        %v3026 = vsel %vm934, %v3024, %v3025
        %v3027 = vrot.slane %v3025, 4
        %v3028 = vrot.slane %v2929, 5
        %v3029 = vsel %vm934, %v3027, %v3028
        %v3030 = vrot.slane %v2930, 5
        %v3031 = vrot.slane %v3030, 4
        %v3032 = vrot.slane %v2931, 5
        %v3033 = vsel %vm934, %v3031, %v3032
        %v3034 = vrot.slane %v3032, 4
        %v3035 = vrot.slane %v2932, 5
        %v3036 = vsel %vm934, %v3034, %v3035
        %v3037 = vrot.slane %v2933, 5
        %v3038 = vrot.slane %v3037, 4
        %v3039 = vrot.slane %v2934, 5
        %v3040 = vsel %vm934, %v3038, %v3039
        %v3041 = vrot.slane %v3039, 4
        %v3042 = vrot.slane %v2935, 5
        %v3043 = vsel %vm934, %v3041, %v3042
        %v3044 = vrot.slane %v2936, 5
        %v3045 = vrot.slane %v3044, 4
        %v3046 = vrot.slane %v2937, 5
        %v3047 = vsel %vm934, %v3045, %v3046
        %v3048 = vrot.slane %v3046, 4
        %v3049 = vrot.slane %v2938, 5
        %v3050 = vsel %vm934, %v3048, %v3049
        %v3051 = vrot.slane %v2939, 5
        %v3052 = vrot.slane %v3051, 4
        %v3053 = vrot.slane %v2940, 5
        %v3054 = vsel %vm934, %v3052, %v3053
        %v3055 = vrot.slane %v3053, 4
        %v3056 = vrot.slane %v2941, 5
        %v3057 = vsel %vm934, %v3055, %v3056
        %v3058 = vrot.slane %v2942, 5
        %v3059 = vrot.slane %v3058, 4
        %v3060 = vrot.slane %v2943, 5
        %v3061 = vsel %vm934, %v3059, %v3060
        %v3062 = vrot.slane %v3060, 4
        %v3063 = vrot.slane %v2944, 5
        %v3064 = vsel %vm934, %v3062, %v3063
        %v3065 = vrot.slane %v2945, 5
        %v3066 = vrot.slane %v3065, 4
        %v3067 = vrot.slane %v2946, 5
        %v3068 = vsel %vm934, %v3066, %v3067
        %v3069 = vrot.slane %v3067, 4
        %v3070 = vrot.slane %v2947, 5
        %v3071 = vsel %vm934, %v3069, %v3070
        %v3072 = vrot.slane %v2948, 5
        %v3073 = vrot.slane %v3072, 4
        %v3074 = vrot.slane %v2949, 5
        %v3075 = vsel %vm934, %v3073, %v3074
        %v3076 = vrot.slane %v3074, 4
        %v3077 = vrot.slane %v2950, 5
        %v3078 = vsel %vm934, %v3076, %v3077
        %v3079 = vrot.slane %v2951, 5
        %v3080 = vrot.slane %v3079, 4
        %v3081 = vrot.slane %v2952, 5
        %v3082 = vsel %vm934, %v3080, %v3081
        %v3083 = vrot.slane %v3081, 4
        %v3084 = vrot.slane %v2953, 5
        %v3085 = vsel %vm934, %v3083, %v3084
        %v3086 = vrot.slane %v2954, 5
        %v3087 = vrot.slane %v3086, 4
        %v3088 = vrot.slane %v2955, 5
        %v3089 = vsel %vm934, %v3087, %v3088
        %v3090 = vrot.slane %v3088, 4
        %v3091 = vrot.slane %v2956, 5
        %v3092 = vsel %vm934, %v3090, %v3091
        %v3093 = vrot.slane %v2957, 5
        %v3094 = vrot.slane %v3093, 4
        %v3095 = vrot.slane %v2958, 5
        %v3096 = vsel %vm934, %v3094, %v3095
        %v3097 = vrot.slane %v3095, 4
        %v3098 = vrot.slane %v2959, 5
        %v3099 = vsel %vm934, %v3097, %v3098
        %v3100 = vrot.slane %v2960, 5
        %v3101 = vrot.slane %v3100, 4
        %v3102 = vrot.slane %v2961, 5
        %v3103 = vsel %vm934, %v3101, %v3102
        %v3104 = vrot.slane %v3102, 4
        %v3105 = vrot.slane %v2962, 5
        %v3106 = vsel %vm934, %v3104, %v3105
        %v3107 = vrot.slane %v2963, 5
        %v3108 = vrot.slane %v3107, 4
        %v3109 = vrot.slane %v2964, 5
        %v3110 = vsel %vm934, %v3108, %v3109
        %v3111 = vrot.slane %v3109, 4
        %v3112 = vrot.slane %v2965, 5
        %v3113 = vsel %vm934, %v3111, %v3112
        %v3114 = vrot.slane %v2966, 5
        %v3115 = vrot.slane %v3114, 4
        %v3116 = vrot.slane %v2967, 5
        %v3117 = vsel %vm934, %v3115, %v3116
        %v3118 = vrot.slane %v3116, 4
        %v3119 = vrot.slane %v2968, 5
        %v3120 = vsel %vm934, %v3118, %v3119
        %v3121 = vrot.slane %v2969, 5
        %v3122 = vrot.slane %v3121, 4
        %v3123 = vrot.slane %v2970, 5
        %v3124 = vsel %vm934, %v3122, %v3123
        %v3125 = vrot.slane %v3123, 4
        %v3126 = vrot.slane %v2971, 5
        %v3127 = vsel %vm934, %v3125, %v3126
        %v3128 = vrot.slane %v2972, 5
        %v3129 = vrot.slane %v3128, 4
        %v3130 = vrot.slane %v2973, 5
        %v3131 = vsel %vm934, %v3129, %v3130
        %v3132 = vrot.slane %v3130, 4
        %v3133 = vrot.slane %v2974, 5
        %v3134 = vsel %vm934, %v3132, %v3133
        %v3135 = vunpack.c.l.b16 %v3026
        %v3136 = vunpack.c.l.b16 %v3029
        %v3137 = vunpack.c.l.b16 %v3033
        %v3138 = vunpack.c.l.b16 %v3036
        %v3139 = vunpack.c.l.b16 %v3040
        %v3140 = vunpack.c.l.b16 %v3043
        %v3141 = vunpack.c.l.b16 %v3047
        %v3142 = vunpack.c.l.b16 %v3050
        %v3143 = vunpack.c.l.b16 %v3054
        %v3144 = vunpack.c.l.b16 %v3057
        %v3145 = vunpack.c.l.b16 %v3061
        %v3146 = vunpack.c.l.b16 %v3064
        %v3147 = vunpack.c.l.b16 %v3068
        %v3148 = vunpack.c.l.b16 %v3071
        %v3149 = vunpack.c.l.b16 %v3075
        %v3150 = vunpack.c.l.b16 %v3078
        %v3151 = vunpack.c.l.b16 %v3082
        %v3152 = vunpack.c.l.b16 %v3085
        %v3153 = vunpack.c.l.b16 %v3089
        %v3154 = vunpack.c.l.b16 %v3092
        %v3155 = vunpack.c.l.b16 %v3096
        %v3156 = vunpack.c.l.b16 %v3099
        %v3157 = vunpack.c.l.b16 %v3103
        %v3158 = vunpack.c.l.b16 %v3106
        %v3159 = vunpack.c.l.b16 %v3110
        %v3160 = vunpack.c.l.b16 %v3113
        %v3161 = vunpack.c.l.b16 %v3117
        %v3162 = vunpack.c.l.b16 %v3120
        %v3163 = vunpack.c.l.b16 %v3124
        %v3164 = vunpack.c.l.b16 %v3127
        %v3165 = vunpack.c.l.b16 %v3131
        %v3166 = vunpack.c.l.b16 %v3134
        %v3167 = vpack.c.b16 %v3136, %v3135
        %v3168 = vpack.c.b16 %v3138, %v3137
        %v3169 = vpack.c.b16 %v3140, %v3139
        %v3170 = vpack.c.b16 %v3142, %v3141
        %v3171 = vpack.c.b16 %v3144, %v3143
        %v3172 = vpack.c.b16 %v3146, %v3145
        %v3173 = vpack.c.b16 %v3148, %v3147
        %v3174 = vpack.c.b16 %v3150, %v3149
        %v3175 = vpack.c.b16 %v3152, %v3151
        %v3176 = vpack.c.b16 %v3154, %v3153
        %v3177 = vpack.c.b16 %v3156, %v3155
        %v3178 = vpack.c.b16 %v3158, %v3157
        %v3179 = vpack.c.b16 %v3160, %v3159
        %v3180 = vpack.c.b16 %v3162, %v3161
        %v3181 = vpack.c.b16 %v3164, %v3163
        %v3182 = vpack.c.b16 %v3166, %v3165
        %3183 = vrot.lane.b32.xlu0 %v3167, 32
        %v3184 = vpop.permute.xlu0 %3183
        %3185 = vrot.lane.b32.xlu0 %v3168, 32
        %v3186 = vpop.permute.xlu0 %3185
        %3187 = vrot.lane.b32.xlu0 %v3169, 32
        %v3188 = vpop.permute.xlu0 %3187
        %3189 = vrot.lane.b32.xlu0 %v3170, 32
        %v3190 = vpop.permute.xlu0 %3189
        %3191 = vrot.lane.b32.xlu0 %v3171, 32
        %v3192 = vpop.permute.xlu0 %3191
        %3193 = vrot.lane.b32.xlu0 %v3172, 32
        %v3194 = vpop.permute.xlu0 %3193
        %3195 = vrot.lane.b32.xlu0 %v3173, 32
        %v3196 = vpop.permute.xlu0 %3195
        %3197 = vrot.lane.b32.xlu0 %v3174, 32
        %v3198 = vpop.permute.xlu0 %3197
        %3199 = vrot.lane.b32.xlu0 %v3175, 32
        %v3200 = vpop.permute.xlu0 %3199
        %3201 = vrot.lane.b32.xlu0 %v3176, 32
        %v3202 = vpop.permute.xlu0 %3201
        %3203 = vrot.lane.b32.xlu0 %v3177, 32
        %v3204 = vpop.permute.xlu0 %3203
        %3205 = vrot.lane.b32.xlu0 %v3178, 32
        %v3206 = vpop.permute.xlu0 %3205
        %3207 = vrot.lane.b32.xlu0 %v3179, 32
        %v3208 = vpop.permute.xlu0 %3207
        %3209 = vrot.lane.b32.xlu0 %v3180, 32
        %v3210 = vpop.permute.xlu0 %3209
        %3211 = vrot.lane.b32.xlu0 %v3181, 32
        %v3212 = vpop.permute.xlu0 %3211
        %3213 = vrot.lane.b32.xlu0 %v3182, 32
        %v3214 = vpop.permute.xlu0 %3213
        %vm3231 = vcmask 294144
        %3232 = vst.msk [vmem:[#allocation2] sm:$0xff] %vm3231, %v3184
        %3233 = vst.msk [vmem:[#allocation2 + $0x8] sm:$0xff] %vm3231, %v3186
        %3234 = vst.msk [vmem:[#allocation2 + $0x10] sm:$0xff] %vm3231, %v3188
        %3235 = vst.msk [vmem:[#allocation2 + $0x18] sm:$0xff] %vm3231, %v3190
        %3236 = vst.msk [vmem:[#allocation2 + $0x20] sm:$0xff] %vm3231, %v3192
        %3237 = vst.msk [vmem:[#allocation2 + $0x28] sm:$0xff] %vm3231, %v3194
        %3238 = vst.msk [vmem:[#allocation2 + $0x30] sm:$0xff] %vm3231, %v3196
        %3239 = vst.msk [vmem:[#allocation2 + $0x38] sm:$0xff] %vm3231, %v3198
        %3240 = vst.msk [vmem:[#allocation2 + $0x40] sm:$0xff] %vm3231, %v3200
        %3241 = vst.msk [vmem:[#allocation2 + $0x48] sm:$0xff] %vm3231, %v3202
        %3242 = vst.msk [vmem:[#allocation2 + $0x50] sm:$0xff] %vm3231, %v3204
        %3243 = vst.msk [vmem:[#allocation2 + $0x58] sm:$0xff] %vm3231, %v3206
        %3244 = vst.msk [vmem:[#allocation2 + $0x60] sm:$0xff] %vm3231, %v3208
        %3245 = vst.msk [vmem:[#allocation2 + $0x68] sm:$0xff] %vm3231, %v3210
        %3246 = vst.msk [vmem:[#allocation2 + $0x70] sm:$0xff] %vm3231, %v3212
        %3247 = vst.msk [vmem:[#allocation2 + $0x78] sm:$0xff] %vm3231, %v3214
        %vm3248 = vcmask 1047840
        %3249 = vst.msk [vmem:[#allocation2] sm:$0xff] %vm3248, 0
        %3250 = vst.msk [vmem:[#allocation2 + $0x8] sm:$0xff] %vm3248, 0
        %3251 = vst.msk [vmem:[#allocation2 + $0x10] sm:$0xff] %vm3248, 0
        %3252 = vst.msk [vmem:[#allocation2 + $0x18] sm:$0xff] %vm3248, 0
        %3253 = vst.msk [vmem:[#allocation2 + $0x20] sm:$0xff] %vm3248, 0
        %3254 = vst.msk [vmem:[#allocation2 + $0x28] sm:$0xff] %vm3248, 0
        %3255 = vst.msk [vmem:[#allocation2 + $0x30] sm:$0xff] %vm3248, 0
        %3256 = vst.msk [vmem:[#allocation2 + $0x38] sm:$0xff] %vm3248, 0
        %3257 = vst.msk [vmem:[#allocation2 + $0x40] sm:$0xff] %vm3248, 0
        %3258 = vst.msk [vmem:[#allocation2 + $0x48] sm:$0xff] %vm3248, 0
        %3259 = vst.msk [vmem:[#allocation2 + $0x50] sm:$0xff] %vm3248, 0
        %3260 = vst.msk [vmem:[#allocation2 + $0x58] sm:$0xff] %vm3248, 0
        %3261 = vst.msk [vmem:[#allocation2 + $0x60] sm:$0xff] %vm3248, 0
        %3262 = vst.msk [vmem:[#allocation2 + $0x68] sm:$0xff] %vm3248, 0
        %3263 = vst.msk [vmem:[#allocation2 + $0x70] sm:$0xff] %vm3248, 0
        %3264 = vst.msk [vmem:[#allocation2 + $0x78] sm:$0xff] %vm3248, 0
        %v3265 = vld [vmem:[#allocation2] sm:$0xff]
        %v3266 = vld [vmem:[#allocation2 + $0x8] sm:$0xff]
        %v3267 = vld [vmem:[#allocation2 + $0x10] sm:$0xff]
        %v3268 = vld [vmem:[#allocation2 + $0x18] sm:$0xff]
        %v3269 = vld [vmem:[#allocation2 + $0x20] sm:$0xff]
        %v3270 = vld [vmem:[#allocation2 + $0x28] sm:$0xff]
        %v3271 = vld [vmem:[#allocation2 + $0x30] sm:$0xff]
        %v3272 = vld [vmem:[#allocation2 + $0x38] sm:$0xff]
        %v3273 = vld [vmem:[#allocation2 + $0x40] sm:$0xff]
        %v3274 = vld [vmem:[#allocation2 + $0x48] sm:$0xff]
        %v3275 = vld [vmem:[#allocation2 + $0x50] sm:$0xff]
        %v3276 = vld [vmem:[#allocation2 + $0x58] sm:$0xff]
        %v3277 = vld [vmem:[#allocation2 + $0x60] sm:$0xff]
        %v3278 = vld [vmem:[#allocation2 + $0x68] sm:$0xff]
        %v3279 = vld [vmem:[#allocation2 + $0x70] sm:$0xff]
        %v3280 = vld [vmem:[#allocation2 + $0x78] sm:$0xff]
        %v3281 = vld [vmem:[%s1] sm:$0xf]
        %v3282 = vld [vmem:[%s1 + $0x4] sm:$0xf]
        %v3283 = vld [vmem:[%s1 + $0x8] sm:$0xf]
        %v3284 = vld [vmem:[%s1 + $0xc] sm:$0xf]
        %v3285 = vld [vmem:[%s1 + $0x10] sm:$0xf]
        %v3286 = vld [vmem:[%s1 + $0x14] sm:$0xf]
        %v3287 = vld [vmem:[%s1 + $0x18] sm:$0xf]
        %v3288 = vld [vmem:[%s1 + $0x1c] sm:$0xf]
        %v3289 = vld [vmem:[%s1 + $0x20] sm:$0xf]
        %v3290 = vld [vmem:[%s1 + $0x24] sm:$0xf]
        %v3291 = vld [vmem:[%s1 + $0x28] sm:$0xf]
        %v3292 = vld [vmem:[%s1 + $0x2c] sm:$0xf]
        %v3293 = vld [vmem:[%s1 + $0x30] sm:$0xf]
        %v3294 = vld [vmem:[%s1 + $0x34] sm:$0xf]
        %v3295 = vld [vmem:[%s1 + $0x38] sm:$0xf]
        %v3296 = vld [vmem:[%s1 + $0x3c] sm:$0xf]
        %v3313 = vunpack.c.l.b16 %v3281
        %v3314 = vunpack.c.l.b16 %v3282
        %v3315 = vunpack.c.l.b16 %v3283
        %v3316 = vunpack.c.l.b16 %v3284
        %v3317 = vunpack.c.l.b16 %v3285
        %v3318 = vunpack.c.l.b16 %v3286
        %v3319 = vunpack.c.l.b16 %v3287
        %v3320 = vunpack.c.l.b16 %v3288
        %v3321 = vunpack.c.l.b16 %v3289
        %v3322 = vunpack.c.l.b16 %v3290
        %v3323 = vunpack.c.l.b16 %v3291
        %v3324 = vunpack.c.l.b16 %v3292
        %v3325 = vunpack.c.l.b16 %v3293
        %v3326 = vunpack.c.l.b16 %v3294
        %v3327 = vunpack.c.l.b16 %v3295
        %v3328 = vunpack.c.l.b16 %v3296
        %v3329 = vpack.c.b16 %v3314, %v3313
        %v3330 = vpack.c.b16 %v3316, %v3315
        %v3331 = vpack.c.b16 %v3318, %v3317
        %v3332 = vpack.c.b16 %v3320, %v3319
        %v3333 = vpack.c.b16 %v3322, %v3321
        %v3334 = vpack.c.b16 %v3324, %v3323
        %v3335 = vpack.c.b16 %v3326, %v3325
        %v3336 = vpack.c.b16 %v3328, %v3327
        %3345 = vmatprep.subr.bf16.mxu0 0
        %3346 = vmatpush1.bf16.msra.mxu0 %v3329
        %3347 = vmatprep.subr.bf16.mxu0 0
        %3348 = vmatpush1.bf16.msra.mxu0 %v3330
        %3349 = vmatprep.subr.bf16.mxu0 0
        %3350 = vmatpush1.bf16.msra.mxu0 %v3331
        %3351 = vmatprep.subr.bf16.mxu0 0
        %3352 = vmatpush1.bf16.msra.mxu0 %v3332
        %3353 = vmatprep.subr.bf16.mxu0 0
        %3354 = vmatpush1.bf16.msra.mxu0 %v3333
        %3355 = vmatprep.subr.bf16.mxu0 0
        %3356 = vmatpush1.bf16.msra.mxu0 %v3334
        %3357 = vmatprep.subr.bf16.mxu0 0
        %3358 = vmatpush1.bf16.msra.mxu0 %v3335
        %3359 = vmatprep.subr.bf16.mxu0 0
        %3360 = vmatpush1.bf16.msra.mxu0 %v3336
        %3361 = vmatprep.subr.bf16.mxu0 0
        %3362 = vmatpush1.bf16.msra.mxu0 0
        %3363 = vmatprep.subr.bf16.mxu0 0
        %3364 = vmatpush1.bf16.msra.mxu0 0
        %3365 = vmatprep.subr.bf16.mxu0 0
        %3366 = vmatpush1.bf16.msra.mxu0 0
        %3367 = vmatprep.subr.bf16.mxu0 0
        %3368 = vmatpush1.bf16.msra.mxu0 0
        %3369 = vmatprep.subr.bf16.mxu0 0
        %3370 = vmatpush1.bf16.msra.mxu0 0
        %3371 = vmatprep.subr.bf16.mxu0 0
        %3372 = vmatpush1.bf16.msra.mxu0 0
        %3373 = vmatprep.subr.bf16.mxu0 0
        %3374 = vmatpush1.bf16.msra.mxu0 0
        %3375 = vmatprep.subr.bf16.mxu0 0
        %3376 = vmatpush1.bf16.msra.mxu0 0
        %3377 = vmatprep.mubr.bf16.mxu0 0
        %3378 = vmatmul.mubr.bf16.gmra.mrb[0].mxu0 %v3265
        %v3379 = vpop.f32.mrb[0].mxu0
        %v3380 = vadd.f32 0.0, %v3379
        %v3381 = vpop.f32.mrb[0].mxu0
        %v3382 = vpop.f32.mrb[0].mxu0
        %v3383 = vadd.f32 0.0, %v3382
        %v3384 = vpop.f32.mrb[0].mxu0
        %3385 = vmatprep.mubr.bf16.mxu0 0
        %3386 = vmatmul.mubr.bf16.gmra.mrb[0].mxu0 %v3266
        %v3387 = vpop.f32.mrb[0].mxu0
        %v3388 = vadd.f32 0.0, %v3387
        %v3389 = vpop.f32.mrb[0].mxu0
        %v3390 = vpop.f32.mrb[0].mxu0
        %v3391 = vadd.f32 0.0, %v3390
        %v3392 = vpop.f32.mrb[0].mxu0
        %3393 = vmatprep.mubr.bf16.mxu0 0
        %3394 = vmatmul.mubr.bf16.gmra.mrb[0].mxu0 %v3267
        %v3395 = vpop.f32.mrb[0].mxu0
        %v3396 = vadd.f32 0.0, %v3395
        %v3397 = vpop.f32.mrb[0].mxu0
        %v3398 = vpop.f32.mrb[0].mxu0
        %v3399 = vadd.f32 0.0, %v3398
        %v3400 = vpop.f32.mrb[0].mxu0
        %3401 = vmatprep.mubr.bf16.mxu0 0
        %3402 = vmatmul.mubr.bf16.gmra.mrb[0].mxu0 %v3268
        %v3403 = vpop.f32.mrb[0].mxu0
        %v3404 = vadd.f32 0.0, %v3403
        %v3405 = vpop.f32.mrb[0].mxu0
        %v3406 = vpop.f32.mrb[0].mxu0
        %v3407 = vadd.f32 0.0, %v3406
        %v3408 = vpop.f32.mrb[0].mxu0
        %3409 = vmatprep.mubr.bf16.mxu0 0
        %3410 = vmatmul.mubr.bf16.gmra.mrb[0].mxu0 %v3269
        %v3411 = vpop.f32.mrb[0].mxu0
        %v3412 = vadd.f32 0.0, %v3411
        %v3413 = vpop.f32.mrb[0].mxu0
        %v3414 = vpop.f32.mrb[0].mxu0
        %v3415 = vadd.f32 0.0, %v3414
        %v3416 = vpop.f32.mrb[0].mxu0
        %3417 = vmatprep.mubr.bf16.mxu0 0
        %3418 = vmatmul.mubr.bf16.gmra.mrb[0].mxu0 %v3270
        %v3419 = vpop.f32.mrb[0].mxu0
        %v3420 = vadd.f32 0.0, %v3419
        %v3421 = vpop.f32.mrb[0].mxu0
        %v3422 = vpop.f32.mrb[0].mxu0
        %v3423 = vadd.f32 0.0, %v3422
        %v3424 = vpop.f32.mrb[0].mxu0
        %3425 = vmatprep.mubr.bf16.mxu0 0
        %3426 = vmatmul.mubr.bf16.gmra.mrb[0].mxu0 %v3271
        %v3427 = vpop.f32.mrb[0].mxu0
        %v3428 = vadd.f32 0.0, %v3427
        %v3429 = vpop.f32.mrb[0].mxu0
        %v3430 = vpop.f32.mrb[0].mxu0
        %v3431 = vadd.f32 0.0, %v3430
        %v3432 = vpop.f32.mrb[0].mxu0
        %3433 = vmatprep.mubr.bf16.mxu0 0
        %3434 = vmatmul.mubr.bf16.gmra.mrb[0].mxu0 %v3272
        %v3435 = vpop.f32.mrb[0].mxu0
        %v3436 = vadd.f32 0.0, %v3435
        %v3437 = vpop.f32.mrb[0].mxu0
        %v3438 = vpop.f32.mrb[0].mxu0
        %v3439 = vadd.f32 0.0, %v3438
        %v3440 = vpop.f32.mrb[0].mxu0
        %3441 = vmatprep.mubr.bf16.mxu0 0
        %3442 = vmatmul.mubr.bf16.gmra.mrb[0].mxu0 %v3273
        %v3443 = vpop.f32.mrb[0].mxu0
        %v3444 = vadd.f32 0.0, %v3443
        %v3445 = vpop.f32.mrb[0].mxu0
        %v3446 = vpop.f32.mrb[0].mxu0
        %v3447 = vadd.f32 0.0, %v3446
        %v3448 = vpop.f32.mrb[0].mxu0
        %3449 = vmatprep.mubr.bf16.mxu0 0
        %3450 = vmatmul.mubr.bf16.gmra.mrb[0].mxu0 %v3274
        %v3451 = vpop.f32.mrb[0].mxu0
        %v3452 = vadd.f32 0.0, %v3451
        %v3453 = vpop.f32.mrb[0].mxu0
        %v3454 = vpop.f32.mrb[0].mxu0
        %v3455 = vadd.f32 0.0, %v3454
        %v3456 = vpop.f32.mrb[0].mxu0
        %3457 = vmatprep.mubr.bf16.mxu0 0
        %3458 = vmatmul.mubr.bf16.gmra.mrb[0].mxu0 %v3275
        %v3459 = vpop.f32.mrb[0].mxu0
        %v3460 = vadd.f32 0.0, %v3459
        %v3461 = vpop.f32.mrb[0].mxu0
        %v3462 = vpop.f32.mrb[0].mxu0
        %v3463 = vadd.f32 0.0, %v3462
        %v3464 = vpop.f32.mrb[0].mxu0
        %3465 = vmatprep.mubr.bf16.mxu0 0
        %3466 = vmatmul.mubr.bf16.gmra.mrb[0].mxu0 %v3276
        %v3467 = vpop.f32.mrb[0].mxu0
        %v3468 = vadd.f32 0.0, %v3467
        %v3469 = vpop.f32.mrb[0].mxu0
        %v3470 = vpop.f32.mrb[0].mxu0
        %v3471 = vadd.f32 0.0, %v3470
        %v3472 = vpop.f32.mrb[0].mxu0
        %3473 = vmatprep.mubr.bf16.mxu0 0
        %3474 = vmatmul.mubr.bf16.gmra.mrb[0].mxu0 %v3277
        %v3475 = vpop.f32.mrb[0].mxu0
        %v3476 = vadd.f32 0.0, %v3475
        %v3477 = vpop.f32.mrb[0].mxu0
        %v3478 = vpop.f32.mrb[0].mxu0
        %v3479 = vadd.f32 0.0, %v3478
        %v3480 = vpop.f32.mrb[0].mxu0
        %3481 = vmatprep.mubr.bf16.mxu0 0
        %3482 = vmatmul.mubr.bf16.gmra.mrb[0].mxu0 %v3278
        %v3483 = vpop.f32.mrb[0].mxu0
        %v3484 = vadd.f32 0.0, %v3483
        %v3485 = vpop.f32.mrb[0].mxu0
        %v3486 = vpop.f32.mrb[0].mxu0
        %v3487 = vadd.f32 0.0, %v3486
        %v3488 = vpop.f32.mrb[0].mxu0
        %3489 = vmatprep.mubr.bf16.mxu0 0
        %3490 = vmatmul.mubr.bf16.gmra.mrb[0].mxu0 %v3279
        %v3491 = vpop.f32.mrb[0].mxu0
        %v3492 = vadd.f32 0.0, %v3491
        %v3493 = vpop.f32.mrb[0].mxu0
        %v3494 = vpop.f32.mrb[0].mxu0
        %v3495 = vadd.f32 0.0, %v3494
        %v3496 = vpop.f32.mrb[0].mxu0
        %3497 = vmatprep.mubr.bf16.mxu0 0
        %3498 = vmatmul.mubr.bf16.gmra.mrb[0].mxu0 %v3280
        %v3499 = vpop.f32.mrb[0].mxu0
        %v3500 = vadd.f32 0.0, %v3499
        %v3501 = vpop.f32.mrb[0].mxu0
        %v3502 = vpop.f32.mrb[0].mxu0
        %v3503 = vadd.f32 0.0, %v3502
        %v3504 = vpop.f32.mrb[0].mxu0
        %3505 = vdwg.mxu0
        %v3506 = vadd.f32 %v3380, %v3383
        %v3507 = vadd.f32 %v3506, %v3388
        %v3508 = vadd.f32 %v3507, %v3391
        %v3509 = vadd.f32 %v3508, %v3396
        %v3510 = vadd.f32 %v3509, %v3399
        %v3511 = vadd.f32 %v3510, %v3404
        %v3512 = vadd.f32 %v3511, %v3407
        %v3513 = vadd.f32 %v3512, %v3412
        %v3514 = vadd.f32 %v3513, %v3415
        %v3515 = vadd.f32 %v3514, %v3420
        %v3516 = vadd.f32 %v3515, %v3423
        %v3517 = vadd.f32 %v3516, %v3428
        %v3518 = vadd.f32 %v3517, %v3431
        %v3519 = vadd.f32 %v3518, %v3436
        %v3520 = vadd.f32 %v3519, %v3439
        %v3521 = vadd.f32 %v3520, %v3444
        %v3522 = vadd.f32 %v3521, %v3447
        %v3523 = vadd.f32 %v3522, %v3452
        %v3524 = vadd.f32 %v3523, %v3455
        %v3525 = vadd.f32 %v3524, %v3460
        %v3526 = vadd.f32 %v3525, %v3463
        %v3527 = vadd.f32 %v3526, %v3468
        %v3528 = vadd.f32 %v3527, %v3471
        %v3529 = vadd.f32 %v3528, %v3476
        %v3530 = vadd.f32 %v3529, %v3479
        %v3531 = vadd.f32 %v3530, %v3484
        %v3532 = vadd.f32 %v3531, %v3487
        %v3533 = vadd.f32 %v3532, %v3492
        %v3534 = vadd.f32 %v3533, %v3495
        %v3535 = vadd.f32 %v3534, %v3500
        %v3536 = vadd.f32 %v3535, %v3503
        %v3537 = vrot.slane %v3536, 4
        %v3538 = vadd.f32 %v3536, %v3537
        %v3539 = vrot.slane %v3538, 2
        %v3540 = vadd.f32 %v3538, %v3539
        %v3541 = vrot.slane %v3540, 1
        %v3542 = vadd.f32 %v3540, %v3541
        %v3543 = vmul.f32 %v3542, 0.00390625
        %v3544 = vsub.f32 %v3380, %v3543
        %v3545 = vsub.f32 %v3383, %v3543
        %v3546 = vsub.f32 %v3388, %v3543
        %v3547 = vsub.f32 %v3391, %v3543
        %v3548 = vsub.f32 %v3396, %v3543
        %v3549 = vsub.f32 %v3399, %v3543
        %v3550 = vsub.f32 %v3404, %v3543
        %v3551 = vsub.f32 %v3407, %v3543
        %v3552 = vsub.f32 %v3412, %v3543
        %v3553 = vsub.f32 %v3415, %v3543
        %v3554 = vsub.f32 %v3420, %v3543
        %v3555 = vsub.f32 %v3423, %v3543
        %v3556 = vsub.f32 %v3428, %v3543
        %v3557 = vsub.f32 %v3431, %v3543
        %v3558 = vsub.f32 %v3436, %v3543
        %v3559 = vsub.f32 %v3439, %v3543
        %v3560 = vsub.f32 %v3444, %v3543
        %v3561 = vsub.f32 %v3447, %v3543
        %v3562 = vsub.f32 %v3452, %v3543
        %v3563 = vsub.f32 %v3455, %v3543
        %v3564 = vsub.f32 %v3460, %v3543
        %v3565 = vsub.f32 %v3463, %v3543
        %v3566 = vsub.f32 %v3468, %v3543
        %v3567 = vsub.f32 %v3471, %v3543
        %v3568 = vsub.f32 %v3476, %v3543
        %v3569 = vsub.f32 %v3479, %v3543
        %v3570 = vsub.f32 %v3484, %v3543
        %v3571 = vsub.f32 %v3487, %v3543
        %v3572 = vsub.f32 %v3492, %v3543
        %v3573 = vsub.f32 %v3495, %v3543
        %v3574 = vsub.f32 %v3500, %v3543
        %v3575 = vsub.f32 %v3503, %v3543
        %v3576 = vmul.f32 %v3544, %v3544
        %v3577 = vmul.f32 %v3545, %v3545
        %v3578 = vmul.f32 %v3546, %v3546
        %v3579 = vmul.f32 %v3547, %v3547
        %v3580 = vmul.f32 %v3548, %v3548
        %v3581 = vmul.f32 %v3549, %v3549
        %v3582 = vmul.f32 %v3550, %v3550
        %v3583 = vmul.f32 %v3551, %v3551
        %v3584 = vmul.f32 %v3552, %v3552
        %v3585 = vmul.f32 %v3553, %v3553
        %v3586 = vmul.f32 %v3554, %v3554
        %v3587 = vmul.f32 %v3555, %v3555
        %v3588 = vmul.f32 %v3556, %v3556
        %v3589 = vmul.f32 %v3557, %v3557
        %v3590 = vmul.f32 %v3558, %v3558
        %v3591 = vmul.f32 %v3559, %v3559
        %v3592 = vmul.f32 %v3560, %v3560
        %v3593 = vmul.f32 %v3561, %v3561
        %v3594 = vmul.f32 %v3562, %v3562
        %v3595 = vmul.f32 %v3563, %v3563
        %v3596 = vmul.f32 %v3564, %v3564
        %v3597 = vmul.f32 %v3565, %v3565
        %v3598 = vmul.f32 %v3566, %v3566
        %v3599 = vmul.f32 %v3567, %v3567
        %v3600 = vmul.f32 %v3568, %v3568
        %v3601 = vmul.f32 %v3569, %v3569
        %v3602 = vmul.f32 %v3570, %v3570
        %v3603 = vmul.f32 %v3571, %v3571
        %v3604 = vmul.f32 %v3572, %v3572
        %v3605 = vmul.f32 %v3573, %v3573
        %v3606 = vmul.f32 %v3574, %v3574
        %v3607 = vmul.f32 %v3575, %v3575
        %v3608 = vadd.f32 %v3576, %v3577
        %v3609 = vadd.f32 %v3608, %v3578
        %v3610 = vadd.f32 %v3609, %v3579
        %v3611 = vadd.f32 %v3610, %v3580
        %v3612 = vadd.f32 %v3611, %v3581
        %v3613 = vadd.f32 %v3612, %v3582
        %v3614 = vadd.f32 %v3613, %v3583
        %v3615 = vadd.f32 %v3614, %v3584
        %v3616 = vadd.f32 %v3615, %v3585
        %v3617 = vadd.f32 %v3616, %v3586
        %v3618 = vadd.f32 %v3617, %v3587
        %v3619 = vadd.f32 %v3618, %v3588
        %v3620 = vadd.f32 %v3619, %v3589
        %v3621 = vadd.f32 %v3620, %v3590
        %v3622 = vadd.f32 %v3621, %v3591
        %v3623 = vadd.f32 %v3622, %v3592
        %v3624 = vadd.f32 %v3623, %v3593
        %v3625 = vadd.f32 %v3624, %v3594
        %v3626 = vadd.f32 %v3625, %v3595
        %v3627 = vadd.f32 %v3626, %v3596
        %v3628 = vadd.f32 %v3627, %v3597
        %v3629 = vadd.f32 %v3628, %v3598
        %v3630 = vadd.f32 %v3629, %v3599
        %v3631 = vadd.f32 %v3630, %v3600
        %v3632 = vadd.f32 %v3631, %v3601
        %v3633 = vadd.f32 %v3632, %v3602
        %v3634 = vadd.f32 %v3633, %v3603
        %v3635 = vadd.f32 %v3634, %v3604
        %v3636 = vadd.f32 %v3635, %v3605
        %v3637 = vadd.f32 %v3636, %v3606
        %v3638 = vadd.f32 %v3637, %v3607
        %v3639 = vrot.slane %v3638, 4
        %v3640 = vadd.f32 %v3638, %v3639
        %v3641 = vrot.slane %v3640, 2
        %v3642 = vadd.f32 %v3640, %v3641
        %v3643 = vrot.slane %v3642, 1
        %v3644 = vadd.f32 %v3642, %v3643
        %vm3645 = vcmask 1040384
        %v3646 = vsel %vm3645, %v3542, %v3644
        %3647 = vst [vmem:[%s136] sm:$0x3] %v3646
        %s3648 = sand.u32 %s71, 1
        %s3649 = scalar_lea.sflag [#allocation4], %s3648
        %s3650 = sand.u32 %s71, 1
        %s3651 = smul.addr %s3650, 2
        %s3652 = scalar_lea.vmem [#allocation3], %s3651
        // Predicated region
        $region29: #{tpu_custom_call.1} parent=27 // pred_check
          %p3653 = pneg %p81
        $region30: #{tpu_custom_call.1} parent=27 // pred_check_branch
          %3655 = sbr.rel (%p3653) target = $region32
        $region31: #{tpu_custom_call.1} parent=27 // pred_region
          %s3657 = ssub.s32 32, 32
          %3658 = vsyncadd %s3649, %s3657
          %s3659 = smul.addr %s16, 32
          %s3660 = scalar_lea.hbm %s2, %s3659
          %s3662 = sshll.u32 %s3652, 4
          %s3663 = int_to_ptr.vmem [resolvable:$true] %s3662
          %3665 = dma.vmem_to_hbm [thread:$0]  %s3663, 32, %s3660, %s3649
        $region32: #{tpu_custom_call.1} parent=27 // pred_fallthru
          _
      $region28: #{tpu_custom_call.1} parent=5 // pred_fallthru
        _
      %p3666 = scmp.le.s32.totalorder 2, %s11
      // Predicated region
      $region33: #{tpu_custom_call.1} parent=5 // pred_check
        %p3667 = pneg %p3666
      $region34: #{tpu_custom_call.1} parent=5 // pred_check_branch
        %3669 = sbr.rel (%p3667) target = $region36
      $region35: #{tpu_custom_call.1} parent=5 // pred_region
        %s3670 = ssub.s32 %s11, 2
        // Predicated region
        $region37: #{tpu_custom_call.1} parent=35 // pred_check
          %p3671 = pneg %p87
        $region38: #{tpu_custom_call.1} parent=35 // pred_check_branch
          %3673 = sbr.rel (%p3671) target = $region40
        $region39: #{tpu_custom_call.1} parent=35 // pred_region
          %s3674 = sand.u32 %s72, 1
          %s3675 = scalar_lea.sflag [#allocation4], %s3674
          %s3676 = sand.u32 %s72, 1
          %s3677 = smul.addr %s3676, 2
          %s3678 = scalar_lea.vmem [#allocation3], %s3677
          %3679 = dma.done %s3675, 32
        $region40: #{tpu_custom_call.1} parent=35 // pred_fallthru
          _
      $region36: #{tpu_custom_call.1} parent=5 // pred_fallthru
        _
    $region6: #{tpu_custom_call.1} parent=1 // loop_footer
      %s15 = sadd.s32 1, %s11
    $region7: #{tpu_custom_call.1} parent=1 // loop_footer_branch
      %10 = sbr.rel target = $region3
    $region8: #{tpu_custom_call.1} parent=1 // loop_exit
      _
    %3680 = vsyncpa [#allocation4], 1
    %s3681 = scalar_lea.sflag [#allocation4], 1
    %3682 = vsyncpa %s3681, 1

</llo_original>
